<compile_context>
chip_gen: v7x
topology: tpu7x:2x2x1
jax: 0.10.0
libtpu: 0.0.40
codegen_flags: <defaults>
</compile_context>

<pallas_src>
from functools import partial

import numpy as np
import jax
import jax.numpy as jnp
from jax.experimental import pallas as pl
from jax.experimental.pallas import tpu as pltpu


# ------------------------------ fused kernel -------------------------------- #

def _fused_kernel(x_ref, ste_ref, wqkv_ref, wc_ref, bias_ref, o_ref,
                  q_scr, k_scr, v_scr, *, d, h):
    # Block shapes ("nodes in lanes" layout, TN a multiple of 128):
    #   x_ref    : (1, T, H, TN)  X, channel-major per node tile
    #   ste_ref  : (1, 3H, T)     precomputed  STE @ W_ste + b  (channel-permuted)
    #   wqkv_ref : (3H, H)        fused / transposed / permuted Q|K|V X-weights
    #   wc_ref   : (H, 2H)        fused / transposed combine weights [W0.T | W1p.T]
    #   bias_ref : (H, 1)
    #   o_ref    : (1, T, H, TN)
    #   q_scr / k_scr / v_scr : (T, H, TN) f32 VMEM scratch
    _, T, H, TN = x_ref.shape
    ste = ste_ref[0]                                    # (3H, T)
    wqkv = wqkv_ref[...]                                # (3H, H)

    # ---- fused Q/K/V projection: one (3H,H)x(H,TN) matmul per time step ----
    # (Static Python loops over T: T is small & static, i.e. the unrolled
    #  equivalent of lax.fori_loop(..., unroll=True) with static ref indices.)
    for t in range(T):
        x_t = x_ref[0, t]                               # (H, TN)
        qkv = jnp.dot(wqkv, x_t, preferred_element_type=jnp.float32)
        qkv = jnp.maximum(qkv + ste[:, t:t + 1], 0.0)   # STE/bias add + ReLU
        q_scr[t] = qkv[0:H]
        k_scr[t] = qkv[H:2 * H]
        v_scr[t] = qkv[2 * H:3 * H]

    q = q_scr[...]                                      # (T, H, TN)

    # ---- attention, streamed over the key/time axis ------------------------
    # softmax is over the *query* axis (axis 0 here), so each key step tk is
    # independent: build (T, d, TN) scores, softmax over axis 0, accumulate
    # p * v[tk].  Channels were permuted so head(c) == c % d: the within-head
    # reduction is a sum of h aligned d-wide sublane blocks, and the d-wide
    # softmax weights are broadcast back with a cheap sublane concat.
    att = jnp.zeros((T, H, TN), jnp.float32)
    for tk in range(T):
        k_t = k_scr[tk]                                 # (H, TN)
        v_t = v_scr[tk]                                 # (H, TN)
        s = q[:, 0:d, :] * k_t[0:d, :][None]
        for j in range(1, h):
            lo, hi = j * d, (j + 1) * d
            s = s + q[:, lo:hi, :] * k_t[lo:hi, :][None]        # (T, d, TN)
        m = jnp.max(s, axis=0, keepdims=True)
        p = jnp.exp(s - m)
        p = p * (1.0 / jnp.sum(p, axis=0, keepdims=True))
        p_full = jnp.concatenate([p] * h, axis=1)               # (T, H, TN)
        att = att + p_full * v_t[None]

    # ---- combine:  out_t = Wc @ [x_t ; att_t] + bias  ----------------------
    wc = wc_ref[...]                                    # (H, 2H)
    b = bias_ref[...]                                   # (H, 1)
    for t in range(T):
        xa = jnp.concatenate([x_ref[0, t], att[t]], axis=0)     # (2H, TN)
        o_ref[0, t] = jnp.dot(wc, xa, preferred_element_type=jnp.float32) + b


# ----------------------------- tiling helpers -------------------------------- #

def _vmem_budget_bytes():
    try:
        cap = int(pltpu.get_tpu_info().vmem_capacity_bytes)
    except Exception:
        cap = 64 * 1024 * 1024          # conservative: v7x has 64 MiB per TC
    return (cap * 3) // 4               # ~48 MiB on v7x, ~96 MiB on v5e/v6e


def _num_tensorcores():
    try:
        return max(1, int(getattr(jax.devices()[0], "num_cores", 1)))
    except Exception:
        return 1


def _pick_node_tile(B, T, N, H, vmem_budget):
    """Node tile TN (multiple of 128, lane-dense) and the padded node count."""
    # ~14 live f32 copies of a (T, H, TN) slab: x in (x2 buffers), out (x2),
    # q/k/v scratch (x3), att accumulator + streamed-attention temps, slack.
    per_col = 14 * T * H * 4
    fixed = 2 << 20
    tn_cap = max(128, ((vmem_budget - fixed) // per_col) // 128 * 128)
    tn = min(tn_cap, pl.cdiv(N, 128) * 128)
    # Give a multi-TensorCore chip (v7x / megacore) at least 2 parallel grid
    # steps; on single-TC chips (v5e/v6e) the grid is a serial loop, so keep
    # the tile as large as possible instead of forcibly halving it.
    if _num_tensorcores() > 1 and tn > 128 and B * pl.cdiv(N, tn) < 2:
        tn = max(128, ((tn // 2) // 128) * 128)
    return tn, pl.cdiv(N, tn) * tn


# ------------------------------ forward pass -------------------------------- #

@partial(jax.jit, static_argnames=("d",))
def transform_attention_forward(X, STE_P, STE_Q, params, d=8):
    B, T, N, H = X.shape
    tdim = STE_P.shape[-1]
    # TODO(synk): only the T == P == Q case is supported (as used in PM-DMNet);
    # the torch X.expand over a size-1 time dim is then the identity.
    assert STE_P.shape[1] == T and STE_Q.shape[1] == T
    assert H % d == 0 and d % 8 == 0 and H % 8 == 0
    h = H // d

    # Kernel channel order: head(c) == c % d  (original order: head(c) == c // h).
    perm = (np.arange(H) % d) * h + (np.arange(H) // d)      # kernel -> original

    Wq, Wk, Wv = params['Wq'], params['Wk'], params['Wv']
    bq, bk, bv = params['bq'], params['bk'], params['bv']

    # Fused, transposed, channel-permuted X-part of the Q/K/V projections.
    w_qkv = jnp.concatenate([Wq[tdim:][:, perm].T,
                             Wk[tdim:][:, perm].T,
                             Wv[tdim:][:, perm].T], axis=0)          # (3H, H)
    # STE projections + biases hoisted out of the kernel (tiny matmuls).
    q_add = STE_Q @ Wq[:tdim][:, perm] + bq[perm]                    # (B, T, H)
    k_add = STE_P @ Wk[:tdim][:, perm] + bk[perm]
    v_add = STE_P @ Wv[:tdim][:, perm] + bv[perm]
    ste_add = jnp.swapaxes(
        jnp.concatenate([q_add, k_add, v_add], axis=-1), 1, 2)       # (B, 3H, T)

    # Fused, transposed combine weights; att-input rows permuted to kernel order.
    w_comb = jnp.concatenate([params['W'][0].T,
                              params['W'][1][perm].T], axis=1)       # (H, 2H)
    bias_col = params['bias'][:, None]                               # (H, 1)

    vmem_budget = _vmem_budget_bytes()
    TN, Np = _pick_node_tile(B, T, N, H, vmem_budget)
    NJ = Np // TN

    # Lane-dense layout: nodes go to the lane (last) axis; pad N up to the tile.
    Xt = jnp.swapaxes(X, 2, 3)                                       # (B, T, H, N)
    if Np != N:
        Xt = jnp.pad(Xt, ((0, 0), (0, 0), (0, 0), (0, Np - N)))

    out_t = pl.pallas_call(
        partial(_fused_kernel, d=d, h=h),
        out_shape=jax.ShapeDtypeStruct((B, T, H, Np), jnp.float32),
        grid=(B, NJ),
        in_specs=[
            pl.BlockSpec((1, T, H, TN), lambda b, j: (b, 0, 0, j)),  # X (transposed)
            pl.BlockSpec((1, 3 * H, T), lambda b, j: (b, 0, 0)),     # STE additive term
            pl.BlockSpec((3 * H, H), lambda b, j: (0, 0)),           # fused QKV weights
            pl.BlockSpec((H, 2 * H), lambda b, j: (0, 0)),           # fused combine weights
            pl.BlockSpec((H, 1), lambda b, j: (0, 0)),               # combine bias
        ],
        out_specs=pl.BlockSpec((1, T, H, TN), lambda b, j: (b, 0, 0, j)),
        scratch_shapes=[pltpu.VMEM((T, H, TN), jnp.float32) for _ in range(3)],
        compiler_params=pltpu.CompilerParams(
            dimension_semantics=("parallel", "parallel"),
            vmem_limit_bytes=int(vmem_budget)),
    )(Xt, ste_add, w_qkv, w_comb, bias_col)

    return jnp.swapaxes(out_t[:, :, :, :N], 2, 3)                    # (B, T, N, H)


# --------------------------- pure-JAX reference ------------------------------ #

def reference_forward(X, STE_P, STE_Q, params, d=8):
    B, T, N, H = X.shape
    tdim = STE_P.shape[-1]
    steq = jnp.broadcast_to(STE_Q[:, :, None, :], (B, STE_Q.shape[1], N, tdim))
    step = jnp.broadcast_to(STE_P[:, :, None, :], (B, STE_P.shape[1], N, tdim))
    query = jax.nn.relu(jnp.concatenate([steq, X], -1) @ params['Wq'] + params['bq'])
    key = jax.nn.relu(jnp.concatenate([step, X], -1) @ params['Wk'] + params['bk'])
    value = jax.nn.relu(jnp.concatenate([step, X], -1) @ params['Wv'] + params['bv'])

    def split_heads(t):
        return jnp.concatenate(jnp.split(t, d, axis=-1), axis=0)  # (d*B,T,N,h)

    q = jnp.swapaxes(split_heads(query), 1, 2)                     # (d*B,N,Tq,h)
    k = split_heads(key)
    k = jnp.swapaxes(jnp.swapaxes(k, 1, 2), 2, 3)                  # (d*B,N,h,Tk)
    v = jnp.swapaxes(split_heads(value), 1, 2)                     # (d*B,N,Tk,h)
    att = q @ k
    att = jax.nn.softmax(att, axis=-2)                             # query axis!
    o = att @ v
    o = jnp.swapaxes(o, 1, 2)
    o = jnp.concatenate(jnp.split(o, d, axis=0), axis=-1)          # (B,T,N,H)
    stacked = jnp.stack([X, o], axis=3)                            # (B,T,N,2,H)
    return jnp.einsum('btnki,kio->btno', stacked, params['W']) + params['bias']


# ----------------------------------- main ------------------------------------ #

if __name__ == "__main__":
    B, T, N = 2, 8, 16          # batch, time steps (P == Q == T), nodes
    hidden_dim, time_dim, d = 32, 8, 8
    Din = time_dim + hidden_dim

    key = jax.random.PRNGKey(0)
    ks = jax.random.split(key, 12)
    params = {
        'Wq': jax.random.normal(ks[0], (Din, hidden_dim), jnp.float32) * 0.1,
        'bq': jax.random.normal(ks[1], (hidden_dim,), jnp.float32) * 0.1,
        'Wk': jax.random.normal(ks[2], (Din, hidden_dim), jnp.float32) * 0.1,
        'bk': jax.random.normal(ks[3], (hidden_dim,), jnp.float32) * 0.1,
        'Wv': jax.random.normal(ks[4], (Din, hidden_dim), jnp.float32) * 0.1,
        'bv': jax.random.normal(ks[5], (hidden_dim,), jnp.float32) * 0.1,
        'W': jax.random.normal(ks[6], (2, hidden_dim, hidden_dim), jnp.float32) * 0.1,
        'bias': jax.random.normal(ks[7], (hidden_dim,), jnp.float32) * 0.1,
    }
    # fc24, fc25, weights_pool, bias_pool, layer_norm are dead parameters in the
    # PyTorch forward() and are not materialized here.

    X = jax.random.normal(ks[8], (B, T, N, hidden_dim), jnp.float32)
    STE_P = jax.random.normal(ks[9], (B, T, time_dim), jnp.float32)
    STE_Q = jax.random.normal(ks[10], (B, T, time_dim), jnp.float32)

    out = jax.block_until_ready(
        transform_attention_forward(X, STE_P, STE_Q, params, d=d))
    ref = jax.block_until_ready(reference_forward(X, STE_P, STE_Q, params, d=d))

    np.testing.assert_allclose(np.asarray(out), np.asarray(ref),
                               rtol=1e-4, atol=1e-4)
    print("KERNEL_OK")
</pallas_src>

<mosaic_0001>
module attributes {stable_mosaic.version = 11 : i64} {
  func.func @_fused_kernel(%arg0: i32, %arg1: i32, %arg2: memref<1x8x32x128xf32, #tpu.memory_space<vmem>>, %arg3: memref<1x96x8xf32, #tpu.memory_space<vmem>>, %arg4: memref<96x32xf32, #tpu.memory_space<vmem>>, %arg5: memref<32x64xf32, #tpu.memory_space<vmem>>, %arg6: memref<32x1xf32, #tpu.memory_space<vmem>>, %arg7: memref<1x8x32x128xf32, #tpu.memory_space<vmem>>, %arg8: memref<8x32x128xf32, #tpu.memory_space<vmem>>, %arg9: memref<8x32x128xf32, #tpu.memory_space<vmem>>, %arg10: memref<8x32x128xf32, #tpu.memory_space<vmem>>) attributes {dimension_semantics = [#tpu.dimension_semantics<parallel>, #tpu.dimension_semantics<parallel>], iteration_bounds = array<i64: 2, 1>, scalar_prefetch = 0 : i64, scratch_operands = 3 : i64, tpu.core_type = #tpu.core_type<tc>, window_params = [{transform_indices = @transform_0, window_bounds = array<i64: 1, 8, 32, 128>}, {transform_indices = @transform_1, window_bounds = array<i64: 1, 96, 8>}, {pipeline_mode = #tpu.pipeline_mode<synchronous>, transform_indices = @transform_2, window_bounds = array<i64: 96, 32>}, {pipeline_mode = #tpu.pipeline_mode<synchronous>, transform_indices = @transform_3, window_bounds = array<i64: 32, 64>}, {pipeline_mode = #tpu.pipeline_mode<synchronous>, transform_indices = @transform_4, window_bounds = array<i64: 32, 1>}, {transform_indices = @transform_5, window_bounds = array<i64: 1, 8, 32, 128>}]} {
    %c0 = arith.constant 0 : index
    %c0_0 = arith.constant 0 : index
    %c0_1 = arith.constant 0 : index
    %0 = vector.load %arg3[%c0, %c0_0, %c0_1] : memref<1x96x8xf32, #tpu.memory_space<vmem>>, vector<1x96x8xf32>
    %1 = vector.shape_cast %0 : vector<1x96x8xf32> to vector<96x8xf32>
    %c0_2 = arith.constant 0 : index
    %c0_3 = arith.constant 0 : index
    %2 = vector.load %arg4[%c0_2, %c0_3] : memref<96x32xf32, #tpu.memory_space<vmem>>, vector<96x32xf32>
    %c0_4 = arith.constant 0 : index
    %c0_5 = arith.constant 0 : index
    %c0_6 = arith.constant 0 : index
    %c0_7 = arith.constant 0 : index
    %3 = vector.load %arg2[%c0_4, %c0_5, %c0_6, %c0_7] : memref<1x8x32x128xf32, #tpu.memory_space<vmem>>, vector<1x1x32x128xf32>
    %4 = vector.shape_cast %3 : vector<1x1x32x128xf32> to vector<32x128xf32>
    %cst = arith.constant dense<0.000000e+00> : vector<96x128xf32>
    %5 = tpu.matmul %2, %4, %cst {dimension_numbers = #tpu.dot_dimension_numbers<[1], [0], [0], [1], [0, 0, 1, 1], [], []>} : vector<96x32xf32>, vector<32x128xf32>, vector<96x128xf32> -> vector<96x128xf32>
    %6 = vector.extract_strided_slice %1 {offsets = [0, 0], sizes = [96, 1], strides = [1, 1]} : vector<96x8xf32> to vector<96x1xf32>
    %7 = vector.broadcast %6 : vector<96x1xf32> to vector<96x128xf32>
    %8 = arith.addf %5, %7 : vector<96x128xf32>
    %cst_8 = arith.constant 0.000000e+00 : f32
    %9 = vector.broadcast %cst_8 : f32 to vector<96x128xf32>
    %10 = arith.maximumf %8, %9 : vector<96x128xf32>
    %11 = vector.extract_strided_slice %10 {offsets = [0, 0], sizes = [32, 128], strides = [1, 1]} : vector<96x128xf32> to vector<32x128xf32>
    %c0_9 = arith.constant 0 : index
    %c0_10 = arith.constant 0 : index
    %c0_11 = arith.constant 0 : index
    %12 = vector.load %arg8[%c0_9, %c0_10, %c0_11] : memref<8x32x128xf32, #tpu.memory_space<vmem>>, vector<1x32x128xf32>
    %13 = vector.shape_cast %12 : vector<1x32x128xf32> to vector<32x128xf32>
    %14 = vector.shape_cast %11 : vector<32x128xf32> to vector<1x32x128xf32>
    tpu.vector_store %arg8[%c0_9, %c0_10, %c0_11], %14 {strides = array<i32>} : memref<8x32x128xf32, #tpu.memory_space<vmem>>, vector<1x32x128xf32>,
    %15 = vector.extract_strided_slice %10 {offsets = [32, 0], sizes = [32, 128], strides = [1, 1]} : vector<96x128xf32> to vector<32x128xf32>
    %c0_12 = arith.constant 0 : index
    %c0_13 = arith.constant 0 : index
    %c0_14 = arith.constant 0 : index
    %16 = vector.load %arg9[%c0_12, %c0_13, %c0_14] : memref<8x32x128xf32, #tpu.memory_space<vmem>>, vector<1x32x128xf32>
    %17 = vector.shape_cast %16 : vector<1x32x128xf32> to vector<32x128xf32>
    %18 = vector.shape_cast %15 : vector<32x128xf32> to vector<1x32x128xf32>
    tpu.vector_store %arg9[%c0_12, %c0_13, %c0_14], %18 {strides = array<i32>} : memref<8x32x128xf32, #tpu.memory_space<vmem>>, vector<1x32x128xf32>,
    %19 = vector.extract_strided_slice %10 {offsets = [64, 0], sizes = [32, 128], strides = [1, 1]} : vector<96x128xf32> to vector<32x128xf32>
    %c0_15 = arith.constant 0 : index
    %c0_16 = arith.constant 0 : index
    %c0_17 = arith.constant 0 : index
    %20 = vector.load %arg10[%c0_15, %c0_16, %c0_17] : memref<8x32x128xf32, #tpu.memory_space<vmem>>, vector<1x32x128xf32>
    %21 = vector.shape_cast %20 : vector<1x32x128xf32> to vector<32x128xf32>
    %22 = vector.shape_cast %19 : vector<32x128xf32> to vector<1x32x128xf32>
    tpu.vector_store %arg10[%c0_15, %c0_16, %c0_17], %22 {strides = array<i32>} : memref<8x32x128xf32, #tpu.memory_space<vmem>>, vector<1x32x128xf32>,
    %c0_18 = arith.constant 0 : index
    %c1 = arith.constant 1 : index
    %c0_19 = arith.constant 0 : index
    %c0_20 = arith.constant 0 : index
    %23 = vector.load %arg2[%c0_18, %c1, %c0_19, %c0_20] : memref<1x8x32x128xf32, #tpu.memory_space<vmem>>, vector<1x1x32x128xf32>
    %24 = vector.shape_cast %23 : vector<1x1x32x128xf32> to vector<32x128xf32>
    %cst_21 = arith.constant dense<0.000000e+00> : vector<96x128xf32>
    %25 = tpu.matmul %2, %24, %cst_21 {dimension_numbers = #tpu.dot_dimension_numbers<[1], [0], [0], [1], [0, 0, 1, 1], [], []>} : vector<96x32xf32>, vector<32x128xf32>, vector<96x128xf32> -> vector<96x128xf32>
    %26 = vector.extract_strided_slice %1 {offsets = [0, 1], sizes = [96, 1], strides = [1, 1]} : vector<96x8xf32> to vector<96x1xf32>
    %27 = vector.broadcast %26 : vector<96x1xf32> to vector<96x128xf32>
    %28 = arith.addf %25, %27 : vector<96x128xf32>
    %cst_22 = arith.constant 0.000000e+00 : f32
    %29 = vector.broadcast %cst_22 : f32 to vector<96x128xf32>
    %30 = arith.maximumf %28, %29 : vector<96x128xf32>
    %31 = vector.extract_strided_slice %30 {offsets = [0, 0], sizes = [32, 128], strides = [1, 1]} : vector<96x128xf32> to vector<32x128xf32>
    %c1_23 = arith.constant 1 : index
    %c0_24 = arith.constant 0 : index
    %c0_25 = arith.constant 0 : index
    %32 = vector.load %arg8[%c1_23, %c0_24, %c0_25] : memref<8x32x128xf32, #tpu.memory_space<vmem>>, vector<1x32x128xf32>
    %33 = vector.shape_cast %32 : vector<1x32x128xf32> to vector<32x128xf32>
    %34 = vector.shape_cast %31 : vector<32x128xf32> to vector<1x32x128xf32>
    tpu.vector_store %arg8[%c1_23, %c0_24, %c0_25], %34 {strides = array<i32>} : memref<8x32x128xf32, #tpu.memory_space<vmem>>, vector<1x32x128xf32>,
    %35 = vector.extract_strided_slice %30 {offsets = [32, 0], sizes = [32, 128], strides = [1, 1]} : vector<96x128xf32> to vector<32x128xf32>
    %c1_26 = arith.constant 1 : index
    %c0_27 = arith.constant 0 : index
    %c0_28 = arith.constant 0 : index
    %36 = vector.load %arg9[%c1_26, %c0_27, %c0_28] : memref<8x32x128xf32, #tpu.memory_space<vmem>>, vector<1x32x128xf32>
    %37 = vector.shape_cast %36 : vector<1x32x128xf32> to vector<32x128xf32>
    %38 = vector.shape_cast %35 : vector<32x128xf32> to vector<1x32x128xf32>
    tpu.vector_store %arg9[%c1_26, %c0_27, %c0_28], %38 {strides = array<i32>} : memref<8x32x128xf32, #tpu.memory_space<vmem>>, vector<1x32x128xf32>,
    %39 = vector.extract_strided_slice %30 {offsets = [64, 0], sizes = [32, 128], strides = [1, 1]} : vector<96x128xf32> to vector<32x128xf32>
    %c1_29 = arith.constant 1 : index
    %c0_30 = arith.constant 0 : index
    %c0_31 = arith.constant 0 : index
    %40 = vector.load %arg10[%c1_29, %c0_30, %c0_31] : memref<8x32x128xf32, #tpu.memory_space<vmem>>, vector<1x32x128xf32>
    %41 = vector.shape_cast %40 : vector<1x32x128xf32> to vector<32x128xf32>
    %42 = vector.shape_cast %39 : vector<32x128xf32> to vector<1x32x128xf32>
    tpu.vector_store %arg10[%c1_29, %c0_30, %c0_31], %42 {strides = array<i32>} : memref<8x32x128xf32, #tpu.memory_space<vmem>>, vector<1x32x128xf32>,
    %c0_32 = arith.constant 0 : index
    %c2 = arith.constant 2 : index
    %c0_33 = arith.constant 0 : index
    %c0_34 = arith.constant 0 : index
    %43 = vector.load %arg2[%c0_32, %c2, %c0_33, %c0_34] : memref<1x8x32x128xf32, #tpu.memory_space<vmem>>, vector<1x1x32x128xf32>
    %44 = vector.shape_cast %43 : vector<1x1x32x128xf32> to vector<32x128xf32>
    %cst_35 = arith.constant dense<0.000000e+00> : vector<96x128xf32>
    %45 = tpu.matmul %2, %44, %cst_35 {dimension_numbers = #tpu.dot_dimension_numbers<[1], [0], [0], [1], [0, 0, 1, 1], [], []>} : vector<96x32xf32>, vector<32x128xf32>, vector<96x128xf32> -> vector<96x128xf32>
    %46 = vector.extract_strided_slice %1 {offsets = [0, 2], sizes = [96, 1], strides = [1, 1]} : vector<96x8xf32> to vector<96x1xf32>
    %47 = vector.broadcast %46 : vector<96x1xf32> to vector<96x128xf32>
    %48 = arith.addf %45, %47 : vector<96x128xf32>
    %cst_36 = arith.constant 0.000000e+00 : f32
    %49 = vector.broadcast %cst_36 : f32 to vector<96x128xf32>
    %50 = arith.maximumf %48, %49 : vector<96x128xf32>
    %51 = vector.extract_strided_slice %50 {offsets = [0, 0], sizes = [32, 128], strides = [1, 1]} : vector<96x128xf32> to vector<32x128xf32>
    %c2_37 = arith.constant 2 : index
    %c0_38 = arith.constant 0 : index
    %c0_39 = arith.constant 0 : index
    %52 = vector.load %arg8[%c2_37, %c0_38, %c0_39] : memref<8x32x128xf32, #tpu.memory_space<vmem>>, vector<1x32x128xf32>
    %53 = vector.shape_cast %52 : vector<1x32x128xf32> to vector<32x128xf32>
    %54 = vector.shape_cast %51 : vector<32x128xf32> to vector<1x32x128xf32>
    tpu.vector_store %arg8[%c2_37, %c0_38, %c0_39], %54 {strides = array<i32>} : memref<8x32x128xf32, #tpu.memory_space<vmem>>, vector<1x32x128xf32>,
    %55 = vector.extract_strided_slice %50 {offsets = [32, 0], sizes = [32, 128], strides = [1, 1]} : vector<96x128xf32> to vector<32x128xf32>
    %c2_40 = arith.constant 2 : index
    %c0_41 = arith.constant 0 : index
    %c0_42 = arith.constant 0 : index
    %56 = vector.load %arg9[%c2_40, %c0_41, %c0_42] : memref<8x32x128xf32, #tpu.memory_space<vmem>>, vector<1x32x128xf32>
    %57 = vector.shape_cast %56 : vector<1x32x128xf32> to vector<32x128xf32>
    %58 = vector.shape_cast %55 : vector<32x128xf32> to vector<1x32x128xf32>
    tpu.vector_store %arg9[%c2_40, %c0_41, %c0_42], %58 {strides = array<i32>} : memref<8x32x128xf32, #tpu.memory_space<vmem>>, vector<1x32x128xf32>,
    %59 = vector.extract_strided_slice %50 {offsets = [64, 0], sizes = [32, 128], strides = [1, 1]} : vector<96x128xf32> to vector<32x128xf32>
    %c2_43 = arith.constant 2 : index
    %c0_44 = arith.constant 0 : index
    %c0_45 = arith.constant 0 : index
    %60 = vector.load %arg10[%c2_43, %c0_44, %c0_45] : memref<8x32x128xf32, #tpu.memory_space<vmem>>, vector<1x32x128xf32>
    %61 = vector.shape_cast %60 : vector<1x32x128xf32> to vector<32x128xf32>
    %62 = vector.shape_cast %59 : vector<32x128xf32> to vector<1x32x128xf32>
    tpu.vector_store %arg10[%c2_43, %c0_44, %c0_45], %62 {strides = array<i32>} : memref<8x32x128xf32, #tpu.memory_space<vmem>>, vector<1x32x128xf32>,
    %c0_46 = arith.constant 0 : index
    %c3 = arith.constant 3 : index
    %c0_47 = arith.constant 0 : index
    %c0_48 = arith.constant 0 : index
    %63 = vector.load %arg2[%c0_46, %c3, %c0_47, %c0_48] : memref<1x8x32x128xf32, #tpu.memory_space<vmem>>, vector<1x1x32x128xf32>
    %64 = vector.shape_cast %63 : vector<1x1x32x128xf32> to vector<32x128xf32>
    %cst_49 = arith.constant dense<0.000000e+00> : vector<96x128xf32>
    %65 = tpu.matmul %2, %64, %cst_49 {dimension_numbers = #tpu.dot_dimension_numbers<[1], [0], [0], [1], [0, 0, 1, 1], [], []>} : vector<96x32xf32>, vector<32x128xf32>, vector<96x128xf32> -> vector<96x128xf32>
    %66 = vector.extract_strided_slice %1 {offsets = [0, 3], sizes = [96, 1], strides = [1, 1]} : vector<96x8xf32> to vector<96x1xf32>
    %67 = vector.broadcast %66 : vector<96x1xf32> to vector<96x128xf32>
    %68 = arith.addf %65, %67 : vector<96x128xf32>
    %cst_50 = arith.constant 0.000000e+00 : f32
    %69 = vector.broadcast %cst_50 : f32 to vector<96x128xf32>
    %70 = arith.maximumf %68, %69 : vector<96x128xf32>
    %71 = vector.extract_strided_slice %70 {offsets = [0, 0], sizes = [32, 128], strides = [1, 1]} : vector<96x128xf32> to vector<32x128xf32>
    %c3_51 = arith.constant 3 : index
    %c0_52 = arith.constant 0 : index
    %c0_53 = arith.constant 0 : index
    %72 = vector.load %arg8[%c3_51, %c0_52, %c0_53] : memref<8x32x128xf32, #tpu.memory_space<vmem>>, vector<1x32x128xf32>
    %73 = vector.shape_cast %72 : vector<1x32x128xf32> to vector<32x128xf32>
    %74 = vector.shape_cast %71 : vector<32x128xf32> to vector<1x32x128xf32>
    tpu.vector_store %arg8[%c3_51, %c0_52, %c0_53], %74 {strides = array<i32>} : memref<8x32x128xf32, #tpu.memory_space<vmem>>, vector<1x32x128xf32>,
    %75 = vector.extract_strided_slice %70 {offsets = [32, 0], sizes = [32, 128], strides = [1, 1]} : vector<96x128xf32> to vector<32x128xf32>
    %c3_54 = arith.constant 3 : index
    %c0_55 = arith.constant 0 : index
    %c0_56 = arith.constant 0 : index
    %76 = vector.load %arg9[%c3_54, %c0_55, %c0_56] : memref<8x32x128xf32, #tpu.memory_space<vmem>>, vector<1x32x128xf32>
    %77 = vector.shape_cast %76 : vector<1x32x128xf32> to vector<32x128xf32>
    %78 = vector.shape_cast %75 : vector<32x128xf32> to vector<1x32x128xf32>
    tpu.vector_store %arg9[%c3_54, %c0_55, %c0_56], %78 {strides = array<i32>} : memref<8x32x128xf32, #tpu.memory_space<vmem>>, vector<1x32x128xf32>,
    %79 = vector.extract_strided_slice %70 {offsets = [64, 0], sizes = [32, 128], strides = [1, 1]} : vector<96x128xf32> to vector<32x128xf32>
    %c3_57 = arith.constant 3 : index
    %c0_58 = arith.constant 0 : index
    %c0_59 = arith.constant 0 : index
    %80 = vector.load %arg10[%c3_57, %c0_58, %c0_59] : memref<8x32x128xf32, #tpu.memory_space<vmem>>, vector<1x32x128xf32>
    %81 = vector.shape_cast %80 : vector<1x32x128xf32> to vector<32x128xf32>
    %82 = vector.shape_cast %79 : vector<32x128xf32> to vector<1x32x128xf32>
    tpu.vector_store %arg10[%c3_57, %c0_58, %c0_59], %82 {strides = array<i32>} : memref<8x32x128xf32, #tpu.memory_space<vmem>>, vector<1x32x128xf32>,
    %c0_60 = arith.constant 0 : index
    %c4 = arith.constant 4 : index
    %c0_61 = arith.constant 0 : index
    %c0_62 = arith.constant 0 : index
    %83 = vector.load %arg2[%c0_60, %c4, %c0_61, %c0_62] : memref<1x8x32x128xf32, #tpu.memory_space<vmem>>, vector<1x1x32x128xf32>
    %84 = vector.shape_cast %83 : vector<1x1x32x128xf32> to vector<32x128xf32>
    %cst_63 = arith.constant dense<0.000000e+00> : vector<96x128xf32>
    %85 = tpu.matmul %2, %84, %cst_63 {dimension_numbers = #tpu.dot_dimension_numbers<[1], [0], [0], [1], [0, 0, 1, 1], [], []>} : vector<96x32xf32>, vector<32x128xf32>, vector<96x128xf32> -> vector<96x128xf32>
    %86 = vector.extract_strided_slice %1 {offsets = [0, 4], sizes = [96, 1], strides = [1, 1]} : vector<96x8xf32> to vector<96x1xf32>
    %87 = vector.broadcast %86 : vector<96x1xf32> to vector<96x128xf32>
    %88 = arith.addf %85, %87 : vector<96x128xf32>
    %cst_64 = arith.constant 0.000000e+00 : f32
    %89 = vector.broadcast %cst_64 : f32 to vector<96x128xf32>
    %90 = arith.maximumf %88, %89 : vector<96x128xf32>
    %91 = vector.extract_strided_slice %90 {offsets = [0, 0], sizes = [32, 128], strides = [1, 1]} : vector<96x128xf32> to vector<32x128xf32>
    %c4_65 = arith.constant 4 : index
    %c0_66 = arith.constant 0 : index
    %c0_67 = arith.constant 0 : index
    %92 = vector.load %arg8[%c4_65, %c0_66, %c0_67] : memref<8x32x128xf32, #tpu.memory_space<vmem>>, vector<1x32x128xf32>
    %93 = vector.shape_cast %92 : vector<1x32x128xf32> to vector<32x128xf32>
    %94 = vector.shape_cast %91 : vector<32x128xf32> to vector<1x32x128xf32>
    tpu.vector_store %arg8[%c4_65, %c0_66, %c0_67], %94 {strides = array<i32>} : memref<8x32x128xf32, #tpu.memory_space<vmem>>, vector<1x32x128xf32>,
    %95 = vector.extract_strided_slice %90 {offsets = [32, 0], sizes = [32, 128], strides = [1, 1]} : vector<96x128xf32> to vector<32x128xf32>
    %c4_68 = arith.constant 4 : index
    %c0_69 = arith.constant 0 : index
    %c0_70 = arith.constant 0 : index
    %96 = vector.load %arg9[%c4_68, %c0_69, %c0_70] : memref<8x32x128xf32, #tpu.memory_space<vmem>>, vector<1x32x128xf32>
    %97 = vector.shape_cast %96 : vector<1x32x128xf32> to vector<32x128xf32>
    %98 = vector.shape_cast %95 : vector<32x128xf32> to vector<1x32x128xf32>
    tpu.vector_store %arg9[%c4_68, %c0_69, %c0_70], %98 {strides = array<i32>} : memref<8x32x128xf32, #tpu.memory_space<vmem>>, vector<1x32x128xf32>,
    %99 = vector.extract_strided_slice %90 {offsets = [64, 0], sizes = [32, 128], strides = [1, 1]} : vector<96x128xf32> to vector<32x128xf32>
    %c4_71 = arith.constant 4 : index
    %c0_72 = arith.constant 0 : index
    %c0_73 = arith.constant 0 : index
    %100 = vector.load %arg10[%c4_71, %c0_72, %c0_73] : memref<8x32x128xf32, #tpu.memory_space<vmem>>, vector<1x32x128xf32>
    %101 = vector.shape_cast %100 : vector<1x32x128xf32> to vector<32x128xf32>
    %102 = vector.shape_cast %99 : vector<32x128xf32> to vector<1x32x128xf32>
    tpu.vector_store %arg10[%c4_71, %c0_72, %c0_73], %102 {strides = array<i32>} : memref<8x32x128xf32, #tpu.memory_space<vmem>>, vector<1x32x128xf32>,
    %c0_74 = arith.constant 0 : index
    %c5 = arith.constant 5 : index
    %c0_75 = arith.constant 0 : index
    %c0_76 = arith.constant 0 : index
    %103 = vector.load %arg2[%c0_74, %c5, %c0_75, %c0_76] : memref<1x8x32x128xf32, #tpu.memory_space<vmem>>, vector<1x1x32x128xf32>
    %104 = vector.shape_cast %103 : vector<1x1x32x128xf32> to vector<32x128xf32>
    %cst_77 = arith.constant dense<0.000000e+00> : vector<96x128xf32>
    %105 = tpu.matmul %2, %104, %cst_77 {dimension_numbers = #tpu.dot_dimension_numbers<[1], [0], [0], [1], [0, 0, 1, 1], [], []>} : vector<96x32xf32>, vector<32x128xf32>, vector<96x128xf32> -> vector<96x128xf32>
    %106 = vector.extract_strided_slice %1 {offsets = [0, 5], sizes = [96, 1], strides = [1, 1]} : vector<96x8xf32> to vector<96x1xf32>
    %107 = vector.broadcast %106 : vector<96x1xf32> to vector<96x128xf32>
    %108 = arith.addf %105, %107 : vector<96x128xf32>
    %cst_78 = arith.constant 0.000000e+00 : f32
    %109 = vector.broadcast %cst_78 : f32 to vector<96x128xf32>
    %110 = arith.maximumf %108, %109 : vector<96x128xf32>
    %111 = vector.extract_strided_slice %110 {offsets = [0, 0], sizes = [32, 128], strides = [1, 1]} : vector<96x128xf32> to vector<32x128xf32>
    %c5_79 = arith.constant 5 : index
    %c0_80 = arith.constant 0 : index
    %c0_81 = arith.constant 0 : index
    %112 = vector.load %arg8[%c5_79, %c0_80, %c0_81] : memref<8x32x128xf32, #tpu.memory_space<vmem>>, vector<1x32x128xf32>
    %113 = vector.shape_cast %112 : vector<1x32x128xf32> to vector<32x128xf32>
    %114 = vector.shape_cast %111 : vector<32x128xf32> to vector<1x32x128xf32>
    tpu.vector_store %arg8[%c5_79, %c0_80, %c0_81], %114 {strides = array<i32>} : memref<8x32x128xf32, #tpu.memory_space<vmem>>, vector<1x32x128xf32>,
    %115 = vector.extract_strided_slice %110 {offsets = [32, 0], sizes = [32, 128], strides = [1, 1]} : vector<96x128xf32> to vector<32x128xf32>
    %c5_82 = arith.constant 5 : index
    %c0_83 = arith.constant 0 : index
    %c0_84 = arith.constant 0 : index
    %116 = vector.load %arg9[%c5_82, %c0_83, %c0_84] : memref<8x32x128xf32, #tpu.memory_space<vmem>>, vector<1x32x128xf32>
    %117 = vector.shape_cast %116 : vector<1x32x128xf32> to vector<32x128xf32>
    %118 = vector.shape_cast %115 : vector<32x128xf32> to vector<1x32x128xf32>
    tpu.vector_store %arg9[%c5_82, %c0_83, %c0_84], %118 {strides = array<i32>} : memref<8x32x128xf32, #tpu.memory_space<vmem>>, vector<1x32x128xf32>,
    %119 = vector.extract_strided_slice %110 {offsets = [64, 0], sizes = [32, 128], strides = [1, 1]} : vector<96x128xf32> to vector<32x128xf32>
    %c5_85 = arith.constant 5 : index
    %c0_86 = arith.constant 0 : index
    %c0_87 = arith.constant 0 : index
    %120 = vector.load %arg10[%c5_85, %c0_86, %c0_87] : memref<8x32x128xf32, #tpu.memory_space<vmem>>, vector<1x32x128xf32>
    %121 = vector.shape_cast %120 : vector<1x32x128xf32> to vector<32x128xf32>
    %122 = vector.shape_cast %119 : vector<32x128xf32> to vector<1x32x128xf32>
    tpu.vector_store %arg10[%c5_85, %c0_86, %c0_87], %122 {strides = array<i32>} : memref<8x32x128xf32, #tpu.memory_space<vmem>>, vector<1x32x128xf32>,
    %c0_88 = arith.constant 0 : index
    %c6 = arith.constant 6 : index
    %c0_89 = arith.constant 0 : index
    %c0_90 = arith.constant 0 : index
    %123 = vector.load %arg2[%c0_88, %c6, %c0_89, %c0_90] : memref<1x8x32x128xf32, #tpu.memory_space<vmem>>, vector<1x1x32x128xf32>
    %124 = vector.shape_cast %123 : vector<1x1x32x128xf32> to vector<32x128xf32>
    %cst_91 = arith.constant dense<0.000000e+00> : vector<96x128xf32>
    %125 = tpu.matmul %2, %124, %cst_91 {dimension_numbers = #tpu.dot_dimension_numbers<[1], [0], [0], [1], [0, 0, 1, 1], [], []>} : vector<96x32xf32>, vector<32x128xf32>, vector<96x128xf32> -> vector<96x128xf32>
    %126 = vector.extract_strided_slice %1 {offsets = [0, 6], sizes = [96, 1], strides = [1, 1]} : vector<96x8xf32> to vector<96x1xf32>
    %127 = vector.broadcast %126 : vector<96x1xf32> to vector<96x128xf32>
    %128 = arith.addf %125, %127 : vector<96x128xf32>
    %cst_92 = arith.constant 0.000000e+00 : f32
    %129 = vector.broadcast %cst_92 : f32 to vector<96x128xf32>
    %130 = arith.maximumf %128, %129 : vector<96x128xf32>
    %131 = vector.extract_strided_slice %130 {offsets = [0, 0], sizes = [32, 128], strides = [1, 1]} : vector<96x128xf32> to vector<32x128xf32>
    %c6_93 = arith.constant 6 : index
    %c0_94 = arith.constant 0 : index
    %c0_95 = arith.constant 0 : index
    %132 = vector.load %arg8[%c6_93, %c0_94, %c0_95] : memref<8x32x128xf32, #tpu.memory_space<vmem>>, vector<1x32x128xf32>
    %133 = vector.shape_cast %132 : vector<1x32x128xf32> to vector<32x128xf32>
    %134 = vector.shape_cast %131 : vector<32x128xf32> to vector<1x32x128xf32>
    tpu.vector_store %arg8[%c6_93, %c0_94, %c0_95], %134 {strides = array<i32>} : memref<8x32x128xf32, #tpu.memory_space<vmem>>, vector<1x32x128xf32>,
    %135 = vector.extract_strided_slice %130 {offsets = [32, 0], sizes = [32, 128], strides = [1, 1]} : vector<96x128xf32> to vector<32x128xf32>
    %c6_96 = arith.constant 6 : index
    %c0_97 = arith.constant 0 : index
    %c0_98 = arith.constant 0 : index
    %136 = vector.load %arg9[%c6_96, %c0_97, %c0_98] : memref<8x32x128xf32, #tpu.memory_space<vmem>>, vector<1x32x128xf32>
    %137 = vector.shape_cast %136 : vector<1x32x128xf32> to vector<32x128xf32>
    %138 = vector.shape_cast %135 : vector<32x128xf32> to vector<1x32x128xf32>
    tpu.vector_store %arg9[%c6_96, %c0_97, %c0_98], %138 {strides = array<i32>} : memref<8x32x128xf32, #tpu.memory_space<vmem>>, vector<1x32x128xf32>,
    %139 = vector.extract_strided_slice %130 {offsets = [64, 0], sizes = [32, 128], strides = [1, 1]} : vector<96x128xf32> to vector<32x128xf32>
    %c6_99 = arith.constant 6 : index
    %c0_100 = arith.constant 0 : index
    %c0_101 = arith.constant 0 : index
    %140 = vector.load %arg10[%c6_99, %c0_100, %c0_101] : memref<8x32x128xf32, #tpu.memory_space<vmem>>, vector<1x32x128xf32>
    %141 = vector.shape_cast %140 : vector<1x32x128xf32> to vector<32x128xf32>
    %142 = vector.shape_cast %139 : vector<32x128xf32> to vector<1x32x128xf32>
    tpu.vector_store %arg10[%c6_99, %c0_100, %c0_101], %142 {strides = array<i32>} : memref<8x32x128xf32, #tpu.memory_space<vmem>>, vector<1x32x128xf32>,
    %c0_102 = arith.constant 0 : index
    %c7 = arith.constant 7 : index
    %c0_103 = arith.constant 0 : index
    %c0_104 = arith.constant 0 : index
    %143 = vector.load %arg2[%c0_102, %c7, %c0_103, %c0_104] : memref<1x8x32x128xf32, #tpu.memory_space<vmem>>, vector<1x1x32x128xf32>
    %144 = vector.shape_cast %143 : vector<1x1x32x128xf32> to vector<32x128xf32>
    %cst_105 = arith.constant dense<0.000000e+00> : vector<96x128xf32>
    %145 = tpu.matmul %2, %144, %cst_105 {dimension_numbers = #tpu.dot_dimension_numbers<[1], [0], [0], [1], [0, 0, 1, 1], [], []>} : vector<96x32xf32>, vector<32x128xf32>, vector<96x128xf32> -> vector<96x128xf32>
    %146 = vector.extract_strided_slice %1 {offsets = [0, 7], sizes = [96, 1], strides = [1, 1]} : vector<96x8xf32> to vector<96x1xf32>
    %147 = vector.broadcast %146 : vector<96x1xf32> to vector<96x128xf32>
    %148 = arith.addf %145, %147 : vector<96x128xf32>
    %cst_106 = arith.constant 0.000000e+00 : f32
    %149 = vector.broadcast %cst_106 : f32 to vector<96x128xf32>
    %150 = arith.maximumf %148, %149 : vector<96x128xf32>
    %151 = vector.extract_strided_slice %150 {offsets = [0, 0], sizes = [32, 128], strides = [1, 1]} : vector<96x128xf32> to vector<32x128xf32>
    %c7_107 = arith.constant 7 : index
    %c0_108 = arith.constant 0 : index
    %c0_109 = arith.constant 0 : index
    %152 = vector.load %arg8[%c7_107, %c0_108, %c0_109] : memref<8x32x128xf32, #tpu.memory_space<vmem>>, vector<1x32x128xf32>
    %153 = vector.shape_cast %152 : vector<1x32x128xf32> to vector<32x128xf32>
    %154 = vector.shape_cast %151 : vector<32x128xf32> to vector<1x32x128xf32>
    tpu.vector_store %arg8[%c7_107, %c0_108, %c0_109], %154 {strides = array<i32>} : memref<8x32x128xf32, #tpu.memory_space<vmem>>, vector<1x32x128xf32>,
    %155 = vector.extract_strided_slice %150 {offsets = [32, 0], sizes = [32, 128], strides = [1, 1]} : vector<96x128xf32> to vector<32x128xf32>
    %c7_110 = arith.constant 7 : index
    %c0_111 = arith.constant 0 : index
    %c0_112 = arith.constant 0 : index
    %156 = vector.load %arg9[%c7_110, %c0_111, %c0_112] : memref<8x32x128xf32, #tpu.memory_space<vmem>>, vector<1x32x128xf32>
    %157 = vector.shape_cast %156 : vector<1x32x128xf32> to vector<32x128xf32>
    %158 = vector.shape_cast %155 : vector<32x128xf32> to vector<1x32x128xf32>
    tpu.vector_store %arg9[%c7_110, %c0_111, %c0_112], %158 {strides = array<i32>} : memref<8x32x128xf32, #tpu.memory_space<vmem>>, vector<1x32x128xf32>,
    %159 = vector.extract_strided_slice %150 {offsets = [64, 0], sizes = [32, 128], strides = [1, 1]} : vector<96x128xf32> to vector<32x128xf32>
    %c7_113 = arith.constant 7 : index
    %c0_114 = arith.constant 0 : index
    %c0_115 = arith.constant 0 : index
    %160 = vector.load %arg10[%c7_113, %c0_114, %c0_115] : memref<8x32x128xf32, #tpu.memory_space<vmem>>, vector<1x32x128xf32>
    %161 = vector.shape_cast %160 : vector<1x32x128xf32> to vector<32x128xf32>
    %162 = vector.shape_cast %159 : vector<32x128xf32> to vector<1x32x128xf32>
    tpu.vector_store %arg10[%c7_113, %c0_114, %c0_115], %162 {strides = array<i32>} : memref<8x32x128xf32, #tpu.memory_space<vmem>>, vector<1x32x128xf32>,
    %c0_116 = arith.constant 0 : index
    %c0_117 = arith.constant 0 : index
    %c0_118 = arith.constant 0 : index
    %163 = vector.load %arg8[%c0_116, %c0_117, %c0_118] : memref<8x32x128xf32, #tpu.memory_space<vmem>>, vector<8x32x128xf32>
    %cst_119 = arith.constant 0.000000e+00 : f32
    %164 = vector.broadcast %cst_119 : f32 to vector<8x32x128xf32>
    %c0_120 = arith.constant 0 : index
    %c0_121 = arith.constant 0 : index
    %c0_122 = arith.constant 0 : index
    %165 = vector.load %arg9[%c0_120, %c0_121, %c0_122] : memref<8x32x128xf32, #tpu.memory_space<vmem>>, vector<1x32x128xf32>
    %166 = vector.shape_cast %165 : vector<1x32x128xf32> to vector<32x128xf32>
    %c0_123 = arith.constant 0 : index
    %c0_124 = arith.constant 0 : index
    %c0_125 = arith.constant 0 : index
    %167 = vector.load %arg10[%c0_123, %c0_124, %c0_125] : memref<8x32x128xf32, #tpu.memory_space<vmem>>, vector<1x32x128xf32>
    %168 = vector.shape_cast %167 : vector<1x32x128xf32> to vector<32x128xf32>
    %169 = vector.extract_strided_slice %163 {offsets = [0, 0, 0], sizes = [8, 8, 128], strides = [1, 1, 1]} : vector<8x32x128xf32> to vector<8x8x128xf32>
    %170 = vector.extract_strided_slice %166 {offsets = [0, 0], sizes = [8, 128], strides = [1, 1]} : vector<32x128xf32> to vector<8x128xf32>
    %171 = vector.shape_cast %170 : vector<8x128xf32> to vector<1x8x128xf32>
    %172 = vector.broadcast %171 : vector<1x8x128xf32> to vector<8x8x128xf32>
    %173 = arith.mulf %169, %172 : vector<8x8x128xf32>
    %174 = vector.extract_strided_slice %163 {offsets = [0, 8, 0], sizes = [8, 8, 128], strides = [1, 1, 1]} : vector<8x32x128xf32> to vector<8x8x128xf32>
    %175 = vector.extract_strided_slice %166 {offsets = [8, 0], sizes = [8, 128], strides = [1, 1]} : vector<32x128xf32> to vector<8x128xf32>
    %176 = vector.shape_cast %175 : vector<8x128xf32> to vector<1x8x128xf32>
    %177 = vector.broadcast %176 : vector<1x8x128xf32> to vector<8x8x128xf32>
    %178 = arith.mulf %174, %177 : vector<8x8x128xf32>
    %179 = arith.addf %173, %178 : vector<8x8x128xf32>
    %180 = vector.extract_strided_slice %163 {offsets = [0, 16, 0], sizes = [8, 8, 128], strides = [1, 1, 1]} : vector<8x32x128xf32> to vector<8x8x128xf32>
    %181 = vector.extract_strided_slice %166 {offsets = [16, 0], sizes = [8, 128], strides = [1, 1]} : vector<32x128xf32> to vector<8x128xf32>
    %182 = vector.shape_cast %181 : vector<8x128xf32> to vector<1x8x128xf32>
    %183 = vector.broadcast %182 : vector<1x8x128xf32> to vector<8x8x128xf32>
    %184 = arith.mulf %180, %183 : vector<8x8x128xf32>
    %185 = arith.addf %179, %184 : vector<8x8x128xf32>
    %186 = vector.extract_strided_slice %163 {offsets = [0, 24, 0], sizes = [8, 8, 128], strides = [1, 1, 1]} : vector<8x32x128xf32> to vector<8x8x128xf32>
    %187 = vector.extract_strided_slice %166 {offsets = [24, 0], sizes = [8, 128], strides = [1, 1]} : vector<32x128xf32> to vector<8x128xf32>
    %188 = vector.shape_cast %187 : vector<8x128xf32> to vector<1x8x128xf32>
    %189 = vector.broadcast %188 : vector<1x8x128xf32> to vector<8x8x128xf32>
    %190 = arith.mulf %186, %189 : vector<8x8x128xf32>
    %191 = arith.addf %185, %190 : vector<8x8x128xf32>
    %cst_126 = arith.constant dense<0xFF800000> : vector<8x128xf32>
    %192 = vector.multi_reduction <maximumf>, %191, %cst_126 [0] : vector<8x8x128xf32> to vector<8x128xf32>
    %193 = vector.shape_cast %192 : vector<8x128xf32> to vector<1x8x128xf32>
    %194 = vector.broadcast %193 : vector<1x8x128xf32> to vector<8x8x128xf32>
    %195 = arith.subf %191, %194 : vector<8x8x128xf32>
    %196 = math.exp %195 : vector<8x8x128xf32>
    %cst_127 = arith.constant dense<0.000000e+00> : vector<8x128xf32>
    %197 = vector.multi_reduction <add>, %196, %cst_127 [0] : vector<8x8x128xf32> to vector<8x128xf32>
    %198 = vector.shape_cast %197 : vector<8x128xf32> to vector<1x8x128xf32>
    %cst_128 = arith.constant 1.000000e+00 : f32
    %199 = vector.broadcast %cst_128 : f32 to vector<1x8x128xf32>
    %200 = arith.divf %199, %198 : vector<1x8x128xf32>
    %201 = vector.broadcast %200 : vector<1x8x128xf32> to vector<8x8x128xf32>
    %202 = arith.mulf %196, %201 : vector<8x8x128xf32>
    %203 = tpu.concatenate %202, %202, %202, %202 in 1 : vector<8x8x128xf32>, vector<8x8x128xf32>, vector<8x8x128xf32>, vector<8x8x128xf32> -> vector<8x32x128xf32>
    %204 = vector.shape_cast %168 : vector<32x128xf32> to vector<1x32x128xf32>
    %205 = vector.broadcast %204 : vector<1x32x128xf32> to vector<8x32x128xf32>
    %206 = arith.mulf %203, %205 : vector<8x32x128xf32>
    %207 = arith.addf %164, %206 : vector<8x32x128xf32>
    %c1_129 = arith.constant 1 : index
    %c0_130 = arith.constant 0 : index
    %c0_131 = arith.constant 0 : index
    %208 = vector.load %arg9[%c1_129, %c0_130, %c0_131] : memref<8x32x128xf32, #tpu.memory_space<vmem>>, vector<1x32x128xf32>
    %209 = vector.shape_cast %208 : vector<1x32x128xf32> to vector<32x128xf32>
    %c1_132 = arith.constant 1 : index
    %c0_133 = arith.constant 0 : index
    %c0_134 = arith.constant 0 : index
    %210 = vector.load %arg10[%c1_132, %c0_133, %c0_134] : memref<8x32x128xf32, #tpu.memory_space<vmem>>, vector<1x32x128xf32>
    %211 = vector.shape_cast %210 : vector<1x32x128xf32> to vector<32x128xf32>
    %212 = vector.extract_strided_slice %163 {offsets = [0, 0, 0], sizes = [8, 8, 128], strides = [1, 1, 1]} : vector<8x32x128xf32> to vector<8x8x128xf32>
    %213 = vector.extract_strided_slice %209 {offsets = [0, 0], sizes = [8, 128], strides = [1, 1]} : vector<32x128xf32> to vector<8x128xf32>
    %214 = vector.shape_cast %213 : vector<8x128xf32> to vector<1x8x128xf32>
    %215 = vector.broadcast %214 : vector<1x8x128xf32> to vector<8x8x128xf32>
    %216 = arith.mulf %212, %215 : vector<8x8x128xf32>
    %217 = vector.extract_strided_slice %163 {offsets = [0, 8, 0], sizes = [8, 8, 128], strides = [1, 1, 1]} : vector<8x32x128xf32> to vector<8x8x128xf32>
    %218 = vector.extract_strided_slice %209 {offsets = [8, 0], sizes = [8, 128], strides = [1, 1]} : vector<32x128xf32> to vector<8x128xf32>
    %219 = vector.shape_cast %218 : vector<8x128xf32> to vector<1x8x128xf32>
    %220 = vector.broadcast %219 : vector<1x8x128xf32> to vector<8x8x128xf32>
    %221 = arith.mulf %217, %220 : vector<8x8x128xf32>
    %222 = arith.addf %216, %221 : vector<8x8x128xf32>
    %223 = vector.extract_strided_slice %163 {offsets = [0, 16, 0], sizes = [8, 8, 128], strides = [1, 1, 1]} : vector<8x32x128xf32> to vector<8x8x128xf32>
    %224 = vector.extract_strided_slice %209 {offsets = [16, 0], sizes = [8, 128], strides = [1, 1]} : vector<32x128xf32> to vector<8x128xf32>
    %225 = vector.shape_cast %224 : vector<8x128xf32> to vector<1x8x128xf32>
    %226 = vector.broadcast %225 : vector<1x8x128xf32> to vector<8x8x128xf32>
    %227 = arith.mulf %223, %226 : vector<8x8x128xf32>
    %228 = arith.addf %222, %227 : vector<8x8x128xf32>
    %229 = vector.extract_strided_slice %163 {offsets = [0, 24, 0], sizes = [8, 8, 128], strides = [1, 1, 1]} : vector<8x32x128xf32> to vector<8x8x128xf32>
    %230 = vector.extract_strided_slice %209 {offsets = [24, 0], sizes = [8, 128], strides = [1, 1]} : vector<32x128xf32> to vector<8x128xf32>
    %231 = vector.shape_cast %230 : vector<8x128xf32> to vector<1x8x128xf32>
    %232 = vector.broadcast %231 : vector<1x8x128xf32> to vector<8x8x128xf32>
    %233 = arith.mulf %229, %232 : vector<8x8x128xf32>
    %234 = arith.addf %228, %233 : vector<8x8x128xf32>
    %cst_135 = arith.constant dense<0xFF800000> : vector<8x128xf32>
    %235 = vector.multi_reduction <maximumf>, %234, %cst_135 [0] : vector<8x8x128xf32> to vector<8x128xf32>
    %236 = vector.shape_cast %235 : vector<8x128xf32> to vector<1x8x128xf32>
    %237 = vector.broadcast %236 : vector<1x8x128xf32> to vector<8x8x128xf32>
    %238 = arith.subf %234, %237 : vector<8x8x128xf32>
    %239 = math.exp %238 : vector<8x8x128xf32>
    %cst_136 = arith.constant dense<0.000000e+00> : vector<8x128xf32>
    %240 = vector.multi_reduction <add>, %239, %cst_136 [0] : vector<8x8x128xf32> to vector<8x128xf32>
    %241 = vector.shape_cast %240 : vector<8x128xf32> to vector<1x8x128xf32>
    %cst_137 = arith.constant 1.000000e+00 : f32
    %242 = vector.broadcast %cst_137 : f32 to vector<1x8x128xf32>
    %243 = arith.divf %242, %241 : vector<1x8x128xf32>
    %244 = vector.broadcast %243 : vector<1x8x128xf32> to vector<8x8x128xf32>
    %245 = arith.mulf %239, %244 : vector<8x8x128xf32>
    %246 = tpu.concatenate %245, %245, %245, %245 in 1 : vector<8x8x128xf32>, vector<8x8x128xf32>, vector<8x8x128xf32>, vector<8x8x128xf32> -> vector<8x32x128xf32>
    %247 = vector.shape_cast %211 : vector<32x128xf32> to vector<1x32x128xf32>
    %248 = vector.broadcast %247 : vector<1x32x128xf32> to vector<8x32x128xf32>
    %249 = arith.mulf %246, %248 : vector<8x32x128xf32>
    %250 = arith.addf %207, %249 : vector<8x32x128xf32>
    %c2_138 = arith.constant 2 : index
    %c0_139 = arith.constant 0 : index
    %c0_140 = arith.constant 0 : index
    %251 = vector.load %arg9[%c2_138, %c0_139, %c0_140] : memref<8x32x128xf32, #tpu.memory_space<vmem>>, vector<1x32x128xf32>
    %252 = vector.shape_cast %251 : vector<1x32x128xf32> to vector<32x128xf32>
    %c2_141 = arith.constant 2 : index
    %c0_142 = arith.constant 0 : index
    %c0_143 = arith.constant 0 : index
    %253 = vector.load %arg10[%c2_141, %c0_142, %c0_143] : memref<8x32x128xf32, #tpu.memory_space<vmem>>, vector<1x32x128xf32>
    %254 = vector.shape_cast %253 : vector<1x32x128xf32> to vector<32x128xf32>
    %255 = vector.extract_strided_slice %163 {offsets = [0, 0, 0], sizes = [8, 8, 128], strides = [1, 1, 1]} : vector<8x32x128xf32> to vector<8x8x128xf32>
    %256 = vector.extract_strided_slice %252 {offsets = [0, 0], sizes = [8, 128], strides = [1, 1]} : vector<32x128xf32> to vector<8x128xf32>
    %257 = vector.shape_cast %256 : vector<8x128xf32> to vector<1x8x128xf32>
    %258 = vector.broadcast %257 : vector<1x8x128xf32> to vector<8x8x128xf32>
    %259 = arith.mulf %255, %258 : vector<8x8x128xf32>
    %260 = vector.extract_strided_slice %163 {offsets = [0, 8, 0], sizes = [8, 8, 128], strides = [1, 1, 1]} : vector<8x32x128xf32> to vector<8x8x128xf32>
    %261 = vector.extract_strided_slice %252 {offsets = [8, 0], sizes = [8, 128], strides = [1, 1]} : vector<32x128xf32> to vector<8x128xf32>
    %262 = vector.shape_cast %261 : vector<8x128xf32> to vector<1x8x128xf32>
    %263 = vector.broadcast %262 : vector<1x8x128xf32> to vector<8x8x128xf32>
    %264 = arith.mulf %260, %263 : vector<8x8x128xf32>
    %265 = arith.addf %259, %264 : vector<8x8x128xf32>
    %266 = vector.extract_strided_slice %163 {offsets = [0, 16, 0], sizes = [8, 8, 128], strides = [1, 1, 1]} : vector<8x32x128xf32> to vector<8x8x128xf32>
    %267 = vector.extract_strided_slice %252 {offsets = [16, 0], sizes = [8, 128], strides = [1, 1]} : vector<32x128xf32> to vector<8x128xf32>
    %268 = vector.shape_cast %267 : vector<8x128xf32> to vector<1x8x128xf32>
    %269 = vector.broadcast %268 : vector<1x8x128xf32> to vector<8x8x128xf32>
    %270 = arith.mulf %266, %269 : vector<8x8x128xf32>
    %271 = arith.addf %265, %270 : vector<8x8x128xf32>
    %272 = vector.extract_strided_slice %163 {offsets = [0, 24, 0], sizes = [8, 8, 128], strides = [1, 1, 1]} : vector<8x32x128xf32> to vector<8x8x128xf32>
    %273 = vector.extract_strided_slice %252 {offsets = [24, 0], sizes = [8, 128], strides = [1, 1]} : vector<32x128xf32> to vector<8x128xf32>
    %274 = vector.shape_cast %273 : vector<8x128xf32> to vector<1x8x128xf32>
    %275 = vector.broadcast %274 : vector<1x8x128xf32> to vector<8x8x128xf32>
    %276 = arith.mulf %272, %275 : vector<8x8x128xf32>
    %277 = arith.addf %271, %276 : vector<8x8x128xf32>
    %cst_144 = arith.constant dense<0xFF800000> : vector<8x128xf32>
    %278 = vector.multi_reduction <maximumf>, %277, %cst_144 [0] : vector<8x8x128xf32> to vector<8x128xf32>
    %279 = vector.shape_cast %278 : vector<8x128xf32> to vector<1x8x128xf32>
    %280 = vector.broadcast %279 : vector<1x8x128xf32> to vector<8x8x128xf32>
    %281 = arith.subf %277, %280 : vector<8x8x128xf32>
    %282 = math.exp %281 : vector<8x8x128xf32>
    %cst_145 = arith.constant dense<0.000000e+00> : vector<8x128xf32>
    %283 = vector.multi_reduction <add>, %282, %cst_145 [0] : vector<8x8x128xf32> to vector<8x128xf32>
    %284 = vector.shape_cast %283 : vector<8x128xf32> to vector<1x8x128xf32>
    %cst_146 = arith.constant 1.000000e+00 : f32
    %285 = vector.broadcast %cst_146 : f32 to vector<1x8x128xf32>
    %286 = arith.divf %285, %284 : vector<1x8x128xf32>
    %287 = vector.broadcast %286 : vector<1x8x128xf32> to vector<8x8x128xf32>
    %288 = arith.mulf %282, %287 : vector<8x8x128xf32>
    %289 = tpu.concatenate %288, %288, %288, %288 in 1 : vector<8x8x128xf32>, vector<8x8x128xf32>, vector<8x8x128xf32>, vector<8x8x128xf32> -> vector<8x32x128xf32>
    %290 = vector.shape_cast %254 : vector<32x128xf32> to vector<1x32x128xf32>
    %291 = vector.broadcast %290 : vector<1x32x128xf32> to vector<8x32x128xf32>
    %292 = arith.mulf %289, %291 : vector<8x32x128xf32>
    %293 = arith.addf %250, %292 : vector<8x32x128xf32>
    %c3_147 = arith.constant 3 : index
    %c0_148 = arith.constant 0 : index
    %c0_149 = arith.constant 0 : index
    %294 = vector.load %arg9[%c3_147, %c0_148, %c0_149] : memref<8x32x128xf32, #tpu.memory_space<vmem>>, vector<1x32x128xf32>
    %295 = vector.shape_cast %294 : vector<1x32x128xf32> to vector<32x128xf32>
    %c3_150 = arith.constant 3 : index
    %c0_151 = arith.constant 0 : index
    %c0_152 = arith.constant 0 : index
    %296 = vector.load %arg10[%c3_150, %c0_151, %c0_152] : memref<8x32x128xf32, #tpu.memory_space<vmem>>, vector<1x32x128xf32>
    %297 = vector.shape_cast %296 : vector<1x32x128xf32> to vector<32x128xf32>
    %298 = vector.extract_strided_slice %163 {offsets = [0, 0, 0], sizes = [8, 8, 128], strides = [1, 1, 1]} : vector<8x32x128xf32> to vector<8x8x128xf32>
    %299 = vector.extract_strided_slice %295 {offsets = [0, 0], sizes = [8, 128], strides = [1, 1]} : vector<32x128xf32> to vector<8x128xf32>
    %300 = vector.shape_cast %299 : vector<8x128xf32> to vector<1x8x128xf32>
    %301 = vector.broadcast %300 : vector<1x8x128xf32> to vector<8x8x128xf32>
    %302 = arith.mulf %298, %301 : vector<8x8x128xf32>
    %303 = vector.extract_strided_slice %163 {offsets = [0, 8, 0], sizes = [8, 8, 128], strides = [1, 1, 1]} : vector<8x32x128xf32> to vector<8x8x128xf32>
    %304 = vector.extract_strided_slice %295 {offsets = [8, 0], sizes = [8, 128], strides = [1, 1]} : vector<32x128xf32> to vector<8x128xf32>
    %305 = vector.shape_cast %304 : vector<8x128xf32> to vector<1x8x128xf32>
    %306 = vector.broadcast %305 : vector<1x8x128xf32> to vector<8x8x128xf32>
    %307 = arith.mulf %303, %306 : vector<8x8x128xf32>
    %308 = arith.addf %302, %307 : vector<8x8x128xf32>
    %309 = vector.extract_strided_slice %163 {offsets = [0, 16, 0], sizes = [8, 8, 128], strides = [1, 1, 1]} : vector<8x32x128xf32> to vector<8x8x128xf32>
    %310 = vector.extract_strided_slice %295 {offsets = [16, 0], sizes = [8, 128], strides = [1, 1]} : vector<32x128xf32> to vector<8x128xf32>
    %311 = vector.shape_cast %310 : vector<8x128xf32> to vector<1x8x128xf32>
    %312 = vector.broadcast %311 : vector<1x8x128xf32> to vector<8x8x128xf32>
    %313 = arith.mulf %309, %312 : vector<8x8x128xf32>
    %314 = arith.addf %308, %313 : vector<8x8x128xf32>
    %315 = vector.extract_strided_slice %163 {offsets = [0, 24, 0], sizes = [8, 8, 128], strides = [1, 1, 1]} : vector<8x32x128xf32> to vector<8x8x128xf32>
    %316 = vector.extract_strided_slice %295 {offsets = [24, 0], sizes = [8, 128], strides = [1, 1]} : vector<32x128xf32> to vector<8x128xf32>
    %317 = vector.shape_cast %316 : vector<8x128xf32> to vector<1x8x128xf32>
    %318 = vector.broadcast %317 : vector<1x8x128xf32> to vector<8x8x128xf32>
    %319 = arith.mulf %315, %318 : vector<8x8x128xf32>
    %320 = arith.addf %314, %319 : vector<8x8x128xf32>
    %cst_153 = arith.constant dense<0xFF800000> : vector<8x128xf32>
    %321 = vector.multi_reduction <maximumf>, %320, %cst_153 [0] : vector<8x8x128xf32> to vector<8x128xf32>
    %322 = vector.shape_cast %321 : vector<8x128xf32> to vector<1x8x128xf32>
    %323 = vector.broadcast %322 : vector<1x8x128xf32> to vector<8x8x128xf32>
    %324 = arith.subf %320, %323 : vector<8x8x128xf32>
    %325 = math.exp %324 : vector<8x8x128xf32>
    %cst_154 = arith.constant dense<0.000000e+00> : vector<8x128xf32>
    %326 = vector.multi_reduction <add>, %325, %cst_154 [0] : vector<8x8x128xf32> to vector<8x128xf32>
    %327 = vector.shape_cast %326 : vector<8x128xf32> to vector<1x8x128xf32>
    %cst_155 = arith.constant 1.000000e+00 : f32
    %328 = vector.broadcast %cst_155 : f32 to vector<1x8x128xf32>
    %329 = arith.divf %328, %327 : vector<1x8x128xf32>
    %330 = vector.broadcast %329 : vector<1x8x128xf32> to vector<8x8x128xf32>
    %331 = arith.mulf %325, %330 : vector<8x8x128xf32>
    %332 = tpu.concatenate %331, %331, %331, %331 in 1 : vector<8x8x128xf32>, vector<8x8x128xf32>, vector<8x8x128xf32>, vector<8x8x128xf32> -> vector<8x32x128xf32>
    %333 = vector.shape_cast %297 : vector<32x128xf32> to vector<1x32x128xf32>
    %334 = vector.broadcast %333 : vector<1x32x128xf32> to vector<8x32x128xf32>
    %335 = arith.mulf %332, %334 : vector<8x32x128xf32>
    %336 = arith.addf %293, %335 : vector<8x32x128xf32>
    %c4_156 = arith.constant 4 : index
    %c0_157 = arith.constant 0 : index
    %c0_158 = arith.constant 0 : index
    %337 = vector.load %arg9[%c4_156, %c0_157, %c0_158] : memref<8x32x128xf32, #tpu.memory_space<vmem>>, vector<1x32x128xf32>
    %338 = vector.shape_cast %337 : vector<1x32x128xf32> to vector<32x128xf32>
    %c4_159 = arith.constant 4 : index
    %c0_160 = arith.constant 0 : index
    %c0_161 = arith.constant 0 : index
    %339 = vector.load %arg10[%c4_159, %c0_160, %c0_161] : memref<8x32x128xf32, #tpu.memory_space<vmem>>, vector<1x32x128xf32>
    %340 = vector.shape_cast %339 : vector<1x32x128xf32> to vector<32x128xf32>
    %341 = vector.extract_strided_slice %163 {offsets = [0, 0, 0], sizes = [8, 8, 128], strides = [1, 1, 1]} : vector<8x32x128xf32> to vector<8x8x128xf32>
    %342 = vector.extract_strided_slice %338 {offsets = [0, 0], sizes = [8, 128], strides = [1, 1]} : vector<32x128xf32> to vector<8x128xf32>
    %343 = vector.shape_cast %342 : vector<8x128xf32> to vector<1x8x128xf32>
    %344 = vector.broadcast %343 : vector<1x8x128xf32> to vector<8x8x128xf32>
    %345 = arith.mulf %341, %344 : vector<8x8x128xf32>
    %346 = vector.extract_strided_slice %163 {offsets = [0, 8, 0], sizes = [8, 8, 128], strides = [1, 1, 1]} : vector<8x32x128xf32> to vector<8x8x128xf32>
    %347 = vector.extract_strided_slice %338 {offsets = [8, 0], sizes = [8, 128], strides = [1, 1]} : vector<32x128xf32> to vector<8x128xf32>
    %348 = vector.shape_cast %347 : vector<8x128xf32> to vector<1x8x128xf32>
    %349 = vector.broadcast %348 : vector<1x8x128xf32> to vector<8x8x128xf32>
    %350 = arith.mulf %346, %349 : vector<8x8x128xf32>
    %351 = arith.addf %345, %350 : vector<8x8x128xf32>
    %352 = vector.extract_strided_slice %163 {offsets = [0, 16, 0], sizes = [8, 8, 128], strides = [1, 1, 1]} : vector<8x32x128xf32> to vector<8x8x128xf32>
    %353 = vector.extract_strided_slice %338 {offsets = [16, 0], sizes = [8, 128], strides = [1, 1]} : vector<32x128xf32> to vector<8x128xf32>
    %354 = vector.shape_cast %353 : vector<8x128xf32> to vector<1x8x128xf32>
    %355 = vector.broadcast %354 : vector<1x8x128xf32> to vector<8x8x128xf32>
    %356 = arith.mulf %352, %355 : vector<8x8x128xf32>
    %357 = arith.addf %351, %356 : vector<8x8x128xf32>
    %358 = vector.extract_strided_slice %163 {offsets = [0, 24, 0], sizes = [8, 8, 128], strides = [1, 1, 1]} : vector<8x32x128xf32> to vector<8x8x128xf32>
    %359 = vector.extract_strided_slice %338 {offsets = [24, 0], sizes = [8, 128], strides = [1, 1]} : vector<32x128xf32> to vector<8x128xf32>
    %360 = vector.shape_cast %359 : vector<8x128xf32> to vector<1x8x128xf32>
    %361 = vector.broadcast %360 : vector<1x8x128xf32> to vector<8x8x128xf32>
    %362 = arith.mulf %358, %361 : vector<8x8x128xf32>
    %363 = arith.addf %357, %362 : vector<8x8x128xf32>
    %cst_162 = arith.constant dense<0xFF800000> : vector<8x128xf32>
    %364 = vector.multi_reduction <maximumf>, %363, %cst_162 [0] : vector<8x8x128xf32> to vector<8x128xf32>
    %365 = vector.shape_cast %364 : vector<8x128xf32> to vector<1x8x128xf32>
    %366 = vector.broadcast %365 : vector<1x8x128xf32> to vector<8x8x128xf32>
    %367 = arith.subf %363, %366 : vector<8x8x128xf32>
    %368 = math.exp %367 : vector<8x8x128xf32>
    %cst_163 = arith.constant dense<0.000000e+00> : vector<8x128xf32>
    %369 = vector.multi_reduction <add>, %368, %cst_163 [0] : vector<8x8x128xf32> to vector<8x128xf32>
    %370 = vector.shape_cast %369 : vector<8x128xf32> to vector<1x8x128xf32>
    %cst_164 = arith.constant 1.000000e+00 : f32
    %371 = vector.broadcast %cst_164 : f32 to vector<1x8x128xf32>
    %372 = arith.divf %371, %370 : vector<1x8x128xf32>
    %373 = vector.broadcast %372 : vector<1x8x128xf32> to vector<8x8x128xf32>
    %374 = arith.mulf %368, %373 : vector<8x8x128xf32>
    %375 = tpu.concatenate %374, %374, %374, %374 in 1 : vector<8x8x128xf32>, vector<8x8x128xf32>, vector<8x8x128xf32>, vector<8x8x128xf32> -> vector<8x32x128xf32>
    %376 = vector.shape_cast %340 : vector<32x128xf32> to vector<1x32x128xf32>
    %377 = vector.broadcast %376 : vector<1x32x128xf32> to vector<8x32x128xf32>
    %378 = arith.mulf %375, %377 : vector<8x32x128xf32>
    %379 = arith.addf %336, %378 : vector<8x32x128xf32>
    %c5_165 = arith.constant 5 : index
    %c0_166 = arith.constant 0 : index
    %c0_167 = arith.constant 0 : index
    %380 = vector.load %arg9[%c5_165, %c0_166, %c0_167] : memref<8x32x128xf32, #tpu.memory_space<vmem>>, vector<1x32x128xf32>
    %381 = vector.shape_cast %380 : vector<1x32x128xf32> to vector<32x128xf32>
    %c5_168 = arith.constant 5 : index
    %c0_169 = arith.constant 0 : index
    %c0_170 = arith.constant 0 : index
    %382 = vector.load %arg10[%c5_168, %c0_169, %c0_170] : memref<8x32x128xf32, #tpu.memory_space<vmem>>, vector<1x32x128xf32>
    %383 = vector.shape_cast %382 : vector<1x32x128xf32> to vector<32x128xf32>
    %384 = vector.extract_strided_slice %163 {offsets = [0, 0, 0], sizes = [8, 8, 128], strides = [1, 1, 1]} : vector<8x32x128xf32> to vector<8x8x128xf32>
    %385 = vector.extract_strided_slice %381 {offsets = [0, 0], sizes = [8, 128], strides = [1, 1]} : vector<32x128xf32> to vector<8x128xf32>
    %386 = vector.shape_cast %385 : vector<8x128xf32> to vector<1x8x128xf32>
    %387 = vector.broadcast %386 : vector<1x8x128xf32> to vector<8x8x128xf32>
    %388 = arith.mulf %384, %387 : vector<8x8x128xf32>
    %389 = vector.extract_strided_slice %163 {offsets = [0, 8, 0], sizes = [8, 8, 128], strides = [1, 1, 1]} : vector<8x32x128xf32> to vector<8x8x128xf32>
    %390 = vector.extract_strided_slice %381 {offsets = [8, 0], sizes = [8, 128], strides = [1, 1]} : vector<32x128xf32> to vector<8x128xf32>
    %391 = vector.shape_cast %390 : vector<8x128xf32> to vector<1x8x128xf32>
    %392 = vector.broadcast %391 : vector<1x8x128xf32> to vector<8x8x128xf32>
    %393 = arith.mulf %389, %392 : vector<8x8x128xf32>
    %394 = arith.addf %388, %393 : vector<8x8x128xf32>
    %395 = vector.extract_strided_slice %163 {offsets = [0, 16, 0], sizes = [8, 8, 128], strides = [1, 1, 1]} : vector<8x32x128xf32> to vector<8x8x128xf32>
    %396 = vector.extract_strided_slice %381 {offsets = [16, 0], sizes = [8, 128], strides = [1, 1]} : vector<32x128xf32> to vector<8x128xf32>
    %397 = vector.shape_cast %396 : vector<8x128xf32> to vector<1x8x128xf32>
    %398 = vector.broadcast %397 : vector<1x8x128xf32> to vector<8x8x128xf32>
    %399 = arith.mulf %395, %398 : vector<8x8x128xf32>
    %400 = arith.addf %394, %399 : vector<8x8x128xf32>
    %401 = vector.extract_strided_slice %163 {offsets = [0, 24, 0], sizes = [8, 8, 128], strides = [1, 1, 1]} : vector<8x32x128xf32> to vector<8x8x128xf32>
    %402 = vector.extract_strided_slice %381 {offsets = [24, 0], sizes = [8, 128], strides = [1, 1]} : vector<32x128xf32> to vector<8x128xf32>
    %403 = vector.shape_cast %402 : vector<8x128xf32> to vector<1x8x128xf32>
    %404 = vector.broadcast %403 : vector<1x8x128xf32> to vector<8x8x128xf32>
    %405 = arith.mulf %401, %404 : vector<8x8x128xf32>
    %406 = arith.addf %400, %405 : vector<8x8x128xf32>
    %cst_171 = arith.constant dense<0xFF800000> : vector<8x128xf32>
    %407 = vector.multi_reduction <maximumf>, %406, %cst_171 [0] : vector<8x8x128xf32> to vector<8x128xf32>
    %408 = vector.shape_cast %407 : vector<8x128xf32> to vector<1x8x128xf32>
    %409 = vector.broadcast %408 : vector<1x8x128xf32> to vector<8x8x128xf32>
    %410 = arith.subf %406, %409 : vector<8x8x128xf32>
    %411 = math.exp %410 : vector<8x8x128xf32>
    %cst_172 = arith.constant dense<0.000000e+00> : vector<8x128xf32>
    %412 = vector.multi_reduction <add>, %411, %cst_172 [0] : vector<8x8x128xf32> to vector<8x128xf32>
    %413 = vector.shape_cast %412 : vector<8x128xf32> to vector<1x8x128xf32>
    %cst_173 = arith.constant 1.000000e+00 : f32
    %414 = vector.broadcast %cst_173 : f32 to vector<1x8x128xf32>
    %415 = arith.divf %414, %413 : vector<1x8x128xf32>
    %416 = vector.broadcast %415 : vector<1x8x128xf32> to vector<8x8x128xf32>
    %417 = arith.mulf %411, %416 : vector<8x8x128xf32>
    %418 = tpu.concatenate %417, %417, %417, %417 in 1 : vector<8x8x128xf32>, vector<8x8x128xf32>, vector<8x8x128xf32>, vector<8x8x128xf32> -> vector<8x32x128xf32>
    %419 = vector.shape_cast %383 : vector<32x128xf32> to vector<1x32x128xf32>
    %420 = vector.broadcast %419 : vector<1x32x128xf32> to vector<8x32x128xf32>
    %421 = arith.mulf %418, %420 : vector<8x32x128xf32>
    %422 = arith.addf %379, %421 : vector<8x32x128xf32>
    %c6_174 = arith.constant 6 : index
    %c0_175 = arith.constant 0 : index
    %c0_176 = arith.constant 0 : index
    %423 = vector.load %arg9[%c6_174, %c0_175, %c0_176] : memref<8x32x128xf32, #tpu.memory_space<vmem>>, vector<1x32x128xf32>
    %424 = vector.shape_cast %423 : vector<1x32x128xf32> to vector<32x128xf32>
    %c6_177 = arith.constant 6 : index
    %c0_178 = arith.constant 0 : index
    %c0_179 = arith.constant 0 : index
    %425 = vector.load %arg10[%c6_177, %c0_178, %c0_179] : memref<8x32x128xf32, #tpu.memory_space<vmem>>, vector<1x32x128xf32>
    %426 = vector.shape_cast %425 : vector<1x32x128xf32> to vector<32x128xf32>
    %427 = vector.extract_strided_slice %163 {offsets = [0, 0, 0], sizes = [8, 8, 128], strides = [1, 1, 1]} : vector<8x32x128xf32> to vector<8x8x128xf32>
    %428 = vector.extract_strided_slice %424 {offsets = [0, 0], sizes = [8, 128], strides = [1, 1]} : vector<32x128xf32> to vector<8x128xf32>
    %429 = vector.shape_cast %428 : vector<8x128xf32> to vector<1x8x128xf32>
    %430 = vector.broadcast %429 : vector<1x8x128xf32> to vector<8x8x128xf32>
    %431 = arith.mulf %427, %430 : vector<8x8x128xf32>
    %432 = vector.extract_strided_slice %163 {offsets = [0, 8, 0], sizes = [8, 8, 128], strides = [1, 1, 1]} : vector<8x32x128xf32> to vector<8x8x128xf32>
    %433 = vector.extract_strided_slice %424 {offsets = [8, 0], sizes = [8, 128], strides = [1, 1]} : vector<32x128xf32> to vector<8x128xf32>
    %434 = vector.shape_cast %433 : vector<8x128xf32> to vector<1x8x128xf32>
    %435 = vector.broadcast %434 : vector<1x8x128xf32> to vector<8x8x128xf32>
    %436 = arith.mulf %432, %435 : vector<8x8x128xf32>
    %437 = arith.addf %431, %436 : vector<8x8x128xf32>
    %438 = vector.extract_strided_slice %163 {offsets = [0, 16, 0], sizes = [8, 8, 128], strides = [1, 1, 1]} : vector<8x32x128xf32> to vector<8x8x128xf32>
    %439 = vector.extract_strided_slice %424 {offsets = [16, 0], sizes = [8, 128], strides = [1, 1]} : vector<32x128xf32> to vector<8x128xf32>
    %440 = vector.shape_cast %439 : vector<8x128xf32> to vector<1x8x128xf32>
    %441 = vector.broadcast %440 : vector<1x8x128xf32> to vector<8x8x128xf32>
    %442 = arith.mulf %438, %441 : vector<8x8x128xf32>
    %443 = arith.addf %437, %442 : vector<8x8x128xf32>
    %444 = vector.extract_strided_slice %163 {offsets = [0, 24, 0], sizes = [8, 8, 128], strides = [1, 1, 1]} : vector<8x32x128xf32> to vector<8x8x128xf32>
    %445 = vector.extract_strided_slice %424 {offsets = [24, 0], sizes = [8, 128], strides = [1, 1]} : vector<32x128xf32> to vector<8x128xf32>
    %446 = vector.shape_cast %445 : vector<8x128xf32> to vector<1x8x128xf32>
    %447 = vector.broadcast %446 : vector<1x8x128xf32> to vector<8x8x128xf32>
    %448 = arith.mulf %444, %447 : vector<8x8x128xf32>
    %449 = arith.addf %443, %448 : vector<8x8x128xf32>
    %cst_180 = arith.constant dense<0xFF800000> : vector<8x128xf32>
    %450 = vector.multi_reduction <maximumf>, %449, %cst_180 [0] : vector<8x8x128xf32> to vector<8x128xf32>
    %451 = vector.shape_cast %450 : vector<8x128xf32> to vector<1x8x128xf32>
    %452 = vector.broadcast %451 : vector<1x8x128xf32> to vector<8x8x128xf32>
    %453 = arith.subf %449, %452 : vector<8x8x128xf32>
    %454 = math.exp %453 : vector<8x8x128xf32>
    %cst_181 = arith.constant dense<0.000000e+00> : vector<8x128xf32>
    %455 = vector.multi_reduction <add>, %454, %cst_181 [0] : vector<8x8x128xf32> to vector<8x128xf32>
    %456 = vector.shape_cast %455 : vector<8x128xf32> to vector<1x8x128xf32>
    %cst_182 = arith.constant 1.000000e+00 : f32
    %457 = vector.broadcast %cst_182 : f32 to vector<1x8x128xf32>
    %458 = arith.divf %457, %456 : vector<1x8x128xf32>
    %459 = vector.broadcast %458 : vector<1x8x128xf32> to vector<8x8x128xf32>
    %460 = arith.mulf %454, %459 : vector<8x8x128xf32>
    %461 = tpu.concatenate %460, %460, %460, %460 in 1 : vector<8x8x128xf32>, vector<8x8x128xf32>, vector<8x8x128xf32>, vector<8x8x128xf32> -> vector<8x32x128xf32>
    %462 = vector.shape_cast %426 : vector<32x128xf32> to vector<1x32x128xf32>
    %463 = vector.broadcast %462 : vector<1x32x128xf32> to vector<8x32x128xf32>
    %464 = arith.mulf %461, %463 : vector<8x32x128xf32>
    %465 = arith.addf %422, %464 : vector<8x32x128xf32>
    %c7_183 = arith.constant 7 : index
    %c0_184 = arith.constant 0 : index
    %c0_185 = arith.constant 0 : index
    %466 = vector.load %arg9[%c7_183, %c0_184, %c0_185] : memref<8x32x128xf32, #tpu.memory_space<vmem>>, vector<1x32x128xf32>
    %467 = vector.shape_cast %466 : vector<1x32x128xf32> to vector<32x128xf32>
    %c7_186 = arith.constant 7 : index
    %c0_187 = arith.constant 0 : index
    %c0_188 = arith.constant 0 : index
    %468 = vector.load %arg10[%c7_186, %c0_187, %c0_188] : memref<8x32x128xf32, #tpu.memory_space<vmem>>, vector<1x32x128xf32>
    %469 = vector.shape_cast %468 : vector<1x32x128xf32> to vector<32x128xf32>
    %470 = vector.extract_strided_slice %163 {offsets = [0, 0, 0], sizes = [8, 8, 128], strides = [1, 1, 1]} : vector<8x32x128xf32> to vector<8x8x128xf32>
    %471 = vector.extract_strided_slice %467 {offsets = [0, 0], sizes = [8, 128], strides = [1, 1]} : vector<32x128xf32> to vector<8x128xf32>
    %472 = vector.shape_cast %471 : vector<8x128xf32> to vector<1x8x128xf32>
    %473 = vector.broadcast %472 : vector<1x8x128xf32> to vector<8x8x128xf32>
    %474 = arith.mulf %470, %473 : vector<8x8x128xf32>
    %475 = vector.extract_strided_slice %163 {offsets = [0, 8, 0], sizes = [8, 8, 128], strides = [1, 1, 1]} : vector<8x32x128xf32> to vector<8x8x128xf32>
    %476 = vector.extract_strided_slice %467 {offsets = [8, 0], sizes = [8, 128], strides = [1, 1]} : vector<32x128xf32> to vector<8x128xf32>
    %477 = vector.shape_cast %476 : vector<8x128xf32> to vector<1x8x128xf32>
    %478 = vector.broadcast %477 : vector<1x8x128xf32> to vector<8x8x128xf32>
    %479 = arith.mulf %475, %478 : vector<8x8x128xf32>
    %480 = arith.addf %474, %479 : vector<8x8x128xf32>
    %481 = vector.extract_strided_slice %163 {offsets = [0, 16, 0], sizes = [8, 8, 128], strides = [1, 1, 1]} : vector<8x32x128xf32> to vector<8x8x128xf32>
    %482 = vector.extract_strided_slice %467 {offsets = [16, 0], sizes = [8, 128], strides = [1, 1]} : vector<32x128xf32> to vector<8x128xf32>
    %483 = vector.shape_cast %482 : vector<8x128xf32> to vector<1x8x128xf32>
    %484 = vector.broadcast %483 : vector<1x8x128xf32> to vector<8x8x128xf32>
    %485 = arith.mulf %481, %484 : vector<8x8x128xf32>
    %486 = arith.addf %480, %485 : vector<8x8x128xf32>
    %487 = vector.extract_strided_slice %163 {offsets = [0, 24, 0], sizes = [8, 8, 128], strides = [1, 1, 1]} : vector<8x32x128xf32> to vector<8x8x128xf32>
    %488 = vector.extract_strided_slice %467 {offsets = [24, 0], sizes = [8, 128], strides = [1, 1]} : vector<32x128xf32> to vector<8x128xf32>
    %489 = vector.shape_cast %488 : vector<8x128xf32> to vector<1x8x128xf32>
    %490 = vector.broadcast %489 : vector<1x8x128xf32> to vector<8x8x128xf32>
    %491 = arith.mulf %487, %490 : vector<8x8x128xf32>
    %492 = arith.addf %486, %491 : vector<8x8x128xf32>
    %cst_189 = arith.constant dense<0xFF800000> : vector<8x128xf32>
    %493 = vector.multi_reduction <maximumf>, %492, %cst_189 [0] : vector<8x8x128xf32> to vector<8x128xf32>
    %494 = vector.shape_cast %493 : vector<8x128xf32> to vector<1x8x128xf32>
    %495 = vector.broadcast %494 : vector<1x8x128xf32> to vector<8x8x128xf32>
    %496 = arith.subf %492, %495 : vector<8x8x128xf32>
    %497 = math.exp %496 : vector<8x8x128xf32>
    %cst_190 = arith.constant dense<0.000000e+00> : vector<8x128xf32>
    %498 = vector.multi_reduction <add>, %497, %cst_190 [0] : vector<8x8x128xf32> to vector<8x128xf32>
    %499 = vector.shape_cast %498 : vector<8x128xf32> to vector<1x8x128xf32>
    %cst_191 = arith.constant 1.000000e+00 : f32
    %500 = vector.broadcast %cst_191 : f32 to vector<1x8x128xf32>
    %501 = arith.divf %500, %499 : vector<1x8x128xf32>
    %502 = vector.broadcast %501 : vector<1x8x128xf32> to vector<8x8x128xf32>
    %503 = arith.mulf %497, %502 : vector<8x8x128xf32>
    %504 = tpu.concatenate %503, %503, %503, %503 in 1 : vector<8x8x128xf32>, vector<8x8x128xf32>, vector<8x8x128xf32>, vector<8x8x128xf32> -> vector<8x32x128xf32>
    %505 = vector.shape_cast %469 : vector<32x128xf32> to vector<1x32x128xf32>
    %506 = vector.broadcast %505 : vector<1x32x128xf32> to vector<8x32x128xf32>
    %507 = arith.mulf %504, %506 : vector<8x32x128xf32>
    %508 = arith.addf %465, %507 : vector<8x32x128xf32>
    %c0_192 = arith.constant 0 : index
    %c0_193 = arith.constant 0 : index
    %509 = vector.load %arg5[%c0_192, %c0_193] : memref<32x64xf32, #tpu.memory_space<vmem>>, vector<32x64xf32>
    %c0_194 = arith.constant 0 : index
    %c0_195 = arith.constant 0 : index
    %510 = vector.load %arg6[%c0_194, %c0_195] : memref<32x1xf32, #tpu.memory_space<vmem>>, vector<32x1xf32>
    %c0_196 = arith.constant 0 : index
    %c0_197 = arith.constant 0 : index
    %c0_198 = arith.constant 0 : index
    %c0_199 = arith.constant 0 : index
    %511 = vector.load %arg2[%c0_196, %c0_197, %c0_198, %c0_199] : memref<1x8x32x128xf32, #tpu.memory_space<vmem>>, vector<1x1x32x128xf32>
    %512 = vector.shape_cast %511 : vector<1x1x32x128xf32> to vector<32x128xf32>
    %513 = vector.extract_strided_slice %508 {offsets = [0, 0, 0], sizes = [1, 32, 128], strides = [1, 1, 1]} : vector<8x32x128xf32> to vector<1x32x128xf32>
    %514 = vector.shape_cast %513 : vector<1x32x128xf32> to vector<32x128xf32>
    %515 = tpu.concatenate %512, %514 in 0 : vector<32x128xf32>, vector<32x128xf32> -> vector<64x128xf32>
    %cst_200 = arith.constant dense<0.000000e+00> : vector<32x128xf32>
    %516 = tpu.matmul %509, %515, %cst_200 {dimension_numbers = #tpu.dot_dimension_numbers<[1], [0], [0], [1], [0, 0, 1, 1], [], []>} : vector<32x64xf32>, vector<64x128xf32>, vector<32x128xf32> -> vector<32x128xf32>
    %517 = vector.broadcast %510 : vector<32x1xf32> to vector<32x128xf32>
    %518 = arith.addf %516, %517 : vector<32x128xf32>
    %c0_201 = arith.constant 0 : index
    %c0_202 = arith.constant 0 : index
    %c0_203 = arith.constant 0 : index
    %c0_204 = arith.constant 0 : index
    %519 = vector.load %arg7[%c0_201, %c0_202, %c0_203, %c0_204] : memref<1x8x32x128xf32, #tpu.memory_space<vmem>>, vector<1x1x32x128xf32>
    %520 = vector.shape_cast %519 : vector<1x1x32x128xf32> to vector<32x128xf32>
    %521 = vector.shape_cast %518 : vector<32x128xf32> to vector<1x1x32x128xf32>
    tpu.vector_store %arg7[%c0_201, %c0_202, %c0_203, %c0_204], %521 {strides = array<i32>} : memref<1x8x32x128xf32, #tpu.memory_space<vmem>>, vector<1x1x32x128xf32>,
    %c0_205 = arith.constant 0 : index
    %c1_206 = arith.constant 1 : index
    %c0_207 = arith.constant 0 : index
    %c0_208 = arith.constant 0 : index
    %522 = vector.load %arg2[%c0_205, %c1_206, %c0_207, %c0_208] : memref<1x8x32x128xf32, #tpu.memory_space<vmem>>, vector<1x1x32x128xf32>
    %523 = vector.shape_cast %522 : vector<1x1x32x128xf32> to vector<32x128xf32>
    %524 = vector.extract_strided_slice %508 {offsets = [1, 0, 0], sizes = [1, 32, 128], strides = [1, 1, 1]} : vector<8x32x128xf32> to vector<1x32x128xf32>
    %525 = vector.shape_cast %524 : vector<1x32x128xf32> to vector<32x128xf32>
    %526 = tpu.concatenate %523, %525 in 0 : vector<32x128xf32>, vector<32x128xf32> -> vector<64x128xf32>
    %cst_209 = arith.constant dense<0.000000e+00> : vector<32x128xf32>
    %527 = tpu.matmul %509, %526, %cst_209 {dimension_numbers = #tpu.dot_dimension_numbers<[1], [0], [0], [1], [0, 0, 1, 1], [], []>} : vector<32x64xf32>, vector<64x128xf32>, vector<32x128xf32> -> vector<32x128xf32>
    %528 = vector.broadcast %510 : vector<32x1xf32> to vector<32x128xf32>
    %529 = arith.addf %527, %528 : vector<32x128xf32>
    %c0_210 = arith.constant 0 : index
    %c1_211 = arith.constant 1 : index
    %c0_212 = arith.constant 0 : index
    %c0_213 = arith.constant 0 : index
    %530 = vector.load %arg7[%c0_210, %c1_211, %c0_212, %c0_213] : memref<1x8x32x128xf32, #tpu.memory_space<vmem>>, vector<1x1x32x128xf32>
    %531 = vector.shape_cast %530 : vector<1x1x32x128xf32> to vector<32x128xf32>
    %532 = vector.shape_cast %529 : vector<32x128xf32> to vector<1x1x32x128xf32>
    tpu.vector_store %arg7[%c0_210, %c1_211, %c0_212, %c0_213], %532 {strides = array<i32>} : memref<1x8x32x128xf32, #tpu.memory_space<vmem>>, vector<1x1x32x128xf32>,
    %c0_214 = arith.constant 0 : index
    %c2_215 = arith.constant 2 : index
    %c0_216 = arith.constant 0 : index
    %c0_217 = arith.constant 0 : index
    %533 = vector.load %arg2[%c0_214, %c2_215, %c0_216, %c0_217] : memref<1x8x32x128xf32, #tpu.memory_space<vmem>>, vector<1x1x32x128xf32>
    %534 = vector.shape_cast %533 : vector<1x1x32x128xf32> to vector<32x128xf32>
    %535 = vector.extract_strided_slice %508 {offsets = [2, 0, 0], sizes = [1, 32, 128], strides = [1, 1, 1]} : vector<8x32x128xf32> to vector<1x32x128xf32>
    %536 = vector.shape_cast %535 : vector<1x32x128xf32> to vector<32x128xf32>
    %537 = tpu.concatenate %534, %536 in 0 : vector<32x128xf32>, vector<32x128xf32> -> vector<64x128xf32>
    %cst_218 = arith.constant dense<0.000000e+00> : vector<32x128xf32>
    %538 = tpu.matmul %509, %537, %cst_218 {dimension_numbers = #tpu.dot_dimension_numbers<[1], [0], [0], [1], [0, 0, 1, 1], [], []>} : vector<32x64xf32>, vector<64x128xf32>, vector<32x128xf32> -> vector<32x128xf32>
    %539 = vector.broadcast %510 : vector<32x1xf32> to vector<32x128xf32>
    %540 = arith.addf %538, %539 : vector<32x128xf32>
    %c0_219 = arith.constant 0 : index
    %c2_220 = arith.constant 2 : index
    %c0_221 = arith.constant 0 : index
    %c0_222 = arith.constant 0 : index
    %541 = vector.load %arg7[%c0_219, %c2_220, %c0_221, %c0_222] : memref<1x8x32x128xf32, #tpu.memory_space<vmem>>, vector<1x1x32x128xf32>
    %542 = vector.shape_cast %541 : vector<1x1x32x128xf32> to vector<32x128xf32>
    %543 = vector.shape_cast %540 : vector<32x128xf32> to vector<1x1x32x128xf32>
    tpu.vector_store %arg7[%c0_219, %c2_220, %c0_221, %c0_222], %543 {strides = array<i32>} : memref<1x8x32x128xf32, #tpu.memory_space<vmem>>, vector<1x1x32x128xf32>,
    %c0_223 = arith.constant 0 : index
    %c3_224 = arith.constant 3 : index
    %c0_225 = arith.constant 0 : index
    %c0_226 = arith.constant 0 : index
    %544 = vector.load %arg2[%c0_223, %c3_224, %c0_225, %c0_226] : memref<1x8x32x128xf32, #tpu.memory_space<vmem>>, vector<1x1x32x128xf32>
    %545 = vector.shape_cast %544 : vector<1x1x32x128xf32> to vector<32x128xf32>
    %546 = vector.extract_strided_slice %508 {offsets = [3, 0, 0], sizes = [1, 32, 128], strides = [1, 1, 1]} : vector<8x32x128xf32> to vector<1x32x128xf32>
    %547 = vector.shape_cast %546 : vector<1x32x128xf32> to vector<32x128xf32>
    %548 = tpu.concatenate %545, %547 in 0 : vector<32x128xf32>, vector<32x128xf32> -> vector<64x128xf32>
    %cst_227 = arith.constant dense<0.000000e+00> : vector<32x128xf32>
    %549 = tpu.matmul %509, %548, %cst_227 {dimension_numbers = #tpu.dot_dimension_numbers<[1], [0], [0], [1], [0, 0, 1, 1], [], []>} : vector<32x64xf32>, vector<64x128xf32>, vector<32x128xf32> -> vector<32x128xf32>
    %550 = vector.broadcast %510 : vector<32x1xf32> to vector<32x128xf32>
    %551 = arith.addf %549, %550 : vector<32x128xf32>
    %c0_228 = arith.constant 0 : index
    %c3_229 = arith.constant 3 : index
    %c0_230 = arith.constant 0 : index
    %c0_231 = arith.constant 0 : index
    %552 = vector.load %arg7[%c0_228, %c3_229, %c0_230, %c0_231] : memref<1x8x32x128xf32, #tpu.memory_space<vmem>>, vector<1x1x32x128xf32>
    %553 = vector.shape_cast %552 : vector<1x1x32x128xf32> to vector<32x128xf32>
    %554 = vector.shape_cast %551 : vector<32x128xf32> to vector<1x1x32x128xf32>
    tpu.vector_store %arg7[%c0_228, %c3_229, %c0_230, %c0_231], %554 {strides = array<i32>} : memref<1x8x32x128xf32, #tpu.memory_space<vmem>>, vector<1x1x32x128xf32>,
    %c0_232 = arith.constant 0 : index
    %c4_233 = arith.constant 4 : index
    %c0_234 = arith.constant 0 : index
    %c0_235 = arith.constant 0 : index
    %555 = vector.load %arg2[%c0_232, %c4_233, %c0_234, %c0_235] : memref<1x8x32x128xf32, #tpu.memory_space<vmem>>, vector<1x1x32x128xf32>
    %556 = vector.shape_cast %555 : vector<1x1x32x128xf32> to vector<32x128xf32>
    %557 = vector.extract_strided_slice %508 {offsets = [4, 0, 0], sizes = [1, 32, 128], strides = [1, 1, 1]} : vector<8x32x128xf32> to vector<1x32x128xf32>
    %558 = vector.shape_cast %557 : vector<1x32x128xf32> to vector<32x128xf32>
    %559 = tpu.concatenate %556, %558 in 0 : vector<32x128xf32>, vector<32x128xf32> -> vector<64x128xf32>
    %cst_236 = arith.constant dense<0.000000e+00> : vector<32x128xf32>
    %560 = tpu.matmul %509, %559, %cst_236 {dimension_numbers = #tpu.dot_dimension_numbers<[1], [0], [0], [1], [0, 0, 1, 1], [], []>} : vector<32x64xf32>, vector<64x128xf32>, vector<32x128xf32> -> vector<32x128xf32>
    %561 = vector.broadcast %510 : vector<32x1xf32> to vector<32x128xf32>
    %562 = arith.addf %560, %561 : vector<32x128xf32>
    %c0_237 = arith.constant 0 : index
    %c4_238 = arith.constant 4 : index
    %c0_239 = arith.constant 0 : index
    %c0_240 = arith.constant 0 : index
    %563 = vector.load %arg7[%c0_237, %c4_238, %c0_239, %c0_240] : memref<1x8x32x128xf32, #tpu.memory_space<vmem>>, vector<1x1x32x128xf32>
    %564 = vector.shape_cast %563 : vector<1x1x32x128xf32> to vector<32x128xf32>
    %565 = vector.shape_cast %562 : vector<32x128xf32> to vector<1x1x32x128xf32>
    tpu.vector_store %arg7[%c0_237, %c4_238, %c0_239, %c0_240], %565 {strides = array<i32>} : memref<1x8x32x128xf32, #tpu.memory_space<vmem>>, vector<1x1x32x128xf32>,
    %c0_241 = arith.constant 0 : index
    %c5_242 = arith.constant 5 : index
    %c0_243 = arith.constant 0 : index
    %c0_244 = arith.constant 0 : index
    %566 = vector.load %arg2[%c0_241, %c5_242, %c0_243, %c0_244] : memref<1x8x32x128xf32, #tpu.memory_space<vmem>>, vector<1x1x32x128xf32>
    %567 = vector.shape_cast %566 : vector<1x1x32x128xf32> to vector<32x128xf32>
    %568 = vector.extract_strided_slice %508 {offsets = [5, 0, 0], sizes = [1, 32, 128], strides = [1, 1, 1]} : vector<8x32x128xf32> to vector<1x32x128xf32>
    %569 = vector.shape_cast %568 : vector<1x32x128xf32> to vector<32x128xf32>
    %570 = tpu.concatenate %567, %569 in 0 : vector<32x128xf32>, vector<32x128xf32> -> vector<64x128xf32>
    %cst_245 = arith.constant dense<0.000000e+00> : vector<32x128xf32>
    %571 = tpu.matmul %509, %570, %cst_245 {dimension_numbers = #tpu.dot_dimension_numbers<[1], [0], [0], [1], [0, 0, 1, 1], [], []>} : vector<32x64xf32>, vector<64x128xf32>, vector<32x128xf32> -> vector<32x128xf32>
    %572 = vector.broadcast %510 : vector<32x1xf32> to vector<32x128xf32>
    %573 = arith.addf %571, %572 : vector<32x128xf32>
    %c0_246 = arith.constant 0 : index
    %c5_247 = arith.constant 5 : index
    %c0_248 = arith.constant 0 : index
    %c0_249 = arith.constant 0 : index
    %574 = vector.load %arg7[%c0_246, %c5_247, %c0_248, %c0_249] : memref<1x8x32x128xf32, #tpu.memory_space<vmem>>, vector<1x1x32x128xf32>
    %575 = vector.shape_cast %574 : vector<1x1x32x128xf32> to vector<32x128xf32>
    %576 = vector.shape_cast %573 : vector<32x128xf32> to vector<1x1x32x128xf32>
    tpu.vector_store %arg7[%c0_246, %c5_247, %c0_248, %c0_249], %576 {strides = array<i32>} : memref<1x8x32x128xf32, #tpu.memory_space<vmem>>, vector<1x1x32x128xf32>,
    %c0_250 = arith.constant 0 : index
    %c6_251 = arith.constant 6 : index
    %c0_252 = arith.constant 0 : index
    %c0_253 = arith.constant 0 : index
    %577 = vector.load %arg2[%c0_250, %c6_251, %c0_252, %c0_253] : memref<1x8x32x128xf32, #tpu.memory_space<vmem>>, vector<1x1x32x128xf32>
    %578 = vector.shape_cast %577 : vector<1x1x32x128xf32> to vector<32x128xf32>
    %579 = vector.extract_strided_slice %508 {offsets = [6, 0, 0], sizes = [1, 32, 128], strides = [1, 1, 1]} : vector<8x32x128xf32> to vector<1x32x128xf32>
    %580 = vector.shape_cast %579 : vector<1x32x128xf32> to vector<32x128xf32>
    %581 = tpu.concatenate %578, %580 in 0 : vector<32x128xf32>, vector<32x128xf32> -> vector<64x128xf32>
    %cst_254 = arith.constant dense<0.000000e+00> : vector<32x128xf32>
    %582 = tpu.matmul %509, %581, %cst_254 {dimension_numbers = #tpu.dot_dimension_numbers<[1], [0], [0], [1], [0, 0, 1, 1], [], []>} : vector<32x64xf32>, vector<64x128xf32>, vector<32x128xf32> -> vector<32x128xf32>
    %583 = vector.broadcast %510 : vector<32x1xf32> to vector<32x128xf32>
    %584 = arith.addf %582, %583 : vector<32x128xf32>
    %c0_255 = arith.constant 0 : index
    %c6_256 = arith.constant 6 : index
    %c0_257 = arith.constant 0 : index
    %c0_258 = arith.constant 0 : index
    %585 = vector.load %arg7[%c0_255, %c6_256, %c0_257, %c0_258] : memref<1x8x32x128xf32, #tpu.memory_space<vmem>>, vector<1x1x32x128xf32>
    %586 = vector.shape_cast %585 : vector<1x1x32x128xf32> to vector<32x128xf32>
    %587 = vector.shape_cast %584 : vector<32x128xf32> to vector<1x1x32x128xf32>
    tpu.vector_store %arg7[%c0_255, %c6_256, %c0_257, %c0_258], %587 {strides = array<i32>} : memref<1x8x32x128xf32, #tpu.memory_space<vmem>>, vector<1x1x32x128xf32>,
    %c0_259 = arith.constant 0 : index
    %c7_260 = arith.constant 7 : index
    %c0_261 = arith.constant 0 : index
    %c0_262 = arith.constant 0 : index
    %588 = vector.load %arg2[%c0_259, %c7_260, %c0_261, %c0_262] : memref<1x8x32x128xf32, #tpu.memory_space<vmem>>, vector<1x1x32x128xf32>
    %589 = vector.shape_cast %588 : vector<1x1x32x128xf32> to vector<32x128xf32>
    %590 = vector.extract_strided_slice %508 {offsets = [7, 0, 0], sizes = [1, 32, 128], strides = [1, 1, 1]} : vector<8x32x128xf32> to vector<1x32x128xf32>
    %591 = vector.shape_cast %590 : vector<1x32x128xf32> to vector<32x128xf32>
    %592 = tpu.concatenate %589, %591 in 0 : vector<32x128xf32>, vector<32x128xf32> -> vector<64x128xf32>
    %cst_263 = arith.constant dense<0.000000e+00> : vector<32x128xf32>
    %593 = tpu.matmul %509, %592, %cst_263 {dimension_numbers = #tpu.dot_dimension_numbers<[1], [0], [0], [1], [0, 0, 1, 1], [], []>} : vector<32x64xf32>, vector<64x128xf32>, vector<32x128xf32> -> vector<32x128xf32>
    %594 = vector.broadcast %510 : vector<32x1xf32> to vector<32x128xf32>
    %595 = arith.addf %593, %594 : vector<32x128xf32>
    %c0_264 = arith.constant 0 : index
    %c7_265 = arith.constant 7 : index
    %c0_266 = arith.constant 0 : index
    %c0_267 = arith.constant 0 : index
    %596 = vector.load %arg7[%c0_264, %c7_265, %c0_266, %c0_267] : memref<1x8x32x128xf32, #tpu.memory_space<vmem>>, vector<1x1x32x128xf32>
    %597 = vector.shape_cast %596 : vector<1x1x32x128xf32> to vector<32x128xf32>
    %598 = vector.shape_cast %595 : vector<32x128xf32> to vector<1x1x32x128xf32>
    tpu.vector_store %arg7[%c0_264, %c7_265, %c0_266, %c0_267], %598 {strides = array<i32>} : memref<1x8x32x128xf32, #tpu.memory_space<vmem>>, vector<1x1x32x128xf32>,
    return
  }
  func.func @transform_0(%arg0: i32, %arg1: i32) -> (i32, i32, i32, i32) {
    %c0_i32 = arith.constant 0 : i32
    %c0_i32_0 = arith.constant 0 : i32
    %c0_i32_1 = arith.constant 0 : i32
    return %arg0, %c0_i32, %c0_i32_0, %arg1 : i32, i32, i32, i32
  }
  func.func @transform_1(%arg0: i32, %arg1: i32) -> (i32, i32, i32) {
    %c0_i32 = arith.constant 0 : i32
    %c0_i32_0 = arith.constant 0 : i32
    %c0_i32_1 = arith.constant 0 : i32
    return %arg0, %c0_i32, %c0_i32_0 : i32, i32, i32
  }
  func.func @transform_2(%arg0: i32, %arg1: i32) -> (i32, i32) {
    %c0_i32 = arith.constant 0 : i32
    %c0_i32_0 = arith.constant 0 : i32
    %c0_i32_1 = arith.constant 0 : i32
    return %c0_i32, %c0_i32_0 : i32, i32
  }
  func.func @transform_3(%arg0: i32, %arg1: i32) -> (i32, i32) {
    %c0_i32 = arith.constant 0 : i32
    %c0_i32_0 = arith.constant 0 : i32
    %c0_i32_1 = arith.constant 0 : i32
    return %c0_i32, %c0_i32_0 : i32, i32
  }
  func.func @transform_4(%arg0: i32, %arg1: i32) -> (i32, i32) {
    %c0_i32 = arith.constant 0 : i32
    %c0_i32_0 = arith.constant 0 : i32
    %c0_i32_1 = arith.constant 0 : i32
    return %c0_i32, %c0_i32_0 : i32, i32
  }
  func.func @transform_5(%arg0: i32, %arg1: i32) -> (i32, i32, i32, i32) {
    %c0_i32 = arith.constant 0 : i32
    %c0_i32_0 = arith.constant 0 : i32
    %c0_i32_1 = arith.constant 0 : i32
    return %arg0, %c0_i32, %c0_i32_0, %arg1 : i32, i32, i32, i32
  }
}

</mosaic_0001>

<llo_original>
// kernel: transform_attention_forward.1
$region0: #{transform_attention_forward.1}
  #allocation0 [shape = 'u32[]', space=smem, size = 0x4, offset = 0x4, fixed_abs, tag = 'smem constant byte address 0x4 - core index']
  #allocation1 [shape = 'u32[144,128]{1,0:T(1,128)}', space=vmem, size = 0x12000, scoped, tag = 'internal scratch']
  #allocation2 [shape = 'f32[8,32,128]{2,1,0:T(8,128)}', space=vmem, size = 0x20000, scoped, tag = 'scratch operand']
  #allocation3 [shape = 'f32[8,32,128]{2,1,0:T(8,128)}', space=vmem, size = 0x20000, scoped, tag = 'scratch operand']
  #allocation4 [shape = 'f32[8,32,128]{2,1,0:T(8,128)}', space=vmem, size = 0x20000, scoped, tag = 'scratch operand']
  %s0 = inlined_call_operand.vmem [shape: f32[2,8,32,128], index: 0, kind: input, shape index: {}]
  %s1 = inlined_call_operand.vmem [shape: f32[2,96,8], index: 1, kind: input, shape index: {}]
  %s2 = inlined_call_operand.vmem [shape: f32[96,32], index: 2, kind: input, shape index: {}]
  %s3 = inlined_call_operand.vmem [shape: f32[32,64], index: 3, kind: input, shape index: {}]
  %s4 = inlined_call_operand.vmem [shape: f32[32,1], index: 4, kind: input, shape index: {}]
  %s5 = inlined_call_operand.vmem [shape: f32[2,8,32,128], index: 5, kind: output, shape index: {}]
  %s6 = sld [smem:[#allocation0]]
  $region53: #{transform_attention_forward.1} parent=0
    _
  %s8 = ssub.s32 1, %s6
  %s9 = scalar_select 0, %s8, %s6
  loop: start=0, step=1, limit=4
  $region2: #{transform_attention_forward.1} parent=0 // loop_pre_header
    _
  $region3: #{transform_attention_forward.1} parent=0 // loop_header
    %s11 = sphi 0, %s15
    %p12 = scmp.ge.s32.totalorder %s11, 4
    %s18 = sphi 0, %s30
    %s19 = sphi 0, %s26
    %s20 = sphi 0, %s18
    %s21 = sphi 0, %s19
    %s22 = sphi 0, %s20
    %s23 = sphi 0, %s21
    %s35 = sphi 0, %s37
    %s38 = sphi 0, %s35
    %s39 = sphi 0, %s38
    %s55 = sphi 0, %s39
    %s61 = sphi 0, %s63
    %s64 = sphi 0, %s61
    %s65 = sphi 0, %s64
    %s81 = sphi 0, %s65
    %s85 = sphi 0, %s85
    %s87 = sphi 0, %s85
    %s88 = sphi 0, %s87
    %s102 = sphi 0, %s88
    %s106 = sphi 0, %s106
    %s108 = sphi 0, %s106
    %s109 = sphi 0, %s108
    %s123 = sphi 0, %s109
    %s127 = sphi 0, %s127
    %s129 = sphi 0, %s127
    %s130 = sphi 0, %s129
    %s144 = sphi 0, %s130
    %s152 = sphi 0, %s154
    %s155 = sphi 0, %s152
    %s156 = sphi 0, %s155
    %s172 = sphi 0, %s156
  $region4: #{transform_attention_forward.1} parent=0 // loop_header_branch
    %14 = sbr.rel (%p12) target = $region8
  $region5: #{transform_attention_forward.1} parent=0 // loop_body
    %s16 = ssub.s32 %s11, 1
    %s17 = ssub.s32 %s11, 2
    %s24 = sadd.s32 1, %s19
    %p25 = scmp.ge.s32.totalorder %s24, 1
    %s26 = scalar_select %p25, 0, %s24
    %s27 = sadd.s32 1, %s18
    %s28 = scalar_select %p25, %s27, %s18
    %p29 = scmp.ge.s32.totalorder %s28, 2
    %s30 = scalar_select %p29, 0, %s28
    %s31 = ssub.s32 %s18, %s30
    %s32 = ssub.s32 %s19, %s26
    %s33 = sor.u32 %s31, %s32
    %p34 = scmp.eq.s32.totalorder %s33, 0
    %s36 = sadd.s32 %s35, 1
    %s37 = scalar_select %p34, %s35, %s36
    %p40 = pneg %p34
    %p41 = scmp.eq.s32.totalorder %s11, 1
    %p42 = por %p40, %p41
    %p43 = scmp.ne.s32.totalorder %s35, %s38
    %p44 = scmp.eq.s32.totalorder %s11, 0
    %p45 = por %p43, %p44
    %p46 = scmp.ne.s32.totalorder %s35, %s38
    %p47 = scmp.eq.s32.totalorder %s16, 1
    %p48 = por %p46, %p47
    %p49 = scmp.ne.s32.totalorder %s38, %s39
    %p50 = scmp.eq.s32.totalorder %s16, 0
    %p51 = por %p49, %p50
    %p52 = scmp.ne.s32.totalorder %s38, %s39
    %p53 = scmp.eq.s32.totalorder %s17, 1
    %p54 = por %p52, %p53
    %p56 = scmp.ne.s32.totalorder %s39, %s55
    %p57 = scmp.eq.s32.totalorder %s17, 0
    %p58 = por %p56, %p57
    %s59 = ssub.s32 %s18, %s30
    %p60 = scmp.eq.s32.totalorder %s59, 0
    %s62 = sadd.s32 %s61, 1
    %s63 = scalar_select %p60, %s61, %s62
    %p66 = pneg %p60
    %p67 = scmp.eq.s32.totalorder %s11, 1
    %p68 = por %p66, %p67
    %p69 = scmp.ne.s32.totalorder %s61, %s64
    %p70 = scmp.eq.s32.totalorder %s11, 0
    %p71 = por %p69, %p70
    %p72 = scmp.ne.s32.totalorder %s61, %s64
    %p73 = scmp.eq.s32.totalorder %s16, 1
    %p74 = por %p72, %p73
    %p75 = scmp.ne.s32.totalorder %s64, %s65
    %p76 = scmp.eq.s32.totalorder %s16, 0
    %p77 = por %p75, %p76
    %p78 = scmp.ne.s32.totalorder %s64, %s65
    %p79 = scmp.eq.s32.totalorder %s17, 1
    %p80 = por %p78, %p79
    %p82 = scmp.ne.s32.totalorder %s65, %s81
    %p83 = scmp.eq.s32.totalorder %s17, 0
    %p84 = por %p82, %p83
    %s86 = sadd.s32 %s85, 1
    %p89 = scmp.eq.s32.totalorder %s11, 1
    %p90 = scmp.ne.s32.totalorder %s85, %s87
    %p91 = scmp.eq.s32.totalorder %s11, 0
    %p92 = por %p90, %p91
    %p93 = scmp.ne.s32.totalorder %s85, %s87
    %p94 = scmp.eq.s32.totalorder %s16, 1
    %p95 = por %p93, %p94
    %p96 = scmp.ne.s32.totalorder %s87, %s88
    %p97 = scmp.eq.s32.totalorder %s16, 0
    %p98 = por %p96, %p97
    %p99 = scmp.ne.s32.totalorder %s87, %s88
    %p100 = scmp.eq.s32.totalorder %s17, 1
    %p101 = por %p99, %p100
    %p103 = scmp.ne.s32.totalorder %s88, %s102
    %p104 = scmp.eq.s32.totalorder %s17, 0
    %p105 = por %p103, %p104
    %s107 = sadd.s32 %s106, 1
    %p110 = scmp.eq.s32.totalorder %s11, 1
    %p111 = scmp.ne.s32.totalorder %s106, %s108
    %p112 = scmp.eq.s32.totalorder %s11, 0
    %p113 = por %p111, %p112
    %p114 = scmp.ne.s32.totalorder %s106, %s108
    %p115 = scmp.eq.s32.totalorder %s16, 1
    %p116 = por %p114, %p115
    %p117 = scmp.ne.s32.totalorder %s108, %s109
    %p118 = scmp.eq.s32.totalorder %s16, 0
    %p119 = por %p117, %p118
    %p120 = scmp.ne.s32.totalorder %s108, %s109
    %p121 = scmp.eq.s32.totalorder %s17, 1
    %p122 = por %p120, %p121
    %p124 = scmp.ne.s32.totalorder %s109, %s123
    %p125 = scmp.eq.s32.totalorder %s17, 0
    %p126 = por %p124, %p125
    %s128 = sadd.s32 %s127, 1
    %p131 = scmp.eq.s32.totalorder %s11, 1
    %p132 = scmp.ne.s32.totalorder %s127, %s129
    %p133 = scmp.eq.s32.totalorder %s11, 0
    %p134 = por %p132, %p133
    %p135 = scmp.ne.s32.totalorder %s127, %s129
    %p136 = scmp.eq.s32.totalorder %s16, 1
    %p137 = por %p135, %p136
    %p138 = scmp.ne.s32.totalorder %s129, %s130
    %p139 = scmp.eq.s32.totalorder %s16, 0
    %p140 = por %p138, %p139
    %p141 = scmp.ne.s32.totalorder %s129, %s130
    %p142 = scmp.eq.s32.totalorder %s17, 1
    %p143 = por %p141, %p142
    %p145 = scmp.ne.s32.totalorder %s130, %s144
    %p146 = scmp.eq.s32.totalorder %s17, 0
    %p147 = por %p145, %p146
    %s148 = ssub.s32 %s18, %s30
    %s149 = ssub.s32 %s19, %s26
    %s150 = sor.u32 %s148, %s149
    %p151 = scmp.eq.s32.totalorder %s150, 0
    %s153 = sadd.s32 %s152, 1
    %s154 = scalar_select %p151, %s152, %s153
    %p157 = pneg %p151
    %p158 = scmp.eq.s32.totalorder %s11, 1
    %p159 = por %p157, %p158
    %p160 = scmp.ne.s32.totalorder %s152, %s155
    %p161 = scmp.eq.s32.totalorder %s11, 0
    %p162 = por %p160, %p161
    %p163 = scmp.ne.s32.totalorder %s152, %s155
    %p164 = scmp.eq.s32.totalorder %s16, 1
    %p165 = por %p163, %p164
    %p166 = scmp.ne.s32.totalorder %s155, %s156
    %p167 = scmp.eq.s32.totalorder %s16, 0
    %p168 = por %p166, %p167
    %p169 = scmp.ne.s32.totalorder %s155, %s156
    %p170 = scmp.eq.s32.totalorder %s17, 1
    %p171 = por %p169, %p170
    %p173 = scmp.ne.s32.totalorder %s156, %s172
    %p174 = scmp.eq.s32.totalorder %s17, 0
    %p175 = por %p173, %p174
    %p176 = scmp.le.s32.totalorder 1, %s11
    %p177 = scmp.lt.s32.totalorder %s11, 3
    %p178 = pnand %p176, %p177
    %p179 = pneg %p178
    // Predicated region
    $region9: #{transform_attention_forward.1} parent=5 // pred_check
      _
    $region10: #{transform_attention_forward.1} parent=5 // pred_check_branch
      %181 = sbr.rel (%p178) target = $region12
    $region11: #{transform_attention_forward.1} parent=5 // pred_region
      %s182 = ssub.s32 %s11, 1
      // Predicated region
      $region13: #{transform_attention_forward.1} parent=11 // pred_check
        %p183 = pneg %p98
      $region14: #{transform_attention_forward.1} parent=11 // pred_check_branch
        %185 = sbr.rel (%p183) target = $region16
      $region15: #{transform_attention_forward.1} parent=11 // pred_region
        _
      $region16: #{transform_attention_forward.1} parent=11 // pred_fallthru
        _
      // Predicated region
      $region17: #{transform_attention_forward.1} parent=11 // pred_check
        %p186 = pneg %p119
      $region18: #{transform_attention_forward.1} parent=11 // pred_check_branch
        %188 = sbr.rel (%p186) target = $region20
      $region19: #{transform_attention_forward.1} parent=11 // pred_region
        _
      $region20: #{transform_attention_forward.1} parent=11 // pred_fallthru
        _
      // Predicated region
      $region21: #{transform_attention_forward.1} parent=11 // pred_check
        %p189 = pneg %p140
      $region22: #{transform_attention_forward.1} parent=11 // pred_check_branch
        %191 = sbr.rel (%p189) target = $region24
      $region23: #{transform_attention_forward.1} parent=11 // pred_region
        _
      $region24: #{transform_attention_forward.1} parent=11 // pred_fallthru
        _
    $region12: #{transform_attention_forward.1} parent=5 // pred_fallthru
      _
    %p192 = scmp.lt.s32.totalorder %s11, 2
    // Predicated region
    $region25: #{transform_attention_forward.1} parent=5 // pred_check
      %p193 = pneg %p192
    $region26: #{transform_attention_forward.1} parent=5 // pred_check_branch
      %195 = sbr.rel (%p193) target = $region28
    $region27: #{transform_attention_forward.1} parent=5 // pred_region
      // Predicated region
      $region29: #{transform_attention_forward.1} parent=27 // pred_check
        %p196 = pneg %p45
      $region30: #{transform_attention_forward.1} parent=27 // pred_check_branch
        %198 = sbr.rel (%p196) target = $region32
      $region31: #{transform_attention_forward.1} parent=27 // pred_region
        %p199 = scmp.lt.s32.totalorder %s18, 1
        %s200 = scalar_select %p199, %s18, 1
        %p201 = scmp.lt.s32.totalorder %s19, 0
        %s202 = scalar_select %p201, %s19, 0
        %s203 = smul.addr %s200, 32
        %s204 = sadd.s32 %s202, %s203
        %s205 = smul.addr %s204, 8
        %s206 = scalar_lea.vmem %s0, %s205
      $region32: #{transform_attention_forward.1} parent=27 // pred_fallthru
        _
      // Predicated region
      $region33: #{transform_attention_forward.1} parent=27 // pred_check
        %p207 = pneg %p71
      $region34: #{transform_attention_forward.1} parent=27 // pred_check_branch
        %209 = sbr.rel (%p207) target = $region36
      $region35: #{transform_attention_forward.1} parent=27 // pred_region
        %p210 = scmp.lt.s32.totalorder %s18, 1
        %s211 = scalar_select %p210, %s18, 1
        %s212 = smul.addr %s211, 12
        %s213 = smul.addr %s212, 8
        %s214 = scalar_lea.vmem %s1, %s213
      $region36: #{transform_attention_forward.1} parent=27 // pred_fallthru
        _
    $region28: #{transform_attention_forward.1} parent=5 // pred_fallthru
      _
    %p215 = scmp.le.s32.totalorder 1, %s11
    %p216 = scmp.lt.s32.totalorder %s11, 3
    %p217 = pnand %p215, %p216
    %p218 = pneg %p217
    // Predicated region
    $region37: #{transform_attention_forward.1} parent=5 // pred_check
      _
    $region38: #{transform_attention_forward.1} parent=5 // pred_check_branch
      %220 = sbr.rel (%p217) target = $region40
    $region39: #{transform_attention_forward.1} parent=5 // pred_region
      %s221 = ssub.s32 %s11, 1
      %p222 = scmp.lt.s32.totalorder %s20, 1
      %s223 = scalar_select %p222, %s20, 1
      %p224 = scmp.lt.s32.totalorder %s21, 0
      %s225 = scalar_select %p224, %s21, 0
      %s226 = smul.addr %s223, 32
      %s227 = sadd.s32 %s225, %s226
      %s228 = smul.addr %s227, 8
      %s229 = scalar_lea.vmem %s0, %s228
      %p230 = pneg %p51
      %p231 = pneg %p48
      %p232 = scmp.lt.s32.totalorder %s20, 1
      %s233 = scalar_select %p232, %s20, 1
      %s234 = smul.addr %s233, 12
      %s235 = smul.addr %s234, 8
      %s236 = scalar_lea.vmem %s1, %s235
      %p237 = pneg %p77
      %p238 = pneg %p74
      %p239 = pneg %p98
      %p240 = pneg %p95
      %p241 = pneg %p119
      %p242 = pneg %p116
      %p243 = pneg %p140
      %p244 = pneg %p137
      %p245 = pneg %p168
      %p246 = pneg %p165
      %p247 = scmp.lt.s32.totalorder %s20, 1
      %s248 = scalar_select %p247, %s20, 1
      %p249 = scmp.lt.s32.totalorder %s21, 0
      %s250 = scalar_select %p249, %s21, 0
      %s251 = smul.addr %s248, 32
      %s252 = sadd.s32 %s250, %s251
      %s253 = smul.addr %s252, 8
      %s254 = scalar_lea.vmem %s5, %s253
      %p255 = scmp.lt.s32.totalorder %s20, 1
      %s256 = scalar_select %p255, %s20, 1
      %p257 = scmp.lt.s32.totalorder %s21, 0
      %s258 = scalar_select %p257, %s21, 0
      %s259 = smul.addr %s256, 32
      %s260 = sadd.s32 %s258, %s259
      %s261 = smul.addr %s260, 8
      %s262 = scalar_lea.vmem %s0, %s261
      %p263 = scmp.lt.s32.totalorder %s20, 1
      %s264 = scalar_select %p263, %s20, 1
      %s265 = smul.addr %s264, 12
      %s266 = smul.addr %s265, 8
      %s267 = scalar_lea.vmem %s1, %s266
      %p268 = scmp.lt.s32.totalorder %s20, 1
      %s269 = scalar_select %p268, %s20, 1
      %p270 = scmp.lt.s32.totalorder %s21, 0
      %s271 = scalar_select %p270, %s21, 0
      %s272 = smul.addr %s269, 32
      %s273 = sadd.s32 %s271, %s272
      %s274 = smul.addr %s273, 8
      %s275 = scalar_lea.vmem %s5, %s274
      %v276 = vld [vmem:[%s267] sm:$0xff]
      %v277 = vld [vmem:[%s267 + $0x8] sm:$0xff]
      %v278 = vld [vmem:[%s267 + $0x10] sm:$0xff]
      %v279 = vld [vmem:[%s267 + $0x18] sm:$0xff]
      %v280 = vld [vmem:[%s267 + $0x20] sm:$0xff]
      %v281 = vld [vmem:[%s267 + $0x28] sm:$0xff]
      %v282 = vld [vmem:[%s267 + $0x30] sm:$0xff]
      %v283 = vld [vmem:[%s267 + $0x38] sm:$0xff]
      %v284 = vld [vmem:[%s267 + $0x40] sm:$0xff]
      %v285 = vld [vmem:[%s267 + $0x48] sm:$0xff]
      %v286 = vld [vmem:[%s267 + $0x50] sm:$0xff]
      %v287 = vld [vmem:[%s267 + $0x58] sm:$0xff]
      %v288 = vld [vmem:[%s2] sm:$0xff]
      %v289 = vld [vmem:[%s2 + $0x8] sm:$0xff]
      %v290 = vld [vmem:[%s2 + $0x10] sm:$0xff]
      %v291 = vld [vmem:[%s2 + $0x18] sm:$0xff]
      %v292 = vld [vmem:[%s2 + $0x20] sm:$0xff]
      %v293 = vld [vmem:[%s2 + $0x28] sm:$0xff]
      %v294 = vld [vmem:[%s2 + $0x30] sm:$0xff]
      %v295 = vld [vmem:[%s2 + $0x38] sm:$0xff]
      %v296 = vld [vmem:[%s2 + $0x40] sm:$0xff]
      %v297 = vld [vmem:[%s2 + $0x48] sm:$0xff]
      %v298 = vld [vmem:[%s2 + $0x50] sm:$0xff]
      %v299 = vld [vmem:[%s2 + $0x58] sm:$0xff]
      %v300 = vld [vmem:[%s262] sm:$0xff]
      %v301 = vld [vmem:[%s262 + $0x8] sm:$0xff]
      %v302 = vld [vmem:[%s262 + $0x10] sm:$0xff]
      %v303 = vld [vmem:[%s262 + $0x18] sm:$0xff]
      %305 = vset.pattern.permute.xlu0 0
      %306 = vperm.xlu0 %305, %v276
      %v307 = vpop.permute.xlu0 %306
      %310 = vset.pattern.permute.xlu0 0
      %311 = vperm.xlu0 %310, %v277
      %v312 = vpop.permute.xlu0 %311
      %315 = vset.pattern.permute.xlu0 0
      %316 = vperm.xlu0 %315, %v278
      %v317 = vpop.permute.xlu0 %316
      %320 = vset.pattern.permute.xlu0 0
      %321 = vperm.xlu0 %320, %v279
      %v322 = vpop.permute.xlu0 %321
      %325 = vset.pattern.permute.xlu0 0
      %326 = vperm.xlu0 %325, %v280
      %v327 = vpop.permute.xlu0 %326
      %330 = vset.pattern.permute.xlu0 0
      %331 = vperm.xlu0 %330, %v281
      %v332 = vpop.permute.xlu0 %331
      %335 = vset.pattern.permute.xlu0 0
      %336 = vperm.xlu0 %335, %v282
      %v337 = vpop.permute.xlu0 %336
      %340 = vset.pattern.permute.xlu0 0
      %341 = vperm.xlu0 %340, %v283
      %v342 = vpop.permute.xlu0 %341
      %345 = vset.pattern.permute.xlu0 0
      %346 = vperm.xlu0 %345, %v284
      %v347 = vpop.permute.xlu0 %346
      %350 = vset.pattern.permute.xlu0 0
      %351 = vperm.xlu0 %350, %v285
      %v352 = vpop.permute.xlu0 %351
      %355 = vset.pattern.permute.xlu0 0
      %356 = vperm.xlu0 %355, %v286
      %v357 = vpop.permute.xlu0 %356
      %360 = vset.pattern.permute.xlu0 0
      %361 = vperm.xlu0 %360, %v287
      %v362 = vpop.permute.xlu0 %361
      %vm364 = vcmask 261120
      %v366 = vsel %vm364, %v288, 0
      %v369 = vsel %vm364, %v289, 0
      %v372 = vsel %vm364, %v290, 0
      %v375 = vsel %vm364, %v291, 0
      %v378 = vsel %vm364, %v292, 0
      %v381 = vsel %vm364, %v293, 0
      %v384 = vsel %vm364, %v294, 0
      %v387 = vsel %vm364, %v295, 0
      %v390 = vsel %vm364, %v296, 0
      %v393 = vsel %vm364, %v297, 0
      %v396 = vsel %vm364, %v298, 0
      %v399 = vsel %vm364, %v299, 0
      %401 = vmatprep.subr.mxu0 0.0
      %402 = vmatpush1.msra.mxu0 %v300
      %403 = vmatprep.subr.mxu0 0.0
      %404 = vmatpush1.msra.mxu0 %v301
      %405 = vmatprep.subr.mxu0 0.0
      %406 = vmatpush1.msra.mxu0 %v302
      %407 = vmatprep.subr.mxu0 0.0
      %408 = vmatpush1.msra.mxu0 %v303
      %409 = vmatprep.subr.mxu0 0.0
      %410 = vmatpush1.msra.mxu0 0.0
      %411 = vmatprep.subr.mxu0 0.0
      %412 = vmatpush1.msra.mxu0 0.0
      %413 = vmatprep.subr.mxu0 0.0
      %414 = vmatpush1.msra.mxu0 0.0
      %415 = vmatprep.subr.mxu0 0.0
      %416 = vmatpush1.msra.mxu0 0.0
      %417 = vmatprep.subr.mxu0 0.0
      %418 = vmatpush1.msra.mxu0 0.0
      %419 = vmatprep.subr.mxu0 0.0
      %420 = vmatpush1.msra.mxu0 0.0
      %421 = vmatprep.subr.mxu0 0.0
      %422 = vmatpush1.msra.mxu0 0.0
      %423 = vmatprep.subr.mxu0 0.0
      %424 = vmatpush1.msra.mxu0 0.0
      %425 = vmatprep.subr.mxu0 0.0
      %426 = vmatpush1.msra.mxu0 0.0
      %427 = vmatprep.subr.mxu0 0.0
      %428 = vmatpush1.msra.mxu0 0.0
      %429 = vmatprep.subr.mxu0 0.0
      %430 = vmatpush1.msra.mxu0 0.0
      %431 = vmatprep.subr.mxu0 0.0
      %432 = vmatpush1.msra.mxu0 0.0
      %433 = vmatprep.subr.mxu0 0.0
      %434 = vmatpush1.msra.mxu0 0.0
      %435 = vmatprep.subr.mxu0 0.0
      %436 = vmatpush1.msra.mxu0 0.0
      %437 = vmatprep.subr.mxu0 0.0
      %438 = vmatpush1.msra.mxu0 0.0
      %439 = vmatprep.subr.mxu0 0.0
      %440 = vmatpush1.msra.mxu0 0.0
      %441 = vmatprep.subr.mxu0 0.0
      %442 = vmatpush1.msra.mxu0 0.0
      %443 = vmatprep.subr.mxu0 0.0
      %444 = vmatpush1.msra.mxu0 0.0
      %445 = vmatprep.subr.mxu0 0.0
      %446 = vmatpush1.msra.mxu0 0.0
      %447 = vmatprep.subr.mxu0 0.0
      %448 = vmatpush1.msra.mxu0 0.0
      %449 = vmatprep.subr.mxu0 0.0
      %450 = vmatpush1.msra.mxu0 0.0
      %451 = vmatprep.subr.mxu0 0.0
      %452 = vmatpush1.msra.mxu0 0.0
      %453 = vmatprep.subr.mxu0 0.0
      %454 = vmatpush1.msra.mxu0 0.0
      %455 = vmatprep.subr.mxu0 0.0
      %456 = vmatpush1.msra.mxu0 0.0
      %457 = vmatprep.subr.mxu0 0.0
      %458 = vmatpush1.msra.mxu0 0.0
      %459 = vmatprep.subr.mxu0 0.0
      %460 = vmatpush1.msra.mxu0 0.0
      %461 = vmatprep.subr.mxu0 0.0
      %462 = vmatpush1.msra.mxu0 0.0
      %463 = vmatprep.subr.mxu0 0.0
      %464 = vmatpush1.msra.mxu0 0.0
      %465 = vmatprep.mubr.f32.mxu0 0.0
      %466 = vmatmul.mubr.f32.gmra.mrb[0].mxu0 %v366
      %v467 = vpop.f32.mrb[0].mxu0
      %v468 = vadd.f32 %v307, %v467
      %v469 = vpop.f32.mrb[0].mxu0
      %470 = vmatprep.mubr.f32.mxu0 0.0
      %471 = vmatmul.mubr.f32.gmra.mrb[0].mxu0 %v369
      %v472 = vpop.f32.mrb[0].mxu0
      %v473 = vadd.f32 %v312, %v472
      %v474 = vpop.f32.mrb[0].mxu0
      %475 = vmatprep.mubr.f32.mxu0 0.0
      %476 = vmatmul.mubr.f32.gmra.mrb[0].mxu0 %v372
      %v477 = vpop.f32.mrb[0].mxu0
      %v478 = vadd.f32 %v317, %v477
      %v479 = vpop.f32.mrb[0].mxu0
      %480 = vmatprep.mubr.f32.mxu0 0.0
      %481 = vmatmul.mubr.f32.gmra.mrb[0].mxu0 %v375
      %v482 = vpop.f32.mrb[0].mxu0
      %v483 = vadd.f32 %v322, %v482
      %v484 = vpop.f32.mrb[0].mxu0
      %485 = vmatprep.mubr.f32.mxu0 0.0
      %486 = vmatmul.mubr.f32.gmra.mrb[0].mxu0 %v378
      %v487 = vpop.f32.mrb[0].mxu0
      %v488 = vadd.f32 %v327, %v487
      %v489 = vpop.f32.mrb[0].mxu0
      %490 = vmatprep.mubr.f32.mxu0 0.0
      %491 = vmatmul.mubr.f32.gmra.mrb[0].mxu0 %v381
      %v492 = vpop.f32.mrb[0].mxu0
      %v493 = vadd.f32 %v332, %v492
      %v494 = vpop.f32.mrb[0].mxu0
      %495 = vmatprep.mubr.f32.mxu0 0.0
      %496 = vmatmul.mubr.f32.gmra.mrb[0].mxu0 %v384
      %v497 = vpop.f32.mrb[0].mxu0
      %v498 = vadd.f32 %v337, %v497
      %v499 = vpop.f32.mrb[0].mxu0
      %500 = vmatprep.mubr.f32.mxu0 0.0
      %501 = vmatmul.mubr.f32.gmra.mrb[0].mxu0 %v387
      %v502 = vpop.f32.mrb[0].mxu0
      %v503 = vadd.f32 %v342, %v502
      %v504 = vpop.f32.mrb[0].mxu0
      %505 = vmatprep.mubr.f32.mxu0 0.0
      %506 = vmatmul.mubr.f32.gmra.mrb[0].mxu0 %v390
      %v507 = vpop.f32.mrb[0].mxu0
      %v508 = vadd.f32 %v347, %v507
      %v509 = vpop.f32.mrb[0].mxu0
      %510 = vmatprep.mubr.f32.mxu0 0.0
      %511 = vmatmul.mubr.f32.gmra.mrb[0].mxu0 %v393
      %v512 = vpop.f32.mrb[0].mxu0
      %v513 = vadd.f32 %v352, %v512
      %v514 = vpop.f32.mrb[0].mxu0
      %515 = vmatprep.mubr.f32.mxu0 0.0
      %516 = vmatmul.mubr.f32.gmra.mrb[0].mxu0 %v396
      %v517 = vpop.f32.mrb[0].mxu0
      %v518 = vadd.f32 %v357, %v517
      %v519 = vpop.f32.mrb[0].mxu0
      %520 = vmatprep.mubr.f32.mxu0 0.0
      %521 = vmatmul.mubr.f32.gmra.mrb[0].mxu0 %v399
      %v522 = vpop.f32.mrb[0].mxu0
      %v523 = vadd.f32 %v362, %v522
      %v524 = vpop.f32.mrb[0].mxu0
      %525 = vdwg.mxu0
      %v526 = vmax.f32 %v468, 0.0
      %v527 = vmax.f32 %v473, 0.0
      %v528 = vmax.f32 %v478, 0.0
      %v529 = vmax.f32 %v483, 0.0
      %v530 = vmax.f32 %v488, 0.0
      %v531 = vmax.f32 %v493, 0.0
      %v532 = vmax.f32 %v498, 0.0
      %v533 = vmax.f32 %v503, 0.0
      %v534 = vmax.f32 %v508, 0.0
      %v535 = vmax.f32 %v513, 0.0
      %v536 = vmax.f32 %v518, 0.0
      %v537 = vmax.f32 %v523, 0.0
      %538 = vst [vmem:[#allocation2] sm:$0xff] %v526
      %539 = vst [vmem:[#allocation2 + $0x8] sm:$0xff] %v527
      %540 = vst [vmem:[#allocation2 + $0x10] sm:$0xff] %v528
      %541 = vst [vmem:[#allocation2 + $0x18] sm:$0xff] %v529
      %542 = vst [vmem:[#allocation3] sm:$0xff] %v530
      %543 = vst [vmem:[#allocation3 + $0x8] sm:$0xff] %v531
      %544 = vst [vmem:[#allocation3 + $0x10] sm:$0xff] %v532
      %545 = vst [vmem:[#allocation3 + $0x18] sm:$0xff] %v533
      %546 = vst [vmem:[#allocation4] sm:$0xff] %v534
      %547 = vst [vmem:[#allocation4 + $0x8] sm:$0xff] %v535
      %548 = vst [vmem:[#allocation4 + $0x10] sm:$0xff] %v536
      %549 = vst [vmem:[#allocation4 + $0x18] sm:$0xff] %v537
      %s550 = scalar_lea.vmem %s262, 32
      %v551 = vld [vmem:[%s550] sm:$0xff]
      %v552 = vld [vmem:[%s550 + $0x8] sm:$0xff]
      %v553 = vld [vmem:[%s550 + $0x10] sm:$0xff]
      %v554 = vld [vmem:[%s550 + $0x18] sm:$0xff]
      %555 = vset.pattern.permute.xlu0 1
      %556 = vperm.xlu0 %555, %v276
      %v557 = vpop.permute.xlu0 %556
      %559 = vset.pattern.permute.xlu0 1
      %560 = vperm.xlu0 %559, %v277
      %v561 = vpop.permute.xlu0 %560
      %563 = vset.pattern.permute.xlu0 1
      %564 = vperm.xlu0 %563, %v278
      %v565 = vpop.permute.xlu0 %564
      %567 = vset.pattern.permute.xlu0 1
      %568 = vperm.xlu0 %567, %v279
      %v569 = vpop.permute.xlu0 %568
      %571 = vset.pattern.permute.xlu0 1
      %572 = vperm.xlu0 %571, %v280
      %v573 = vpop.permute.xlu0 %572
      %575 = vset.pattern.permute.xlu0 1
      %576 = vperm.xlu0 %575, %v281
      %v577 = vpop.permute.xlu0 %576
      %579 = vset.pattern.permute.xlu0 1
      %580 = vperm.xlu0 %579, %v282
      %v581 = vpop.permute.xlu0 %580
      %583 = vset.pattern.permute.xlu0 1
      %584 = vperm.xlu0 %583, %v283
      %v585 = vpop.permute.xlu0 %584
      %587 = vset.pattern.permute.xlu0 1
      %588 = vperm.xlu0 %587, %v284
      %v589 = vpop.permute.xlu0 %588
      %591 = vset.pattern.permute.xlu0 1
      %592 = vperm.xlu0 %591, %v285
      %v593 = vpop.permute.xlu0 %592
      %595 = vset.pattern.permute.xlu0 1
      %596 = vperm.xlu0 %595, %v286
      %v597 = vpop.permute.xlu0 %596
      %599 = vset.pattern.permute.xlu0 1
      %600 = vperm.xlu0 %599, %v287
      %v601 = vpop.permute.xlu0 %600
      %603 = vmatprep.subr.mxu0 0.0
      %604 = vmatpush1.msra.mxu0 %v551
      %605 = vmatprep.subr.mxu0 0.0
      %606 = vmatpush1.msra.mxu0 %v552
      %607 = vmatprep.subr.mxu0 0.0
      %608 = vmatpush1.msra.mxu0 %v553
      %609 = vmatprep.subr.mxu0 0.0
      %610 = vmatpush1.msra.mxu0 %v554
      %611 = vmatprep.subr.mxu0 0.0
      %612 = vmatpush1.msra.mxu0 0.0
      %613 = vmatprep.subr.mxu0 0.0
      %614 = vmatpush1.msra.mxu0 0.0
      %615 = vmatprep.subr.mxu0 0.0
      %616 = vmatpush1.msra.mxu0 0.0
      %617 = vmatprep.subr.mxu0 0.0
      %618 = vmatpush1.msra.mxu0 0.0
      %619 = vmatprep.subr.mxu0 0.0
      %620 = vmatpush1.msra.mxu0 0.0
      %621 = vmatprep.subr.mxu0 0.0
      %622 = vmatpush1.msra.mxu0 0.0
      %623 = vmatprep.subr.mxu0 0.0
      %624 = vmatpush1.msra.mxu0 0.0
      %625 = vmatprep.subr.mxu0 0.0
      %626 = vmatpush1.msra.mxu0 0.0
      %627 = vmatprep.subr.mxu0 0.0
      %628 = vmatpush1.msra.mxu0 0.0
      %629 = vmatprep.subr.mxu0 0.0
      %630 = vmatpush1.msra.mxu0 0.0
      %631 = vmatprep.subr.mxu0 0.0
      %632 = vmatpush1.msra.mxu0 0.0
      %633 = vmatprep.subr.mxu0 0.0
      %634 = vmatpush1.msra.mxu0 0.0
      %635 = vmatprep.subr.mxu0 0.0
      %636 = vmatpush1.msra.mxu0 0.0
      %637 = vmatprep.subr.mxu0 0.0
      %638 = vmatpush1.msra.mxu0 0.0
      %639 = vmatprep.subr.mxu0 0.0
      %640 = vmatpush1.msra.mxu0 0.0
      %641 = vmatprep.subr.mxu0 0.0
      %642 = vmatpush1.msra.mxu0 0.0
      %643 = vmatprep.subr.mxu0 0.0
      %644 = vmatpush1.msra.mxu0 0.0
      %645 = vmatprep.subr.mxu0 0.0
      %646 = vmatpush1.msra.mxu0 0.0
      %647 = vmatprep.subr.mxu0 0.0
      %648 = vmatpush1.msra.mxu0 0.0
      %649 = vmatprep.subr.mxu0 0.0
      %650 = vmatpush1.msra.mxu0 0.0
      %651 = vmatprep.subr.mxu0 0.0
      %652 = vmatpush1.msra.mxu0 0.0
      %653 = vmatprep.subr.mxu0 0.0
      %654 = vmatpush1.msra.mxu0 0.0
      %655 = vmatprep.subr.mxu0 0.0
      %656 = vmatpush1.msra.mxu0 0.0
      %657 = vmatprep.subr.mxu0 0.0
      %658 = vmatpush1.msra.mxu0 0.0
      %659 = vmatprep.subr.mxu0 0.0
      %660 = vmatpush1.msra.mxu0 0.0
      %661 = vmatprep.subr.mxu0 0.0
      %662 = vmatpush1.msra.mxu0 0.0
      %663 = vmatprep.subr.mxu0 0.0
      %664 = vmatpush1.msra.mxu0 0.0
      %665 = vmatprep.subr.mxu0 0.0
      %666 = vmatpush1.msra.mxu0 0.0
      %667 = vmatprep.mubr.f32.mxu0 0.0
      %668 = vmatmul.mubr.f32.gmra.mrb[0].mxu0 %v366
      %v669 = vpop.f32.mrb[0].mxu0
      %v670 = vadd.f32 %v557, %v669
      %v671 = vpop.f32.mrb[0].mxu0
      %672 = vmatprep.mubr.f32.mxu0 0.0
      %673 = vmatmul.mubr.f32.gmra.mrb[0].mxu0 %v369
      %v674 = vpop.f32.mrb[0].mxu0
      %v675 = vadd.f32 %v561, %v674
      %v676 = vpop.f32.mrb[0].mxu0
      %677 = vmatprep.mubr.f32.mxu0 0.0
      %678 = vmatmul.mubr.f32.gmra.mrb[0].mxu0 %v372
      %v679 = vpop.f32.mrb[0].mxu0
      %v680 = vadd.f32 %v565, %v679
      %v681 = vpop.f32.mrb[0].mxu0
      %682 = vmatprep.mubr.f32.mxu0 0.0
      %683 = vmatmul.mubr.f32.gmra.mrb[0].mxu0 %v375
      %v684 = vpop.f32.mrb[0].mxu0
      %v685 = vadd.f32 %v569, %v684
      %v686 = vpop.f32.mrb[0].mxu0
      %687 = vmatprep.mubr.f32.mxu0 0.0
      %688 = vmatmul.mubr.f32.gmra.mrb[0].mxu0 %v378
      %v689 = vpop.f32.mrb[0].mxu0
      %v690 = vadd.f32 %v573, %v689
      %v691 = vpop.f32.mrb[0].mxu0
      %692 = vmatprep.mubr.f32.mxu0 0.0
      %693 = vmatmul.mubr.f32.gmra.mrb[0].mxu0 %v381
      %v694 = vpop.f32.mrb[0].mxu0
      %v695 = vadd.f32 %v577, %v694
      %v696 = vpop.f32.mrb[0].mxu0
      %697 = vmatprep.mubr.f32.mxu0 0.0
      %698 = vmatmul.mubr.f32.gmra.mrb[0].mxu0 %v384
      %v699 = vpop.f32.mrb[0].mxu0
      %v700 = vadd.f32 %v581, %v699
      %v701 = vpop.f32.mrb[0].mxu0
      %702 = vmatprep.mubr.f32.mxu0 0.0
      %703 = vmatmul.mubr.f32.gmra.mrb[0].mxu0 %v387
      %v704 = vpop.f32.mrb[0].mxu0
      %v705 = vadd.f32 %v585, %v704
      %v706 = vpop.f32.mrb[0].mxu0
      %707 = vmatprep.mubr.f32.mxu0 0.0
      %708 = vmatmul.mubr.f32.gmra.mrb[0].mxu0 %v390
      %v709 = vpop.f32.mrb[0].mxu0
      %v710 = vadd.f32 %v589, %v709
      %v711 = vpop.f32.mrb[0].mxu0
      %712 = vmatprep.mubr.f32.mxu0 0.0
      %713 = vmatmul.mubr.f32.gmra.mrb[0].mxu0 %v393
      %v714 = vpop.f32.mrb[0].mxu0
      %v715 = vadd.f32 %v593, %v714
      %v716 = vpop.f32.mrb[0].mxu0
      %717 = vmatprep.mubr.f32.mxu0 0.0
      %718 = vmatmul.mubr.f32.gmra.mrb[0].mxu0 %v396
      %v719 = vpop.f32.mrb[0].mxu0
      %v720 = vadd.f32 %v597, %v719
      %v721 = vpop.f32.mrb[0].mxu0
      %722 = vmatprep.mubr.f32.mxu0 0.0
      %723 = vmatmul.mubr.f32.gmra.mrb[0].mxu0 %v399
      %v724 = vpop.f32.mrb[0].mxu0
      %v725 = vadd.f32 %v601, %v724
      %v726 = vpop.f32.mrb[0].mxu0
      %727 = vdwg.mxu0
      %v728 = vmax.f32 %v670, 0.0
      %v729 = vmax.f32 %v675, 0.0
      %v730 = vmax.f32 %v680, 0.0
      %v731 = vmax.f32 %v685, 0.0
      %v732 = vmax.f32 %v690, 0.0
      %v733 = vmax.f32 %v695, 0.0
      %v734 = vmax.f32 %v700, 0.0
      %v735 = vmax.f32 %v705, 0.0
      %v736 = vmax.f32 %v710, 0.0
      %v737 = vmax.f32 %v715, 0.0
      %v738 = vmax.f32 %v720, 0.0
      %v739 = vmax.f32 %v725, 0.0
      %s740 = scalar_lea.vmem [#allocation2], 32
      %741 = vst [vmem:[%s740] sm:$0xff] %v728
      %742 = vst [vmem:[%s740 + $0x8] sm:$0xff] %v729
      %743 = vst [vmem:[%s740 + $0x10] sm:$0xff] %v730
      %744 = vst [vmem:[%s740 + $0x18] sm:$0xff] %v731
      %s745 = scalar_lea.vmem [#allocation3], 32
      %746 = vst [vmem:[%s745] sm:$0xff] %v732
      %747 = vst [vmem:[%s745 + $0x8] sm:$0xff] %v733
      %748 = vst [vmem:[%s745 + $0x10] sm:$0xff] %v734
      %749 = vst [vmem:[%s745 + $0x18] sm:$0xff] %v735
      %s750 = scalar_lea.vmem [#allocation4], 32
      %751 = vst [vmem:[%s750] sm:$0xff] %v736
      %752 = vst [vmem:[%s750 + $0x8] sm:$0xff] %v737
      %753 = vst [vmem:[%s750 + $0x10] sm:$0xff] %v738
      %754 = vst [vmem:[%s750 + $0x18] sm:$0xff] %v739
      %s755 = scalar_lea.vmem %s262, 64
      %v756 = vld [vmem:[%s755] sm:$0xff]
      %v757 = vld [vmem:[%s755 + $0x8] sm:$0xff]
      %v758 = vld [vmem:[%s755 + $0x10] sm:$0xff]
      %v759 = vld [vmem:[%s755 + $0x18] sm:$0xff]
      %760 = vset.pattern.permute.xlu0 2
      %761 = vperm.xlu0 %760, %v276
      %v762 = vpop.permute.xlu0 %761
      %764 = vset.pattern.permute.xlu0 2
      %765 = vperm.xlu0 %764, %v277
      %v766 = vpop.permute.xlu0 %765
      %768 = vset.pattern.permute.xlu0 2
      %769 = vperm.xlu0 %768, %v278
      %v770 = vpop.permute.xlu0 %769
      %772 = vset.pattern.permute.xlu0 2
      %773 = vperm.xlu0 %772, %v279
      %v774 = vpop.permute.xlu0 %773
      %776 = vset.pattern.permute.xlu0 2
      %777 = vperm.xlu0 %776, %v280
      %v778 = vpop.permute.xlu0 %777
      %780 = vset.pattern.permute.xlu0 2
      %781 = vperm.xlu0 %780, %v281
      %v782 = vpop.permute.xlu0 %781
      %784 = vset.pattern.permute.xlu0 2
      %785 = vperm.xlu0 %784, %v282
      %v786 = vpop.permute.xlu0 %785
      %788 = vset.pattern.permute.xlu0 2
      %789 = vperm.xlu0 %788, %v283
      %v790 = vpop.permute.xlu0 %789
      %792 = vset.pattern.permute.xlu0 2
      %793 = vperm.xlu0 %792, %v284
      %v794 = vpop.permute.xlu0 %793
      %796 = vset.pattern.permute.xlu0 2
      %797 = vperm.xlu0 %796, %v285
      %v798 = vpop.permute.xlu0 %797
      %800 = vset.pattern.permute.xlu0 2
      %801 = vperm.xlu0 %800, %v286
      %v802 = vpop.permute.xlu0 %801
      %804 = vset.pattern.permute.xlu0 2
      %805 = vperm.xlu0 %804, %v287
      %v806 = vpop.permute.xlu0 %805
      %808 = vmatprep.subr.mxu0 0.0
      %809 = vmatpush1.msra.mxu0 %v756
      %810 = vmatprep.subr.mxu0 0.0
      %811 = vmatpush1.msra.mxu0 %v757
      %812 = vmatprep.subr.mxu0 0.0
      %813 = vmatpush1.msra.mxu0 %v758
      %814 = vmatprep.subr.mxu0 0.0
      %815 = vmatpush1.msra.mxu0 %v759
      %816 = vmatprep.subr.mxu0 0.0
      %817 = vmatpush1.msra.mxu0 0.0
      %818 = vmatprep.subr.mxu0 0.0
      %819 = vmatpush1.msra.mxu0 0.0
      %820 = vmatprep.subr.mxu0 0.0
      %821 = vmatpush1.msra.mxu0 0.0
      %822 = vmatprep.subr.mxu0 0.0
      %823 = vmatpush1.msra.mxu0 0.0
      %824 = vmatprep.subr.mxu0 0.0
      %825 = vmatpush1.msra.mxu0 0.0
      %826 = vmatprep.subr.mxu0 0.0
      %827 = vmatpush1.msra.mxu0 0.0
      %828 = vmatprep.subr.mxu0 0.0
      %829 = vmatpush1.msra.mxu0 0.0
      %830 = vmatprep.subr.mxu0 0.0
      %831 = vmatpush1.msra.mxu0 0.0
      %832 = vmatprep.subr.mxu0 0.0
      %833 = vmatpush1.msra.mxu0 0.0
      %834 = vmatprep.subr.mxu0 0.0
      %835 = vmatpush1.msra.mxu0 0.0
      %836 = vmatprep.subr.mxu0 0.0
      %837 = vmatpush1.msra.mxu0 0.0
      %838 = vmatprep.subr.mxu0 0.0
      %839 = vmatpush1.msra.mxu0 0.0
      %840 = vmatprep.subr.mxu0 0.0
      %841 = vmatpush1.msra.mxu0 0.0
      %842 = vmatprep.subr.mxu0 0.0
      %843 = vmatpush1.msra.mxu0 0.0
      %844 = vmatprep.subr.mxu0 0.0
      %845 = vmatpush1.msra.mxu0 0.0
      %846 = vmatprep.subr.mxu0 0.0
      %847 = vmatpush1.msra.mxu0 0.0
      %848 = vmatprep.subr.mxu0 0.0
      %849 = vmatpush1.msra.mxu0 0.0
      %850 = vmatprep.subr.mxu0 0.0
      %851 = vmatpush1.msra.mxu0 0.0
      %852 = vmatprep.subr.mxu0 0.0
      %853 = vmatpush1.msra.mxu0 0.0
      %854 = vmatprep.subr.mxu0 0.0
      %855 = vmatpush1.msra.mxu0 0.0
      %856 = vmatprep.subr.mxu0 0.0
      %857 = vmatpush1.msra.mxu0 0.0
      %858 = vmatprep.subr.mxu0 0.0
      %859 = vmatpush1.msra.mxu0 0.0
      %860 = vmatprep.subr.mxu0 0.0
      %861 = vmatpush1.msra.mxu0 0.0
      %862 = vmatprep.subr.mxu0 0.0
      %863 = vmatpush1.msra.mxu0 0.0
      %864 = vmatprep.subr.mxu0 0.0
      %865 = vmatpush1.msra.mxu0 0.0
      %866 = vmatprep.subr.mxu0 0.0
      %867 = vmatpush1.msra.mxu0 0.0
      %868 = vmatprep.subr.mxu0 0.0
      %869 = vmatpush1.msra.mxu0 0.0
      %870 = vmatprep.subr.mxu0 0.0
      %871 = vmatpush1.msra.mxu0 0.0
      %872 = vmatprep.mubr.f32.mxu0 0.0
      %873 = vmatmul.mubr.f32.gmra.mrb[0].mxu0 %v366
      %v874 = vpop.f32.mrb[0].mxu0
      %v875 = vadd.f32 %v762, %v874
      %v876 = vpop.f32.mrb[0].mxu0
      %877 = vmatprep.mubr.f32.mxu0 0.0
      %878 = vmatmul.mubr.f32.gmra.mrb[0].mxu0 %v369
      %v879 = vpop.f32.mrb[0].mxu0
      %v880 = vadd.f32 %v766, %v879
      %v881 = vpop.f32.mrb[0].mxu0
      %882 = vmatprep.mubr.f32.mxu0 0.0
      %883 = vmatmul.mubr.f32.gmra.mrb[0].mxu0 %v372
      %v884 = vpop.f32.mrb[0].mxu0
      %v885 = vadd.f32 %v770, %v884
      %v886 = vpop.f32.mrb[0].mxu0
      %887 = vmatprep.mubr.f32.mxu0 0.0
      %888 = vmatmul.mubr.f32.gmra.mrb[0].mxu0 %v375
      %v889 = vpop.f32.mrb[0].mxu0
      %v890 = vadd.f32 %v774, %v889
      %v891 = vpop.f32.mrb[0].mxu0
      %892 = vmatprep.mubr.f32.mxu0 0.0
      %893 = vmatmul.mubr.f32.gmra.mrb[0].mxu0 %v378
      %v894 = vpop.f32.mrb[0].mxu0
      %v895 = vadd.f32 %v778, %v894
      %v896 = vpop.f32.mrb[0].mxu0
      %897 = vmatprep.mubr.f32.mxu0 0.0
      %898 = vmatmul.mubr.f32.gmra.mrb[0].mxu0 %v381
      %v899 = vpop.f32.mrb[0].mxu0
      %v900 = vadd.f32 %v782, %v899
      %v901 = vpop.f32.mrb[0].mxu0
      %902 = vmatprep.mubr.f32.mxu0 0.0
      %903 = vmatmul.mubr.f32.gmra.mrb[0].mxu0 %v384
      %v904 = vpop.f32.mrb[0].mxu0
      %v905 = vadd.f32 %v786, %v904
      %v906 = vpop.f32.mrb[0].mxu0
      %907 = vmatprep.mubr.f32.mxu0 0.0
      %908 = vmatmul.mubr.f32.gmra.mrb[0].mxu0 %v387
      %v909 = vpop.f32.mrb[0].mxu0
      %v910 = vadd.f32 %v790, %v909
      %v911 = vpop.f32.mrb[0].mxu0
      %912 = vmatprep.mubr.f32.mxu0 0.0
      %913 = vmatmul.mubr.f32.gmra.mrb[0].mxu0 %v390
      %v914 = vpop.f32.mrb[0].mxu0
      %v915 = vadd.f32 %v794, %v914
      %v916 = vpop.f32.mrb[0].mxu0
      %917 = vmatprep.mubr.f32.mxu0 0.0
      %918 = vmatmul.mubr.f32.gmra.mrb[0].mxu0 %v393
      %v919 = vpop.f32.mrb[0].mxu0
      %v920 = vadd.f32 %v798, %v919
      %v921 = vpop.f32.mrb[0].mxu0
      %922 = vmatprep.mubr.f32.mxu0 0.0
      %923 = vmatmul.mubr.f32.gmra.mrb[0].mxu0 %v396
      %v924 = vpop.f32.mrb[0].mxu0
      %v925 = vadd.f32 %v802, %v924
      %v926 = vpop.f32.mrb[0].mxu0
      %927 = vmatprep.mubr.f32.mxu0 0.0
      %928 = vmatmul.mubr.f32.gmra.mrb[0].mxu0 %v399
      %v929 = vpop.f32.mrb[0].mxu0
      %v930 = vadd.f32 %v806, %v929
      %v931 = vpop.f32.mrb[0].mxu0
      %932 = vdwg.mxu0
      %v933 = vmax.f32 %v875, 0.0
      %v934 = vmax.f32 %v880, 0.0
      %v935 = vmax.f32 %v885, 0.0
      %v936 = vmax.f32 %v890, 0.0
      %v937 = vmax.f32 %v895, 0.0
      %v938 = vmax.f32 %v900, 0.0
      %v939 = vmax.f32 %v905, 0.0
      %v940 = vmax.f32 %v910, 0.0
      %v941 = vmax.f32 %v915, 0.0
      %v942 = vmax.f32 %v920, 0.0
      %v943 = vmax.f32 %v925, 0.0
      %v944 = vmax.f32 %v930, 0.0
      %s945 = scalar_lea.vmem [#allocation2], 64
      %946 = vst [vmem:[%s945] sm:$0xff] %v933
      %947 = vst [vmem:[%s945 + $0x8] sm:$0xff] %v934
      %948 = vst [vmem:[%s945 + $0x10] sm:$0xff] %v935
      %949 = vst [vmem:[%s945 + $0x18] sm:$0xff] %v936
      %s950 = scalar_lea.vmem [#allocation3], 64
      %951 = vst [vmem:[%s950] sm:$0xff] %v937
      %952 = vst [vmem:[%s950 + $0x8] sm:$0xff] %v938
      %953 = vst [vmem:[%s950 + $0x10] sm:$0xff] %v939
      %954 = vst [vmem:[%s950 + $0x18] sm:$0xff] %v940
      %s955 = scalar_lea.vmem [#allocation4], 64
      %956 = vst [vmem:[%s955] sm:$0xff] %v941
      %957 = vst [vmem:[%s955 + $0x8] sm:$0xff] %v942
      %958 = vst [vmem:[%s955 + $0x10] sm:$0xff] %v943
      %959 = vst [vmem:[%s955 + $0x18] sm:$0xff] %v944
      %s960 = scalar_lea.vmem %s262, 96
      %v961 = vld [vmem:[%s960] sm:$0xff]
      %v962 = vld [vmem:[%s960 + $0x8] sm:$0xff]
      %v963 = vld [vmem:[%s960 + $0x10] sm:$0xff]
      %v964 = vld [vmem:[%s960 + $0x18] sm:$0xff]
      %965 = vset.pattern.permute.xlu0 3
      %966 = vperm.xlu0 %965, %v276
      %v967 = vpop.permute.xlu0 %966
      %969 = vset.pattern.permute.xlu0 3
      %970 = vperm.xlu0 %969, %v277
      %v971 = vpop.permute.xlu0 %970
      %973 = vset.pattern.permute.xlu0 3
      %974 = vperm.xlu0 %973, %v278
      %v975 = vpop.permute.xlu0 %974
      %977 = vset.pattern.permute.xlu0 3
      %978 = vperm.xlu0 %977, %v279
      %v979 = vpop.permute.xlu0 %978
      %981 = vset.pattern.permute.xlu0 3
      %982 = vperm.xlu0 %981, %v280
      %v983 = vpop.permute.xlu0 %982
      %985 = vset.pattern.permute.xlu0 3
      %986 = vperm.xlu0 %985, %v281
      %v987 = vpop.permute.xlu0 %986
      %989 = vset.pattern.permute.xlu0 3
      %990 = vperm.xlu0 %989, %v282
      %v991 = vpop.permute.xlu0 %990
      %993 = vset.pattern.permute.xlu0 3
      %994 = vperm.xlu0 %993, %v283
      %v995 = vpop.permute.xlu0 %994
      %997 = vset.pattern.permute.xlu0 3
      %998 = vperm.xlu0 %997, %v284
      %v999 = vpop.permute.xlu0 %998
      %1001 = vset.pattern.permute.xlu0 3
      %1002 = vperm.xlu0 %1001, %v285
      %v1003 = vpop.permute.xlu0 %1002
      %1005 = vset.pattern.permute.xlu0 3
      %1006 = vperm.xlu0 %1005, %v286
      %v1007 = vpop.permute.xlu0 %1006
      %1009 = vset.pattern.permute.xlu0 3
      %1010 = vperm.xlu0 %1009, %v287
      %v1011 = vpop.permute.xlu0 %1010
      %1013 = vmatprep.subr.mxu0 0.0
      %1014 = vmatpush1.msra.mxu0 %v961
      %1015 = vmatprep.subr.mxu0 0.0
      %1016 = vmatpush1.msra.mxu0 %v962
      %1017 = vmatprep.subr.mxu0 0.0
      %1018 = vmatpush1.msra.mxu0 %v963
      %1019 = vmatprep.subr.mxu0 0.0
      %1020 = vmatpush1.msra.mxu0 %v964
      %1021 = vmatprep.subr.mxu0 0.0
      %1022 = vmatpush1.msra.mxu0 0.0
      %1023 = vmatprep.subr.mxu0 0.0
      %1024 = vmatpush1.msra.mxu0 0.0
      %1025 = vmatprep.subr.mxu0 0.0
      %1026 = vmatpush1.msra.mxu0 0.0
      %1027 = vmatprep.subr.mxu0 0.0
      %1028 = vmatpush1.msra.mxu0 0.0
      %1029 = vmatprep.subr.mxu0 0.0
      %1030 = vmatpush1.msra.mxu0 0.0
      %1031 = vmatprep.subr.mxu0 0.0
      %1032 = vmatpush1.msra.mxu0 0.0
      %1033 = vmatprep.subr.mxu0 0.0
      %1034 = vmatpush1.msra.mxu0 0.0
      %1035 = vmatprep.subr.mxu0 0.0
      %1036 = vmatpush1.msra.mxu0 0.0
      %1037 = vmatprep.subr.mxu0 0.0
      %1038 = vmatpush1.msra.mxu0 0.0
      %1039 = vmatprep.subr.mxu0 0.0
      %1040 = vmatpush1.msra.mxu0 0.0
      %1041 = vmatprep.subr.mxu0 0.0
      %1042 = vmatpush1.msra.mxu0 0.0
      %1043 = vmatprep.subr.mxu0 0.0
      %1044 = vmatpush1.msra.mxu0 0.0
      %1045 = vmatprep.subr.mxu0 0.0
      %1046 = vmatpush1.msra.mxu0 0.0
      %1047 = vmatprep.subr.mxu0 0.0
      %1048 = vmatpush1.msra.mxu0 0.0
      %1049 = vmatprep.subr.mxu0 0.0
      %1050 = vmatpush1.msra.mxu0 0.0
      %1051 = vmatprep.subr.mxu0 0.0
      %1052 = vmatpush1.msra.mxu0 0.0
      %1053 = vmatprep.subr.mxu0 0.0
      %1054 = vmatpush1.msra.mxu0 0.0
      %1055 = vmatprep.subr.mxu0 0.0
      %1056 = vmatpush1.msra.mxu0 0.0
      %1057 = vmatprep.subr.mxu0 0.0
      %1058 = vmatpush1.msra.mxu0 0.0
      %1059 = vmatprep.subr.mxu0 0.0
      %1060 = vmatpush1.msra.mxu0 0.0
      %1061 = vmatprep.subr.mxu0 0.0
      %1062 = vmatpush1.msra.mxu0 0.0
      %1063 = vmatprep.subr.mxu0 0.0
      %1064 = vmatpush1.msra.mxu0 0.0
      %1065 = vmatprep.subr.mxu0 0.0
      %1066 = vmatpush1.msra.mxu0 0.0
      %1067 = vmatprep.subr.mxu0 0.0
      %1068 = vmatpush1.msra.mxu0 0.0
      %1069 = vmatprep.subr.mxu0 0.0
      %1070 = vmatpush1.msra.mxu0 0.0
      %1071 = vmatprep.subr.mxu0 0.0
      %1072 = vmatpush1.msra.mxu0 0.0
      %1073 = vmatprep.subr.mxu0 0.0
      %1074 = vmatpush1.msra.mxu0 0.0
      %1075 = vmatprep.subr.mxu0 0.0
      %1076 = vmatpush1.msra.mxu0 0.0
      %1077 = vmatprep.mubr.f32.mxu0 0.0
      %1078 = vmatmul.mubr.f32.gmra.mrb[0].mxu0 %v366
      %v1079 = vpop.f32.mrb[0].mxu0
      %v1080 = vadd.f32 %v967, %v1079
      %v1081 = vpop.f32.mrb[0].mxu0
      %1082 = vmatprep.mubr.f32.mxu0 0.0
      %1083 = vmatmul.mubr.f32.gmra.mrb[0].mxu0 %v369
      %v1084 = vpop.f32.mrb[0].mxu0
      %v1085 = vadd.f32 %v971, %v1084
      %v1086 = vpop.f32.mrb[0].mxu0
      %1087 = vmatprep.mubr.f32.mxu0 0.0
      %1088 = vmatmul.mubr.f32.gmra.mrb[0].mxu0 %v372
      %v1089 = vpop.f32.mrb[0].mxu0
      %v1090 = vadd.f32 %v975, %v1089
      %v1091 = vpop.f32.mrb[0].mxu0
      %1092 = vmatprep.mubr.f32.mxu0 0.0
      %1093 = vmatmul.mubr.f32.gmra.mrb[0].mxu0 %v375
      %v1094 = vpop.f32.mrb[0].mxu0
      %v1095 = vadd.f32 %v979, %v1094
      %v1096 = vpop.f32.mrb[0].mxu0
      %1097 = vmatprep.mubr.f32.mxu0 0.0
      %1098 = vmatmul.mubr.f32.gmra.mrb[0].mxu0 %v378
      %v1099 = vpop.f32.mrb[0].mxu0
      %v1100 = vadd.f32 %v983, %v1099
      %v1101 = vpop.f32.mrb[0].mxu0
      %1102 = vmatprep.mubr.f32.mxu0 0.0
      %1103 = vmatmul.mubr.f32.gmra.mrb[0].mxu0 %v381
      %v1104 = vpop.f32.mrb[0].mxu0
      %v1105 = vadd.f32 %v987, %v1104
      %v1106 = vpop.f32.mrb[0].mxu0
      %1107 = vmatprep.mubr.f32.mxu0 0.0
      %1108 = vmatmul.mubr.f32.gmra.mrb[0].mxu0 %v384
      %v1109 = vpop.f32.mrb[0].mxu0
      %v1110 = vadd.f32 %v991, %v1109
      %v1111 = vpop.f32.mrb[0].mxu0
      %1112 = vmatprep.mubr.f32.mxu0 0.0
      %1113 = vmatmul.mubr.f32.gmra.mrb[0].mxu0 %v387
      %v1114 = vpop.f32.mrb[0].mxu0
      %v1115 = vadd.f32 %v995, %v1114
      %v1116 = vpop.f32.mrb[0].mxu0
      %1117 = vmatprep.mubr.f32.mxu0 0.0
      %1118 = vmatmul.mubr.f32.gmra.mrb[0].mxu0 %v390
      %v1119 = vpop.f32.mrb[0].mxu0
      %v1120 = vadd.f32 %v999, %v1119
      %v1121 = vpop.f32.mrb[0].mxu0
      %1122 = vmatprep.mubr.f32.mxu0 0.0
      %1123 = vmatmul.mubr.f32.gmra.mrb[0].mxu0 %v393
      %v1124 = vpop.f32.mrb[0].mxu0
      %v1125 = vadd.f32 %v1003, %v1124
      %v1126 = vpop.f32.mrb[0].mxu0
      %1127 = vmatprep.mubr.f32.mxu0 0.0
      %1128 = vmatmul.mubr.f32.gmra.mrb[0].mxu0 %v396
      %v1129 = vpop.f32.mrb[0].mxu0
      %v1130 = vadd.f32 %v1007, %v1129
      %v1131 = vpop.f32.mrb[0].mxu0
      %1132 = vmatprep.mubr.f32.mxu0 0.0
      %1133 = vmatmul.mubr.f32.gmra.mrb[0].mxu0 %v399
      %v1134 = vpop.f32.mrb[0].mxu0
      %v1135 = vadd.f32 %v1011, %v1134
      %v1136 = vpop.f32.mrb[0].mxu0
      %1137 = vdwg.mxu0
      %v1138 = vmax.f32 %v1080, 0.0
      %v1139 = vmax.f32 %v1085, 0.0
      %v1140 = vmax.f32 %v1090, 0.0
      %v1141 = vmax.f32 %v1095, 0.0
      %v1142 = vmax.f32 %v1100, 0.0
      %v1143 = vmax.f32 %v1105, 0.0
      %v1144 = vmax.f32 %v1110, 0.0
      %v1145 = vmax.f32 %v1115, 0.0
      %v1146 = vmax.f32 %v1120, 0.0
      %v1147 = vmax.f32 %v1125, 0.0
      %v1148 = vmax.f32 %v1130, 0.0
      %v1149 = vmax.f32 %v1135, 0.0
      %s1150 = scalar_lea.vmem [#allocation2], 96
      %1151 = vst [vmem:[%s1150] sm:$0xff] %v1138
      %1152 = vst [vmem:[%s1150 + $0x8] sm:$0xff] %v1139
      %1153 = vst [vmem:[%s1150 + $0x10] sm:$0xff] %v1140
      %1154 = vst [vmem:[%s1150 + $0x18] sm:$0xff] %v1141
      %s1155 = scalar_lea.vmem [#allocation3], 96
      %1156 = vst [vmem:[%s1155] sm:$0xff] %v1142
      %1157 = vst [vmem:[%s1155 + $0x8] sm:$0xff] %v1143
      %1158 = vst [vmem:[%s1155 + $0x10] sm:$0xff] %v1144
      %1159 = vst [vmem:[%s1155 + $0x18] sm:$0xff] %v1145
      %s1160 = scalar_lea.vmem [#allocation4], 96
      %1161 = vst [vmem:[%s1160] sm:$0xff] %v1146
      %1162 = vst [vmem:[%s1160 + $0x8] sm:$0xff] %v1147
      %1163 = vst [vmem:[%s1160 + $0x10] sm:$0xff] %v1148
      %1164 = vst [vmem:[%s1160 + $0x18] sm:$0xff] %v1149
      %s1165 = scalar_lea.vmem %s262, 128
      %v1166 = vld [vmem:[%s1165] sm:$0xff]
      %v1167 = vld [vmem:[%s1165 + $0x8] sm:$0xff]
      %v1168 = vld [vmem:[%s1165 + $0x10] sm:$0xff]
      %v1169 = vld [vmem:[%s1165 + $0x18] sm:$0xff]
      %1170 = vset.pattern.permute.xlu0 4
      %1171 = vperm.xlu0 %1170, %v276
      %v1172 = vpop.permute.xlu0 %1171
      %1174 = vset.pattern.permute.xlu0 4
      %1175 = vperm.xlu0 %1174, %v277
      %v1176 = vpop.permute.xlu0 %1175
      %1178 = vset.pattern.permute.xlu0 4
      %1179 = vperm.xlu0 %1178, %v278
      %v1180 = vpop.permute.xlu0 %1179
      %1182 = vset.pattern.permute.xlu0 4
      %1183 = vperm.xlu0 %1182, %v279
      %v1184 = vpop.permute.xlu0 %1183
      %1186 = vset.pattern.permute.xlu0 4
      %1187 = vperm.xlu0 %1186, %v280
      %v1188 = vpop.permute.xlu0 %1187
      %1190 = vset.pattern.permute.xlu0 4
      %1191 = vperm.xlu0 %1190, %v281
      %v1192 = vpop.permute.xlu0 %1191
      %1194 = vset.pattern.permute.xlu0 4
      %1195 = vperm.xlu0 %1194, %v282
      %v1196 = vpop.permute.xlu0 %1195
      %1198 = vset.pattern.permute.xlu0 4
      %1199 = vperm.xlu0 %1198, %v283
      %v1200 = vpop.permute.xlu0 %1199
      %1202 = vset.pattern.permute.xlu0 4
      %1203 = vperm.xlu0 %1202, %v284
      %v1204 = vpop.permute.xlu0 %1203
      %1206 = vset.pattern.permute.xlu0 4
      %1207 = vperm.xlu0 %1206, %v285
      %v1208 = vpop.permute.xlu0 %1207
      %1210 = vset.pattern.permute.xlu0 4
      %1211 = vperm.xlu0 %1210, %v286
      %v1212 = vpop.permute.xlu0 %1211
      %1214 = vset.pattern.permute.xlu0 4
      %1215 = vperm.xlu0 %1214, %v287
      %v1216 = vpop.permute.xlu0 %1215
      %1218 = vmatprep.subr.mxu0 0.0
      %1219 = vmatpush1.msra.mxu0 %v1166
      %1220 = vmatprep.subr.mxu0 0.0
      %1221 = vmatpush1.msra.mxu0 %v1167
      %1222 = vmatprep.subr.mxu0 0.0
      %1223 = vmatpush1.msra.mxu0 %v1168
      %1224 = vmatprep.subr.mxu0 0.0
      %1225 = vmatpush1.msra.mxu0 %v1169
      %1226 = vmatprep.subr.mxu0 0.0
      %1227 = vmatpush1.msra.mxu0 0.0
      %1228 = vmatprep.subr.mxu0 0.0
      %1229 = vmatpush1.msra.mxu0 0.0
      %1230 = vmatprep.subr.mxu0 0.0
      %1231 = vmatpush1.msra.mxu0 0.0
      %1232 = vmatprep.subr.mxu0 0.0
      %1233 = vmatpush1.msra.mxu0 0.0
      %1234 = vmatprep.subr.mxu0 0.0
      %1235 = vmatpush1.msra.mxu0 0.0
      %1236 = vmatprep.subr.mxu0 0.0
      %1237 = vmatpush1.msra.mxu0 0.0
      %1238 = vmatprep.subr.mxu0 0.0
      %1239 = vmatpush1.msra.mxu0 0.0
      %1240 = vmatprep.subr.mxu0 0.0
      %1241 = vmatpush1.msra.mxu0 0.0
      %1242 = vmatprep.subr.mxu0 0.0
      %1243 = vmatpush1.msra.mxu0 0.0
      %1244 = vmatprep.subr.mxu0 0.0
      %1245 = vmatpush1.msra.mxu0 0.0
      %1246 = vmatprep.subr.mxu0 0.0
      %1247 = vmatpush1.msra.mxu0 0.0
      %1248 = vmatprep.subr.mxu0 0.0
      %1249 = vmatpush1.msra.mxu0 0.0
      %1250 = vmatprep.subr.mxu0 0.0
      %1251 = vmatpush1.msra.mxu0 0.0
      %1252 = vmatprep.subr.mxu0 0.0
      %1253 = vmatpush1.msra.mxu0 0.0
      %1254 = vmatprep.subr.mxu0 0.0
      %1255 = vmatpush1.msra.mxu0 0.0
      %1256 = vmatprep.subr.mxu0 0.0
      %1257 = vmatpush1.msra.mxu0 0.0
      %1258 = vmatprep.subr.mxu0 0.0
      %1259 = vmatpush1.msra.mxu0 0.0
      %1260 = vmatprep.subr.mxu0 0.0
      %1261 = vmatpush1.msra.mxu0 0.0
      %1262 = vmatprep.subr.mxu0 0.0
      %1263 = vmatpush1.msra.mxu0 0.0
      %1264 = vmatprep.subr.mxu0 0.0
      %1265 = vmatpush1.msra.mxu0 0.0
      %1266 = vmatprep.subr.mxu0 0.0
      %1267 = vmatpush1.msra.mxu0 0.0
      %1268 = vmatprep.subr.mxu0 0.0
      %1269 = vmatpush1.msra.mxu0 0.0
      %1270 = vmatprep.subr.mxu0 0.0
      %1271 = vmatpush1.msra.mxu0 0.0
      %1272 = vmatprep.subr.mxu0 0.0
      %1273 = vmatpush1.msra.mxu0 0.0
      %1274 = vmatprep.subr.mxu0 0.0
      %1275 = vmatpush1.msra.mxu0 0.0
      %1276 = vmatprep.subr.mxu0 0.0
      %1277 = vmatpush1.msra.mxu0 0.0
      %1278 = vmatprep.subr.mxu0 0.0
      %1279 = vmatpush1.msra.mxu0 0.0
      %1280 = vmatprep.subr.mxu0 0.0
      %1281 = vmatpush1.msra.mxu0 0.0
      %1282 = vmatprep.mubr.f32.mxu0 0.0
      %1283 = vmatmul.mubr.f32.gmra.mrb[0].mxu0 %v366
      %v1284 = vpop.f32.mrb[0].mxu0
      %v1285 = vadd.f32 %v1172, %v1284
      %v1286 = vpop.f32.mrb[0].mxu0
      %1287 = vmatprep.mubr.f32.mxu0 0.0
      %1288 = vmatmul.mubr.f32.gmra.mrb[0].mxu0 %v369
      %v1289 = vpop.f32.mrb[0].mxu0
      %v1290 = vadd.f32 %v1176, %v1289
      %v1291 = vpop.f32.mrb[0].mxu0
      %1292 = vmatprep.mubr.f32.mxu0 0.0
      %1293 = vmatmul.mubr.f32.gmra.mrb[0].mxu0 %v372
      %v1294 = vpop.f32.mrb[0].mxu0
      %v1295 = vadd.f32 %v1180, %v1294
      %v1296 = vpop.f32.mrb[0].mxu0
      %1297 = vmatprep.mubr.f32.mxu0 0.0
      %1298 = vmatmul.mubr.f32.gmra.mrb[0].mxu0 %v375
      %v1299 = vpop.f32.mrb[0].mxu0
      %v1300 = vadd.f32 %v1184, %v1299
      %v1301 = vpop.f32.mrb[0].mxu0
      %1302 = vmatprep.mubr.f32.mxu0 0.0
      %1303 = vmatmul.mubr.f32.gmra.mrb[0].mxu0 %v378
      %v1304 = vpop.f32.mrb[0].mxu0
      %v1305 = vadd.f32 %v1188, %v1304
      %v1306 = vpop.f32.mrb[0].mxu0
      %1307 = vmatprep.mubr.f32.mxu0 0.0
      %1308 = vmatmul.mubr.f32.gmra.mrb[0].mxu0 %v381
      %v1309 = vpop.f32.mrb[0].mxu0
      %v1310 = vadd.f32 %v1192, %v1309
      %v1311 = vpop.f32.mrb[0].mxu0
      %1312 = vmatprep.mubr.f32.mxu0 0.0
      %1313 = vmatmul.mubr.f32.gmra.mrb[0].mxu0 %v384
      %v1314 = vpop.f32.mrb[0].mxu0
      %v1315 = vadd.f32 %v1196, %v1314
      %v1316 = vpop.f32.mrb[0].mxu0
      %1317 = vmatprep.mubr.f32.mxu0 0.0
      %1318 = vmatmul.mubr.f32.gmra.mrb[0].mxu0 %v387
      %v1319 = vpop.f32.mrb[0].mxu0
      %v1320 = vadd.f32 %v1200, %v1319
      %v1321 = vpop.f32.mrb[0].mxu0
      %1322 = vmatprep.mubr.f32.mxu0 0.0
      %1323 = vmatmul.mubr.f32.gmra.mrb[0].mxu0 %v390
      %v1324 = vpop.f32.mrb[0].mxu0
      %v1325 = vadd.f32 %v1204, %v1324
      %v1326 = vpop.f32.mrb[0].mxu0
      %1327 = vmatprep.mubr.f32.mxu0 0.0
      %1328 = vmatmul.mubr.f32.gmra.mrb[0].mxu0 %v393
      %v1329 = vpop.f32.mrb[0].mxu0
      %v1330 = vadd.f32 %v1208, %v1329
      %v1331 = vpop.f32.mrb[0].mxu0
      %1332 = vmatprep.mubr.f32.mxu0 0.0
      %1333 = vmatmul.mubr.f32.gmra.mrb[0].mxu0 %v396
      %v1334 = vpop.f32.mrb[0].mxu0
      %v1335 = vadd.f32 %v1212, %v1334
      %v1336 = vpop.f32.mrb[0].mxu0
      %1337 = vmatprep.mubr.f32.mxu0 0.0
      %1338 = vmatmul.mubr.f32.gmra.mrb[0].mxu0 %v399
      %v1339 = vpop.f32.mrb[0].mxu0
      %v1340 = vadd.f32 %v1216, %v1339
      %v1341 = vpop.f32.mrb[0].mxu0
      %1342 = vdwg.mxu0
      %v1343 = vmax.f32 %v1285, 0.0
      %v1344 = vmax.f32 %v1290, 0.0
      %v1345 = vmax.f32 %v1295, 0.0
      %v1346 = vmax.f32 %v1300, 0.0
      %v1347 = vmax.f32 %v1305, 0.0
      %v1348 = vmax.f32 %v1310, 0.0
      %v1349 = vmax.f32 %v1315, 0.0
      %v1350 = vmax.f32 %v1320, 0.0
      %v1351 = vmax.f32 %v1325, 0.0
      %v1352 = vmax.f32 %v1330, 0.0
      %v1353 = vmax.f32 %v1335, 0.0
      %v1354 = vmax.f32 %v1340, 0.0
      %s1355 = scalar_lea.vmem [#allocation2], 128
      %1356 = vst [vmem:[%s1355] sm:$0xff] %v1343
      %1357 = vst [vmem:[%s1355 + $0x8] sm:$0xff] %v1344
      %1358 = vst [vmem:[%s1355 + $0x10] sm:$0xff] %v1345
      %1359 = vst [vmem:[%s1355 + $0x18] sm:$0xff] %v1346
      %s1360 = scalar_lea.vmem [#allocation3], 128
      %1361 = vst [vmem:[%s1360] sm:$0xff] %v1347
      %1362 = vst [vmem:[%s1360 + $0x8] sm:$0xff] %v1348
      %1363 = vst [vmem:[%s1360 + $0x10] sm:$0xff] %v1349
      %1364 = vst [vmem:[%s1360 + $0x18] sm:$0xff] %v1350
      %s1365 = scalar_lea.vmem [#allocation4], 128
      %1366 = vst [vmem:[%s1365] sm:$0xff] %v1351
      %1367 = vst [vmem:[%s1365 + $0x8] sm:$0xff] %v1352
      %1368 = vst [vmem:[%s1365 + $0x10] sm:$0xff] %v1353
      %1369 = vst [vmem:[%s1365 + $0x18] sm:$0xff] %v1354
      %s1370 = scalar_lea.vmem %s262, 160
      %v1371 = vld [vmem:[%s1370] sm:$0xff]
      %v1372 = vld [vmem:[%s1370 + $0x8] sm:$0xff]
      %v1373 = vld [vmem:[%s1370 + $0x10] sm:$0xff]
      %v1374 = vld [vmem:[%s1370 + $0x18] sm:$0xff]
      %1375 = vset.pattern.permute.xlu0 5
      %1376 = vperm.xlu0 %1375, %v276
      %v1377 = vpop.permute.xlu0 %1376
      %1379 = vset.pattern.permute.xlu0 5
      %1380 = vperm.xlu0 %1379, %v277
      %v1381 = vpop.permute.xlu0 %1380
      %1383 = vset.pattern.permute.xlu0 5
      %1384 = vperm.xlu0 %1383, %v278
      %v1385 = vpop.permute.xlu0 %1384
      %1387 = vset.pattern.permute.xlu0 5
      %1388 = vperm.xlu0 %1387, %v279
      %v1389 = vpop.permute.xlu0 %1388
      %1391 = vset.pattern.permute.xlu0 5
      %1392 = vperm.xlu0 %1391, %v280
      %v1393 = vpop.permute.xlu0 %1392
      %1395 = vset.pattern.permute.xlu0 5
      %1396 = vperm.xlu0 %1395, %v281
      %v1397 = vpop.permute.xlu0 %1396
      %1399 = vset.pattern.permute.xlu0 5
      %1400 = vperm.xlu0 %1399, %v282
      %v1401 = vpop.permute.xlu0 %1400
      %1403 = vset.pattern.permute.xlu0 5
      %1404 = vperm.xlu0 %1403, %v283
      %v1405 = vpop.permute.xlu0 %1404
      %1407 = vset.pattern.permute.xlu0 5
      %1408 = vperm.xlu0 %1407, %v284
      %v1409 = vpop.permute.xlu0 %1408
      %1411 = vset.pattern.permute.xlu0 5
      %1412 = vperm.xlu0 %1411, %v285
      %v1413 = vpop.permute.xlu0 %1412
      %1415 = vset.pattern.permute.xlu0 5
      %1416 = vperm.xlu0 %1415, %v286
      %v1417 = vpop.permute.xlu0 %1416
      %1419 = vset.pattern.permute.xlu0 5
      %1420 = vperm.xlu0 %1419, %v287
      %v1421 = vpop.permute.xlu0 %1420
      %1423 = vmatprep.subr.mxu0 0.0
      %1424 = vmatpush1.msra.mxu0 %v1371
      %1425 = vmatprep.subr.mxu0 0.0
      %1426 = vmatpush1.msra.mxu0 %v1372
      %1427 = vmatprep.subr.mxu0 0.0
      %1428 = vmatpush1.msra.mxu0 %v1373
      %1429 = vmatprep.subr.mxu0 0.0
      %1430 = vmatpush1.msra.mxu0 %v1374
      %1431 = vmatprep.subr.mxu0 0.0
      %1432 = vmatpush1.msra.mxu0 0.0
      %1433 = vmatprep.subr.mxu0 0.0
      %1434 = vmatpush1.msra.mxu0 0.0
      %1435 = vmatprep.subr.mxu0 0.0
      %1436 = vmatpush1.msra.mxu0 0.0
      %1437 = vmatprep.subr.mxu0 0.0
      %1438 = vmatpush1.msra.mxu0 0.0
      %1439 = vmatprep.subr.mxu0 0.0
      %1440 = vmatpush1.msra.mxu0 0.0
      %1441 = vmatprep.subr.mxu0 0.0
      %1442 = vmatpush1.msra.mxu0 0.0
      %1443 = vmatprep.subr.mxu0 0.0
      %1444 = vmatpush1.msra.mxu0 0.0
      %1445 = vmatprep.subr.mxu0 0.0
      %1446 = vmatpush1.msra.mxu0 0.0
      %1447 = vmatprep.subr.mxu0 0.0
      %1448 = vmatpush1.msra.mxu0 0.0
      %1449 = vmatprep.subr.mxu0 0.0
      %1450 = vmatpush1.msra.mxu0 0.0
      %1451 = vmatprep.subr.mxu0 0.0
      %1452 = vmatpush1.msra.mxu0 0.0
      %1453 = vmatprep.subr.mxu0 0.0
      %1454 = vmatpush1.msra.mxu0 0.0
      %1455 = vmatprep.subr.mxu0 0.0
      %1456 = vmatpush1.msra.mxu0 0.0
      %1457 = vmatprep.subr.mxu0 0.0
      %1458 = vmatpush1.msra.mxu0 0.0
      %1459 = vmatprep.subr.mxu0 0.0
      %1460 = vmatpush1.msra.mxu0 0.0
      %1461 = vmatprep.subr.mxu0 0.0
      %1462 = vmatpush1.msra.mxu0 0.0
      %1463 = vmatprep.subr.mxu0 0.0
      %1464 = vmatpush1.msra.mxu0 0.0
      %1465 = vmatprep.subr.mxu0 0.0
      %1466 = vmatpush1.msra.mxu0 0.0
      %1467 = vmatprep.subr.mxu0 0.0
      %1468 = vmatpush1.msra.mxu0 0.0
      %1469 = vmatprep.subr.mxu0 0.0
      %1470 = vmatpush1.msra.mxu0 0.0
      %1471 = vmatprep.subr.mxu0 0.0
      %1472 = vmatpush1.msra.mxu0 0.0
      %1473 = vmatprep.subr.mxu0 0.0
      %1474 = vmatpush1.msra.mxu0 0.0
      %1475 = vmatprep.subr.mxu0 0.0
      %1476 = vmatpush1.msra.mxu0 0.0
      %1477 = vmatprep.subr.mxu0 0.0
      %1478 = vmatpush1.msra.mxu0 0.0
      %1479 = vmatprep.subr.mxu0 0.0
      %1480 = vmatpush1.msra.mxu0 0.0
      %1481 = vmatprep.subr.mxu0 0.0
      %1482 = vmatpush1.msra.mxu0 0.0
      %1483 = vmatprep.subr.mxu0 0.0
      %1484 = vmatpush1.msra.mxu0 0.0
      %1485 = vmatprep.subr.mxu0 0.0
      %1486 = vmatpush1.msra.mxu0 0.0
      %1487 = vmatprep.mubr.f32.mxu0 0.0
      %1488 = vmatmul.mubr.f32.gmra.mrb[0].mxu0 %v366
      %v1489 = vpop.f32.mrb[0].mxu0
      %v1490 = vadd.f32 %v1377, %v1489
      %v1491 = vpop.f32.mrb[0].mxu0
      %1492 = vmatprep.mubr.f32.mxu0 0.0
      %1493 = vmatmul.mubr.f32.gmra.mrb[0].mxu0 %v369
      %v1494 = vpop.f32.mrb[0].mxu0
      %v1495 = vadd.f32 %v1381, %v1494
      %v1496 = vpop.f32.mrb[0].mxu0
      %1497 = vmatprep.mubr.f32.mxu0 0.0
      %1498 = vmatmul.mubr.f32.gmra.mrb[0].mxu0 %v372
      %v1499 = vpop.f32.mrb[0].mxu0
      %v1500 = vadd.f32 %v1385, %v1499
      %v1501 = vpop.f32.mrb[0].mxu0
      %1502 = vmatprep.mubr.f32.mxu0 0.0
      %1503 = vmatmul.mubr.f32.gmra.mrb[0].mxu0 %v375
      %v1504 = vpop.f32.mrb[0].mxu0
      %v1505 = vadd.f32 %v1389, %v1504
      %v1506 = vpop.f32.mrb[0].mxu0
      %1507 = vmatprep.mubr.f32.mxu0 0.0
      %1508 = vmatmul.mubr.f32.gmra.mrb[0].mxu0 %v378
      %v1509 = vpop.f32.mrb[0].mxu0
      %v1510 = vadd.f32 %v1393, %v1509
      %v1511 = vpop.f32.mrb[0].mxu0
      %1512 = vmatprep.mubr.f32.mxu0 0.0
      %1513 = vmatmul.mubr.f32.gmra.mrb[0].mxu0 %v381
      %v1514 = vpop.f32.mrb[0].mxu0
      %v1515 = vadd.f32 %v1397, %v1514
      %v1516 = vpop.f32.mrb[0].mxu0
      %1517 = vmatprep.mubr.f32.mxu0 0.0
      %1518 = vmatmul.mubr.f32.gmra.mrb[0].mxu0 %v384
      %v1519 = vpop.f32.mrb[0].mxu0
      %v1520 = vadd.f32 %v1401, %v1519
      %v1521 = vpop.f32.mrb[0].mxu0
      %1522 = vmatprep.mubr.f32.mxu0 0.0
      %1523 = vmatmul.mubr.f32.gmra.mrb[0].mxu0 %v387
      %v1524 = vpop.f32.mrb[0].mxu0
      %v1525 = vadd.f32 %v1405, %v1524
      %v1526 = vpop.f32.mrb[0].mxu0
      %1527 = vmatprep.mubr.f32.mxu0 0.0
      %1528 = vmatmul.mubr.f32.gmra.mrb[0].mxu0 %v390
      %v1529 = vpop.f32.mrb[0].mxu0
      %v1530 = vadd.f32 %v1409, %v1529
      %v1531 = vpop.f32.mrb[0].mxu0
      %1532 = vmatprep.mubr.f32.mxu0 0.0
      %1533 = vmatmul.mubr.f32.gmra.mrb[0].mxu0 %v393
      %v1534 = vpop.f32.mrb[0].mxu0
      %v1535 = vadd.f32 %v1413, %v1534
      %v1536 = vpop.f32.mrb[0].mxu0
      %1537 = vmatprep.mubr.f32.mxu0 0.0
      %1538 = vmatmul.mubr.f32.gmra.mrb[0].mxu0 %v396
      %v1539 = vpop.f32.mrb[0].mxu0
      %v1540 = vadd.f32 %v1417, %v1539
      %v1541 = vpop.f32.mrb[0].mxu0
      %1542 = vmatprep.mubr.f32.mxu0 0.0
      %1543 = vmatmul.mubr.f32.gmra.mrb[0].mxu0 %v399
      %v1544 = vpop.f32.mrb[0].mxu0
      %v1545 = vadd.f32 %v1421, %v1544
      %v1546 = vpop.f32.mrb[0].mxu0
      %1547 = vdwg.mxu0
      %v1548 = vmax.f32 %v1490, 0.0
      %v1549 = vmax.f32 %v1495, 0.0
      %v1550 = vmax.f32 %v1500, 0.0
      %v1551 = vmax.f32 %v1505, 0.0
      %v1552 = vmax.f32 %v1510, 0.0
      %v1553 = vmax.f32 %v1515, 0.0
      %v1554 = vmax.f32 %v1520, 0.0
      %v1555 = vmax.f32 %v1525, 0.0
      %v1556 = vmax.f32 %v1530, 0.0
      %v1557 = vmax.f32 %v1535, 0.0
      %v1558 = vmax.f32 %v1540, 0.0
      %v1559 = vmax.f32 %v1545, 0.0
      %s1560 = scalar_lea.vmem [#allocation2], 160
      %1561 = vst [vmem:[%s1560] sm:$0xff] %v1548
      %1562 = vst [vmem:[%s1560 + $0x8] sm:$0xff] %v1549
      %1563 = vst [vmem:[%s1560 + $0x10] sm:$0xff] %v1550
      %1564 = vst [vmem:[%s1560 + $0x18] sm:$0xff] %v1551
      %s1565 = scalar_lea.vmem [#allocation3], 160
      %1566 = vst [vmem:[%s1565] sm:$0xff] %v1552
      %1567 = vst [vmem:[%s1565 + $0x8] sm:$0xff] %v1553
      %1568 = vst [vmem:[%s1565 + $0x10] sm:$0xff] %v1554
      %1569 = vst [vmem:[%s1565 + $0x18] sm:$0xff] %v1555
      %s1570 = scalar_lea.vmem [#allocation4], 160
      %1571 = vst [vmem:[%s1570] sm:$0xff] %v1556
      %1572 = vst [vmem:[%s1570 + $0x8] sm:$0xff] %v1557
      %1573 = vst [vmem:[%s1570 + $0x10] sm:$0xff] %v1558
      %1574 = vst [vmem:[%s1570 + $0x18] sm:$0xff] %v1559
      %s1575 = scalar_lea.vmem %s262, 192
      %v1576 = vld [vmem:[%s1575] sm:$0xff]
      %v1577 = vld [vmem:[%s1575 + $0x8] sm:$0xff]
      %v1578 = vld [vmem:[%s1575 + $0x10] sm:$0xff]
      %v1579 = vld [vmem:[%s1575 + $0x18] sm:$0xff]
      %1580 = vset.pattern.permute.xlu0 6
      %1581 = vperm.xlu0 %1580, %v276
      %v1582 = vpop.permute.xlu0 %1581
      %1584 = vset.pattern.permute.xlu0 6
      %1585 = vperm.xlu0 %1584, %v277
      %v1586 = vpop.permute.xlu0 %1585
      %1588 = vset.pattern.permute.xlu0 6
      %1589 = vperm.xlu0 %1588, %v278
      %v1590 = vpop.permute.xlu0 %1589
      %1592 = vset.pattern.permute.xlu0 6
      %1593 = vperm.xlu0 %1592, %v279
      %v1594 = vpop.permute.xlu0 %1593
      %1596 = vset.pattern.permute.xlu0 6
      %1597 = vperm.xlu0 %1596, %v280
      %v1598 = vpop.permute.xlu0 %1597
      %1600 = vset.pattern.permute.xlu0 6
      %1601 = vperm.xlu0 %1600, %v281
      %v1602 = vpop.permute.xlu0 %1601
      %1604 = vset.pattern.permute.xlu0 6
      %1605 = vperm.xlu0 %1604, %v282
      %v1606 = vpop.permute.xlu0 %1605
      %1608 = vset.pattern.permute.xlu0 6
      %1609 = vperm.xlu0 %1608, %v283
      %v1610 = vpop.permute.xlu0 %1609
      %1612 = vset.pattern.permute.xlu0 6
      %1613 = vperm.xlu0 %1612, %v284
      %v1614 = vpop.permute.xlu0 %1613
      %1616 = vset.pattern.permute.xlu0 6
      %1617 = vperm.xlu0 %1616, %v285
      %v1618 = vpop.permute.xlu0 %1617
      %1620 = vset.pattern.permute.xlu0 6
      %1621 = vperm.xlu0 %1620, %v286
      %v1622 = vpop.permute.xlu0 %1621
      %1624 = vset.pattern.permute.xlu0 6
      %1625 = vperm.xlu0 %1624, %v287
      %v1626 = vpop.permute.xlu0 %1625
      %1628 = vmatprep.subr.mxu0 0.0
      %1629 = vmatpush1.msra.mxu0 %v1576
      %1630 = vmatprep.subr.mxu0 0.0
      %1631 = vmatpush1.msra.mxu0 %v1577
      %1632 = vmatprep.subr.mxu0 0.0
      %1633 = vmatpush1.msra.mxu0 %v1578
      %1634 = vmatprep.subr.mxu0 0.0
      %1635 = vmatpush1.msra.mxu0 %v1579
      %1636 = vmatprep.subr.mxu0 0.0
      %1637 = vmatpush1.msra.mxu0 0.0
      %1638 = vmatprep.subr.mxu0 0.0
      %1639 = vmatpush1.msra.mxu0 0.0
      %1640 = vmatprep.subr.mxu0 0.0
      %1641 = vmatpush1.msra.mxu0 0.0
      %1642 = vmatprep.subr.mxu0 0.0
      %1643 = vmatpush1.msra.mxu0 0.0
      %1644 = vmatprep.subr.mxu0 0.0
      %1645 = vmatpush1.msra.mxu0 0.0
      %1646 = vmatprep.subr.mxu0 0.0
      %1647 = vmatpush1.msra.mxu0 0.0
      %1648 = vmatprep.subr.mxu0 0.0
      %1649 = vmatpush1.msra.mxu0 0.0
      %1650 = vmatprep.subr.mxu0 0.0
      %1651 = vmatpush1.msra.mxu0 0.0
      %1652 = vmatprep.subr.mxu0 0.0
      %1653 = vmatpush1.msra.mxu0 0.0
      %1654 = vmatprep.subr.mxu0 0.0
      %1655 = vmatpush1.msra.mxu0 0.0
      %1656 = vmatprep.subr.mxu0 0.0
      %1657 = vmatpush1.msra.mxu0 0.0
      %1658 = vmatprep.subr.mxu0 0.0
      %1659 = vmatpush1.msra.mxu0 0.0
      %1660 = vmatprep.subr.mxu0 0.0
      %1661 = vmatpush1.msra.mxu0 0.0
      %1662 = vmatprep.subr.mxu0 0.0
      %1663 = vmatpush1.msra.mxu0 0.0
      %1664 = vmatprep.subr.mxu0 0.0
      %1665 = vmatpush1.msra.mxu0 0.0
      %1666 = vmatprep.subr.mxu0 0.0
      %1667 = vmatpush1.msra.mxu0 0.0
      %1668 = vmatprep.subr.mxu0 0.0
      %1669 = vmatpush1.msra.mxu0 0.0
      %1670 = vmatprep.subr.mxu0 0.0
      %1671 = vmatpush1.msra.mxu0 0.0
      %1672 = vmatprep.subr.mxu0 0.0
      %1673 = vmatpush1.msra.mxu0 0.0
      %1674 = vmatprep.subr.mxu0 0.0
      %1675 = vmatpush1.msra.mxu0 0.0
      %1676 = vmatprep.subr.mxu0 0.0
      %1677 = vmatpush1.msra.mxu0 0.0
      %1678 = vmatprep.subr.mxu0 0.0
      %1679 = vmatpush1.msra.mxu0 0.0
      %1680 = vmatprep.subr.mxu0 0.0
      %1681 = vmatpush1.msra.mxu0 0.0
      %1682 = vmatprep.subr.mxu0 0.0
      %1683 = vmatpush1.msra.mxu0 0.0
      %1684 = vmatprep.subr.mxu0 0.0
      %1685 = vmatpush1.msra.mxu0 0.0
      %1686 = vmatprep.subr.mxu0 0.0
      %1687 = vmatpush1.msra.mxu0 0.0
      %1688 = vmatprep.subr.mxu0 0.0
      %1689 = vmatpush1.msra.mxu0 0.0
      %1690 = vmatprep.subr.mxu0 0.0
      %1691 = vmatpush1.msra.mxu0 0.0
      %1692 = vmatprep.mubr.f32.mxu0 0.0
      %1693 = vmatmul.mubr.f32.gmra.mrb[0].mxu0 %v366
      %v1694 = vpop.f32.mrb[0].mxu0
      %v1695 = vadd.f32 %v1582, %v1694
      %v1696 = vpop.f32.mrb[0].mxu0
      %1697 = vmatprep.mubr.f32.mxu0 0.0
      %1698 = vmatmul.mubr.f32.gmra.mrb[0].mxu0 %v369
      %v1699 = vpop.f32.mrb[0].mxu0
      %v1700 = vadd.f32 %v1586, %v1699
      %v1701 = vpop.f32.mrb[0].mxu0
      %1702 = vmatprep.mubr.f32.mxu0 0.0
      %1703 = vmatmul.mubr.f32.gmra.mrb[0].mxu0 %v372
      %v1704 = vpop.f32.mrb[0].mxu0
      %v1705 = vadd.f32 %v1590, %v1704
      %v1706 = vpop.f32.mrb[0].mxu0
      %1707 = vmatprep.mubr.f32.mxu0 0.0
      %1708 = vmatmul.mubr.f32.gmra.mrb[0].mxu0 %v375
      %v1709 = vpop.f32.mrb[0].mxu0
      %v1710 = vadd.f32 %v1594, %v1709
      %v1711 = vpop.f32.mrb[0].mxu0
      %1712 = vmatprep.mubr.f32.mxu0 0.0
      %1713 = vmatmul.mubr.f32.gmra.mrb[0].mxu0 %v378
      %v1714 = vpop.f32.mrb[0].mxu0
      %v1715 = vadd.f32 %v1598, %v1714
      %v1716 = vpop.f32.mrb[0].mxu0
      %1717 = vmatprep.mubr.f32.mxu0 0.0
      %1718 = vmatmul.mubr.f32.gmra.mrb[0].mxu0 %v381
      %v1719 = vpop.f32.mrb[0].mxu0
      %v1720 = vadd.f32 %v1602, %v1719
      %v1721 = vpop.f32.mrb[0].mxu0
      %1722 = vmatprep.mubr.f32.mxu0 0.0
      %1723 = vmatmul.mubr.f32.gmra.mrb[0].mxu0 %v384
      %v1724 = vpop.f32.mrb[0].mxu0
      %v1725 = vadd.f32 %v1606, %v1724
      %v1726 = vpop.f32.mrb[0].mxu0
      %1727 = vmatprep.mubr.f32.mxu0 0.0
      %1728 = vmatmul.mubr.f32.gmra.mrb[0].mxu0 %v387
      %v1729 = vpop.f32.mrb[0].mxu0
      %v1730 = vadd.f32 %v1610, %v1729
      %v1731 = vpop.f32.mrb[0].mxu0
      %1732 = vmatprep.mubr.f32.mxu0 0.0
      %1733 = vmatmul.mubr.f32.gmra.mrb[0].mxu0 %v390
      %v1734 = vpop.f32.mrb[0].mxu0
      %v1735 = vadd.f32 %v1614, %v1734
      %v1736 = vpop.f32.mrb[0].mxu0
      %1737 = vmatprep.mubr.f32.mxu0 0.0
      %1738 = vmatmul.mubr.f32.gmra.mrb[0].mxu0 %v393
      %v1739 = vpop.f32.mrb[0].mxu0
      %v1740 = vadd.f32 %v1618, %v1739
      %v1741 = vpop.f32.mrb[0].mxu0
      %1742 = vmatprep.mubr.f32.mxu0 0.0
      %1743 = vmatmul.mubr.f32.gmra.mrb[0].mxu0 %v396
      %v1744 = vpop.f32.mrb[0].mxu0
      %v1745 = vadd.f32 %v1622, %v1744
      %v1746 = vpop.f32.mrb[0].mxu0
      %1747 = vmatprep.mubr.f32.mxu0 0.0
      %1748 = vmatmul.mubr.f32.gmra.mrb[0].mxu0 %v399
      %v1749 = vpop.f32.mrb[0].mxu0
      %v1750 = vadd.f32 %v1626, %v1749
      %v1751 = vpop.f32.mrb[0].mxu0
      %1752 = vdwg.mxu0
      %v1753 = vmax.f32 %v1695, 0.0
      %v1754 = vmax.f32 %v1700, 0.0
      %v1755 = vmax.f32 %v1705, 0.0
      %v1756 = vmax.f32 %v1710, 0.0
      %v1757 = vmax.f32 %v1715, 0.0
      %v1758 = vmax.f32 %v1720, 0.0
      %v1759 = vmax.f32 %v1725, 0.0
      %v1760 = vmax.f32 %v1730, 0.0
      %v1761 = vmax.f32 %v1735, 0.0
      %v1762 = vmax.f32 %v1740, 0.0
      %v1763 = vmax.f32 %v1745, 0.0
      %v1764 = vmax.f32 %v1750, 0.0
      %s1765 = scalar_lea.vmem [#allocation2], 192
      %1766 = vst [vmem:[%s1765] sm:$0xff] %v1753
      %1767 = vst [vmem:[%s1765 + $0x8] sm:$0xff] %v1754
      %1768 = vst [vmem:[%s1765 + $0x10] sm:$0xff] %v1755
      %1769 = vst [vmem:[%s1765 + $0x18] sm:$0xff] %v1756
      %s1770 = scalar_lea.vmem [#allocation3], 192
      %1771 = vst [vmem:[%s1770] sm:$0xff] %v1757
      %1772 = vst [vmem:[%s1770 + $0x8] sm:$0xff] %v1758
      %1773 = vst [vmem:[%s1770 + $0x10] sm:$0xff] %v1759
      %1774 = vst [vmem:[%s1770 + $0x18] sm:$0xff] %v1760
      %s1775 = scalar_lea.vmem [#allocation4], 192
      %1776 = vst [vmem:[%s1775] sm:$0xff] %v1761
      %1777 = vst [vmem:[%s1775 + $0x8] sm:$0xff] %v1762
      %1778 = vst [vmem:[%s1775 + $0x10] sm:$0xff] %v1763
      %1779 = vst [vmem:[%s1775 + $0x18] sm:$0xff] %v1764
      %s1780 = scalar_lea.vmem %s262, 224
      %v1781 = vld [vmem:[%s1780] sm:$0xff]
      %v1782 = vld [vmem:[%s1780 + $0x8] sm:$0xff]
      %v1783 = vld [vmem:[%s1780 + $0x10] sm:$0xff]
      %v1784 = vld [vmem:[%s1780 + $0x18] sm:$0xff]
      %1785 = vset.pattern.permute.xlu0 7
      %1786 = vperm.xlu0 %1785, %v276
      %v1787 = vpop.permute.xlu0 %1786
      %1789 = vset.pattern.permute.xlu0 7
      %1790 = vperm.xlu0 %1789, %v277
      %v1791 = vpop.permute.xlu0 %1790
      %1793 = vset.pattern.permute.xlu0 7
      %1794 = vperm.xlu0 %1793, %v278
      %v1795 = vpop.permute.xlu0 %1794
      %1797 = vset.pattern.permute.xlu0 7
      %1798 = vperm.xlu0 %1797, %v279
      %v1799 = vpop.permute.xlu0 %1798
      %1801 = vset.pattern.permute.xlu0 7
      %1802 = vperm.xlu0 %1801, %v280
      %v1803 = vpop.permute.xlu0 %1802
      %1805 = vset.pattern.permute.xlu0 7
      %1806 = vperm.xlu0 %1805, %v281
      %v1807 = vpop.permute.xlu0 %1806
      %1809 = vset.pattern.permute.xlu0 7
      %1810 = vperm.xlu0 %1809, %v282
      %v1811 = vpop.permute.xlu0 %1810
      %1813 = vset.pattern.permute.xlu0 7
      %1814 = vperm.xlu0 %1813, %v283
      %v1815 = vpop.permute.xlu0 %1814
      %1817 = vset.pattern.permute.xlu0 7
      %1818 = vperm.xlu0 %1817, %v284
      %v1819 = vpop.permute.xlu0 %1818
      %1821 = vset.pattern.permute.xlu0 7
      %1822 = vperm.xlu0 %1821, %v285
      %v1823 = vpop.permute.xlu0 %1822
      %1825 = vset.pattern.permute.xlu0 7
      %1826 = vperm.xlu0 %1825, %v286
      %v1827 = vpop.permute.xlu0 %1826
      %1829 = vset.pattern.permute.xlu0 7
      %1830 = vperm.xlu0 %1829, %v287
      %v1831 = vpop.permute.xlu0 %1830
      %1833 = vmatprep.subr.mxu0 0.0
      %1834 = vmatpush1.msra.mxu0 %v1781
      %1835 = vmatprep.subr.mxu0 0.0
      %1836 = vmatpush1.msra.mxu0 %v1782
      %1837 = vmatprep.subr.mxu0 0.0
      %1838 = vmatpush1.msra.mxu0 %v1783
      %1839 = vmatprep.subr.mxu0 0.0
      %1840 = vmatpush1.msra.mxu0 %v1784
      %1841 = vmatprep.subr.mxu0 0.0
      %1842 = vmatpush1.msra.mxu0 0.0
      %1843 = vmatprep.subr.mxu0 0.0
      %1844 = vmatpush1.msra.mxu0 0.0
      %1845 = vmatprep.subr.mxu0 0.0
      %1846 = vmatpush1.msra.mxu0 0.0
      %1847 = vmatprep.subr.mxu0 0.0
      %1848 = vmatpush1.msra.mxu0 0.0
      %1849 = vmatprep.subr.mxu0 0.0
      %1850 = vmatpush1.msra.mxu0 0.0
      %1851 = vmatprep.subr.mxu0 0.0
      %1852 = vmatpush1.msra.mxu0 0.0
      %1853 = vmatprep.subr.mxu0 0.0
      %1854 = vmatpush1.msra.mxu0 0.0
      %1855 = vmatprep.subr.mxu0 0.0
      %1856 = vmatpush1.msra.mxu0 0.0
      %1857 = vmatprep.subr.mxu0 0.0
      %1858 = vmatpush1.msra.mxu0 0.0
      %1859 = vmatprep.subr.mxu0 0.0
      %1860 = vmatpush1.msra.mxu0 0.0
      %1861 = vmatprep.subr.mxu0 0.0
      %1862 = vmatpush1.msra.mxu0 0.0
      %1863 = vmatprep.subr.mxu0 0.0
      %1864 = vmatpush1.msra.mxu0 0.0
      %1865 = vmatprep.subr.mxu0 0.0
      %1866 = vmatpush1.msra.mxu0 0.0
      %1867 = vmatprep.subr.mxu0 0.0
      %1868 = vmatpush1.msra.mxu0 0.0
      %1869 = vmatprep.subr.mxu0 0.0
      %1870 = vmatpush1.msra.mxu0 0.0
      %1871 = vmatprep.subr.mxu0 0.0
      %1872 = vmatpush1.msra.mxu0 0.0
      %1873 = vmatprep.subr.mxu0 0.0
      %1874 = vmatpush1.msra.mxu0 0.0
      %1875 = vmatprep.subr.mxu0 0.0
      %1876 = vmatpush1.msra.mxu0 0.0
      %1877 = vmatprep.subr.mxu0 0.0
      %1878 = vmatpush1.msra.mxu0 0.0
      %1879 = vmatprep.subr.mxu0 0.0
      %1880 = vmatpush1.msra.mxu0 0.0
      %1881 = vmatprep.subr.mxu0 0.0
      %1882 = vmatpush1.msra.mxu0 0.0
      %1883 = vmatprep.subr.mxu0 0.0
      %1884 = vmatpush1.msra.mxu0 0.0
      %1885 = vmatprep.subr.mxu0 0.0
      %1886 = vmatpush1.msra.mxu0 0.0
      %1887 = vmatprep.subr.mxu0 0.0
      %1888 = vmatpush1.msra.mxu0 0.0
      %1889 = vmatprep.subr.mxu0 0.0
      %1890 = vmatpush1.msra.mxu0 0.0
      %1891 = vmatprep.subr.mxu0 0.0
      %1892 = vmatpush1.msra.mxu0 0.0
      %1893 = vmatprep.subr.mxu0 0.0
      %1894 = vmatpush1.msra.mxu0 0.0
      %1895 = vmatprep.subr.mxu0 0.0
      %1896 = vmatpush1.msra.mxu0 0.0
      %1897 = vmatprep.mubr.f32.mxu0 0.0
      %1898 = vmatmul.mubr.f32.gmra.mrb[0].mxu0 %v366
      %v1899 = vpop.f32.mrb[0].mxu0
      %v1900 = vadd.f32 %v1787, %v1899
      %v1901 = vpop.f32.mrb[0].mxu0
      %1902 = vmatprep.mubr.f32.mxu0 0.0
      %1903 = vmatmul.mubr.f32.gmra.mrb[0].mxu0 %v369
      %v1904 = vpop.f32.mrb[0].mxu0
      %v1905 = vadd.f32 %v1791, %v1904
      %v1906 = vpop.f32.mrb[0].mxu0
      %1907 = vmatprep.mubr.f32.mxu0 0.0
      %1908 = vmatmul.mubr.f32.gmra.mrb[0].mxu0 %v372
      %v1909 = vpop.f32.mrb[0].mxu0
      %v1910 = vadd.f32 %v1795, %v1909
      %v1911 = vpop.f32.mrb[0].mxu0
      %1912 = vmatprep.mubr.f32.mxu0 0.0
      %1913 = vmatmul.mubr.f32.gmra.mrb[0].mxu0 %v375
      %v1914 = vpop.f32.mrb[0].mxu0
      %v1915 = vadd.f32 %v1799, %v1914
      %v1916 = vpop.f32.mrb[0].mxu0
      %1917 = vmatprep.mubr.f32.mxu0 0.0
      %1918 = vmatmul.mubr.f32.gmra.mrb[0].mxu0 %v378
      %v1919 = vpop.f32.mrb[0].mxu0
      %v1920 = vadd.f32 %v1803, %v1919
      %v1921 = vpop.f32.mrb[0].mxu0
      %1922 = vmatprep.mubr.f32.mxu0 0.0
      %1923 = vmatmul.mubr.f32.gmra.mrb[0].mxu0 %v381
      %v1924 = vpop.f32.mrb[0].mxu0
      %v1925 = vadd.f32 %v1807, %v1924
      %v1926 = vpop.f32.mrb[0].mxu0
      %1927 = vmatprep.mubr.f32.mxu0 0.0
      %1928 = vmatmul.mubr.f32.gmra.mrb[0].mxu0 %v384
      %v1929 = vpop.f32.mrb[0].mxu0
      %v1930 = vadd.f32 %v1811, %v1929
      %v1931 = vpop.f32.mrb[0].mxu0
      %1932 = vmatprep.mubr.f32.mxu0 0.0
      %1933 = vmatmul.mubr.f32.gmra.mrb[0].mxu0 %v387
      %v1934 = vpop.f32.mrb[0].mxu0
      %v1935 = vadd.f32 %v1815, %v1934
      %v1936 = vpop.f32.mrb[0].mxu0
      %1937 = vmatprep.mubr.f32.mxu0 0.0
      %1938 = vmatmul.mubr.f32.gmra.mrb[0].mxu0 %v390
      %v1939 = vpop.f32.mrb[0].mxu0
      %v1940 = vadd.f32 %v1819, %v1939
      %v1941 = vpop.f32.mrb[0].mxu0
      %1942 = vmatprep.mubr.f32.mxu0 0.0
      %1943 = vmatmul.mubr.f32.gmra.mrb[0].mxu0 %v393
      %v1944 = vpop.f32.mrb[0].mxu0
      %v1945 = vadd.f32 %v1823, %v1944
      %v1946 = vpop.f32.mrb[0].mxu0
      %1947 = vmatprep.mubr.f32.mxu0 0.0
      %1948 = vmatmul.mubr.f32.gmra.mrb[0].mxu0 %v396
      %v1949 = vpop.f32.mrb[0].mxu0
      %v1950 = vadd.f32 %v1827, %v1949
      %v1951 = vpop.f32.mrb[0].mxu0
      %1952 = vmatprep.mubr.f32.mxu0 0.0
      %1953 = vmatmul.mubr.f32.gmra.mrb[0].mxu0 %v399
      %v1954 = vpop.f32.mrb[0].mxu0
      %v1955 = vadd.f32 %v1831, %v1954
      %v1956 = vpop.f32.mrb[0].mxu0
      %1957 = vdwg.mxu0
      %v1958 = vmax.f32 %v1900, 0.0
      %v1959 = vmax.f32 %v1905, 0.0
      %v1960 = vmax.f32 %v1910, 0.0
      %v1961 = vmax.f32 %v1915, 0.0
      %v1962 = vmax.f32 %v1920, 0.0
      %v1963 = vmax.f32 %v1925, 0.0
      %v1964 = vmax.f32 %v1930, 0.0
      %v1965 = vmax.f32 %v1935, 0.0
      %v1966 = vmax.f32 %v1940, 0.0
      %v1967 = vmax.f32 %v1945, 0.0
      %v1968 = vmax.f32 %v1950, 0.0
      %v1969 = vmax.f32 %v1955, 0.0
      %s1970 = scalar_lea.vmem [#allocation2], 224
      %1971 = vst [vmem:[%s1970] sm:$0xff] %v1958
      %1972 = vst [vmem:[%s1970 + $0x8] sm:$0xff] %v1959
      %1973 = vst [vmem:[%s1970 + $0x10] sm:$0xff] %v1960
      %1974 = vst [vmem:[%s1970 + $0x18] sm:$0xff] %v1961
      %s1975 = scalar_lea.vmem [#allocation3], 224
      %1976 = vst [vmem:[%s1975] sm:$0xff] %v1962
      %1977 = vst [vmem:[%s1975 + $0x8] sm:$0xff] %v1963
      %1978 = vst [vmem:[%s1975 + $0x10] sm:$0xff] %v1964
      %1979 = vst [vmem:[%s1975 + $0x18] sm:$0xff] %v1965
      %s1980 = scalar_lea.vmem [#allocation4], 224
      %1981 = vst [vmem:[%s1980] sm:$0xff] %v1966
      %1982 = vst [vmem:[%s1980 + $0x8] sm:$0xff] %v1967
      %1983 = vst [vmem:[%s1980 + $0x10] sm:$0xff] %v1968
      %1984 = vst [vmem:[%s1980 + $0x18] sm:$0xff] %v1969
      %v1985 = vld [vmem:[#allocation2] sm:$0xff]
      %v1986 = vld [vmem:[#allocation2 + $0x8] sm:$0xff]
      %v1987 = vld [vmem:[#allocation2 + $0x10] sm:$0xff]
      %v1988 = vld [vmem:[#allocation2 + $0x18] sm:$0xff]
      %v1989 = vld [vmem:[#allocation2 + $0x20] sm:$0xff]
      %v1990 = vld [vmem:[#allocation2 + $0x28] sm:$0xff]
      %v1991 = vld [vmem:[#allocation2 + $0x30] sm:$0xff]
      %v1992 = vld [vmem:[#allocation2 + $0x38] sm:$0xff]
      %v1993 = vld [vmem:[#allocation2 + $0x40] sm:$0xff]
      %v1994 = vld [vmem:[#allocation2 + $0x48] sm:$0xff]
      %v1995 = vld [vmem:[#allocation2 + $0x50] sm:$0xff]
      %v1996 = vld [vmem:[#allocation2 + $0x58] sm:$0xff]
      %v1997 = vld [vmem:[#allocation2 + $0x60] sm:$0xff]
      %v1998 = vld [vmem:[#allocation2 + $0x68] sm:$0xff]
      %v1999 = vld [vmem:[#allocation2 + $0x70] sm:$0xff]
      %v2000 = vld [vmem:[#allocation2 + $0x78] sm:$0xff]
      %v2001 = vld [vmem:[#allocation2 + $0x80] sm:$0xff]
      %v2002 = vld [vmem:[#allocation2 + $0x88] sm:$0xff]
      %v2003 = vld [vmem:[#allocation2 + $0x90] sm:$0xff]
      %v2004 = vld [vmem:[#allocation2 + $0x98] sm:$0xff]
      %v2005 = vld [vmem:[#allocation2 + $0xa0] sm:$0xff]
      %v2006 = vld [vmem:[#allocation2 + $0xa8] sm:$0xff]
      %v2007 = vld [vmem:[#allocation2 + $0xb0] sm:$0xff]
      %v2008 = vld [vmem:[#allocation2 + $0xb8] sm:$0xff]
      %v2009 = vld [vmem:[#allocation2 + $0xc0] sm:$0xff]
      %v2010 = vld [vmem:[#allocation2 + $0xc8] sm:$0xff]
      %v2011 = vld [vmem:[#allocation2 + $0xd0] sm:$0xff]
      %v2012 = vld [vmem:[#allocation2 + $0xd8] sm:$0xff]
      %v2013 = vld [vmem:[#allocation2 + $0xe0] sm:$0xff]
      %v2014 = vld [vmem:[#allocation2 + $0xe8] sm:$0xff]
      %v2015 = vld [vmem:[#allocation2 + $0xf0] sm:$0xff]
      %v2016 = vld [vmem:[#allocation2 + $0xf8] sm:$0xff]
      %v2017 = vld [vmem:[#allocation3] sm:$0xff]
      %v2018 = vld [vmem:[#allocation3 + $0x8] sm:$0xff]
      %v2019 = vld [vmem:[#allocation3 + $0x10] sm:$0xff]
      %v2020 = vld [vmem:[#allocation3 + $0x18] sm:$0xff]
      %v2021 = vld [vmem:[#allocation4] sm:$0xff]
      %v2022 = vld [vmem:[#allocation4 + $0x8] sm:$0xff]
      %v2023 = vld [vmem:[#allocation4 + $0x10] sm:$0xff]
      %v2024 = vld [vmem:[#allocation4 + $0x18] sm:$0xff]
      %v2025 = vmul.f32 %v1985, %v2017
      %v2026 = vmul.f32 %v1989, %v2017
      %v2027 = vmul.f32 %v1993, %v2017
      %v2028 = vmul.f32 %v1997, %v2017
      %v2029 = vmul.f32 %v2001, %v2017
      %v2030 = vmul.f32 %v2005, %v2017
      %v2031 = vmul.f32 %v2009, %v2017
      %v2032 = vmul.f32 %v2013, %v2017
      %v2033 = vmul.f32 %v1986, %v2018
      %v2034 = vmul.f32 %v1990, %v2018
      %v2035 = vmul.f32 %v1994, %v2018
      %v2036 = vmul.f32 %v1998, %v2018
      %v2037 = vmul.f32 %v2002, %v2018
      %v2038 = vmul.f32 %v2006, %v2018
      %v2039 = vmul.f32 %v2010, %v2018
      %v2040 = vmul.f32 %v2014, %v2018
      %v2041 = vadd.f32 %v2025, %v2033
      %v2042 = vadd.f32 %v2026, %v2034
      %v2043 = vadd.f32 %v2027, %v2035
      %v2044 = vadd.f32 %v2028, %v2036
      %v2045 = vadd.f32 %v2029, %v2037
      %v2046 = vadd.f32 %v2030, %v2038
      %v2047 = vadd.f32 %v2031, %v2039
      %v2048 = vadd.f32 %v2032, %v2040
      %v2049 = vmul.f32 %v1987, %v2019
      %v2050 = vmul.f32 %v1991, %v2019
      %v2051 = vmul.f32 %v1995, %v2019
      %v2052 = vmul.f32 %v1999, %v2019
      %v2053 = vmul.f32 %v2003, %v2019
      %v2054 = vmul.f32 %v2007, %v2019
      %v2055 = vmul.f32 %v2011, %v2019
      %v2056 = vmul.f32 %v2015, %v2019
      %v2057 = vadd.f32 %v2041, %v2049
      %v2058 = vadd.f32 %v2042, %v2050
      %v2059 = vadd.f32 %v2043, %v2051
      %v2060 = vadd.f32 %v2044, %v2052
      %v2061 = vadd.f32 %v2045, %v2053
      %v2062 = vadd.f32 %v2046, %v2054
      %v2063 = vadd.f32 %v2047, %v2055
      %v2064 = vadd.f32 %v2048, %v2056
      %v2065 = vmul.f32 %v1988, %v2020
      %v2066 = vmul.f32 %v1992, %v2020
      %v2067 = vmul.f32 %v1996, %v2020
      %v2068 = vmul.f32 %v2000, %v2020
      %v2069 = vmul.f32 %v2004, %v2020
      %v2070 = vmul.f32 %v2008, %v2020
      %v2071 = vmul.f32 %v2012, %v2020
      %v2072 = vmul.f32 %v2016, %v2020
      %v2073 = vadd.f32 %v2057, %v2065
      %v2074 = vadd.f32 %v2058, %v2066
      %v2075 = vadd.f32 %v2059, %v2067
      %v2076 = vadd.f32 %v2060, %v2068
      %v2077 = vadd.f32 %v2061, %v2069
      %v2078 = vadd.f32 %v2062, %v2070
      %v2079 = vadd.f32 %v2063, %v2071
      %v2080 = vadd.f32 %v2064, %v2072
      %v2081 = vmax.f32 %v2073, %v2077
      %v2082 = vmax.f32 %v2074, %v2078
      %v2083 = vmax.f32 %v2075, %v2079
      %v2084 = vmax.f32 %v2076, %v2080
      %v2085 = vmax.f32 %v2081, %v2082
      %v2086 = vmax.f32 %v2083, %v2084
      %v2087 = vmax.f32 %v2085, %v2086
      %v2088 = vsub.f32 %v2073, %v2087
      %v2089 = vsub.f32 %v2074, %v2087
      %v2090 = vsub.f32 %v2075, %v2087
      %v2091 = vsub.f32 %v2076, %v2087
      %v2092 = vsub.f32 %v2077, %v2087
      %v2093 = vsub.f32 %v2078, %v2087
      %v2094 = vsub.f32 %v2079, %v2087
      %v2095 = vsub.f32 %v2080, %v2087
      %v2096 = vmul.f32 %v2088, 1.442695
      %v2097 = vpow.pop %v2096
      %v2098 = vmul.f32 %v2089, 1.442695
      %v2099 = vpow.pop %v2098
      %v2100 = vmul.f32 %v2090, 1.442695
      %v2101 = vpow.pop %v2100
      %v2102 = vmul.f32 %v2091, 1.442695
      %v2103 = vpow.pop %v2102
      %v2104 = vmul.f32 %v2092, 1.442695
      %v2105 = vpow.pop %v2104
      %v2106 = vmul.f32 %v2093, 1.442695
      %v2107 = vpow.pop %v2106
      %v2108 = vmul.f32 %v2094, 1.442695
      %v2109 = vpow.pop %v2108
      %v2110 = vmul.f32 %v2095, 1.442695
      %v2111 = vpow.pop %v2110
      %v2112 = vadd.f32 %v2097, %v2099
      %v2113 = vadd.f32 %v2112, %v2101
      %v2114 = vadd.f32 %v2113, %v2103
      %v2115 = vadd.f32 %v2114, %v2105
      %v2116 = vadd.f32 %v2115, %v2107
      %v2117 = vadd.f32 %v2116, %v2109
      %v2118 = vadd.f32 %v2117, %v2111
      %v2119 = vrcp.pop %v2118
      %v2120 = vmul.f32 1.0, %v2119
      %v2121 = vmul.f32 %v2097, %v2120
      %v2122 = vmul.f32 %v2099, %v2120
      %v2123 = vmul.f32 %v2101, %v2120
      %v2124 = vmul.f32 %v2103, %v2120
      %v2125 = vmul.f32 %v2105, %v2120
      %v2126 = vmul.f32 %v2107, %v2120
      %v2127 = vmul.f32 %v2109, %v2120
      %v2128 = vmul.f32 %v2111, %v2120
      %v2129 = vmul.f32 %v2121, %v2021
      %v2130 = vmul.f32 %v2121, %v2022
      %v2131 = vmul.f32 %v2121, %v2023
      %v2132 = vmul.f32 %v2121, %v2024
      %v2133 = vmul.f32 %v2122, %v2021
      %v2134 = vmul.f32 %v2122, %v2022
      %v2135 = vmul.f32 %v2122, %v2023
      %v2136 = vmul.f32 %v2122, %v2024
      %v2137 = vmul.f32 %v2123, %v2021
      %v2138 = vmul.f32 %v2123, %v2022
      %v2139 = vmul.f32 %v2123, %v2023
      %v2140 = vmul.f32 %v2123, %v2024
      %v2141 = vmul.f32 %v2124, %v2021
      %v2142 = vmul.f32 %v2124, %v2022
      %v2143 = vmul.f32 %v2124, %v2023
      %v2144 = vmul.f32 %v2124, %v2024
      %v2145 = vmul.f32 %v2125, %v2021
      %v2146 = vmul.f32 %v2125, %v2022
      %v2147 = vmul.f32 %v2125, %v2023
      %v2148 = vmul.f32 %v2125, %v2024
      %v2149 = vmul.f32 %v2126, %v2021
      %v2150 = vmul.f32 %v2126, %v2022
      %v2151 = vmul.f32 %v2126, %v2023
      %v2152 = vmul.f32 %v2126, %v2024
      %v2153 = vmul.f32 %v2127, %v2021
      %v2154 = vmul.f32 %v2127, %v2022
      %v2155 = vmul.f32 %v2127, %v2023
      %v2156 = vmul.f32 %v2127, %v2024
      %v2157 = vmul.f32 %v2128, %v2021
      %v2158 = vmul.f32 %v2128, %v2022
      %v2159 = vmul.f32 %v2128, %v2023
      %v2160 = vmul.f32 %v2128, %v2024
      %v2161 = vadd.f32 %v2129, 0.0
      %v2162 = vadd.f32 %v2130, 0.0
      %v2163 = vadd.f32 %v2131, 0.0
      %v2164 = vadd.f32 %v2132, 0.0
      %v2165 = vadd.f32 %v2133, 0.0
      %v2166 = vadd.f32 %v2134, 0.0
      %v2167 = vadd.f32 %v2135, 0.0
      %v2168 = vadd.f32 %v2136, 0.0
      %v2169 = vadd.f32 %v2137, 0.0
      %v2170 = vadd.f32 %v2138, 0.0
      %v2171 = vadd.f32 %v2139, 0.0
      %v2172 = vadd.f32 %v2140, 0.0
      %v2173 = vadd.f32 %v2141, 0.0
      %v2174 = vadd.f32 %v2142, 0.0
      %v2175 = vadd.f32 %v2143, 0.0
      %v2176 = vadd.f32 %v2144, 0.0
      %v2177 = vadd.f32 %v2145, 0.0
      %v2178 = vadd.f32 %v2146, 0.0
      %v2179 = vadd.f32 %v2147, 0.0
      %v2180 = vadd.f32 %v2148, 0.0
      %v2181 = vadd.f32 %v2149, 0.0
      %v2182 = vadd.f32 %v2150, 0.0
      %v2183 = vadd.f32 %v2151, 0.0
      %v2184 = vadd.f32 %v2152, 0.0
      %v2185 = vadd.f32 %v2153, 0.0
      %v2186 = vadd.f32 %v2154, 0.0
      %v2187 = vadd.f32 %v2155, 0.0
      %v2188 = vadd.f32 %v2156, 0.0
      %v2189 = vadd.f32 %v2157, 0.0
      %v2190 = vadd.f32 %v2158, 0.0
      %v2191 = vadd.f32 %v2159, 0.0
      %v2192 = vadd.f32 %v2160, 0.0
      %v2193 = vld [vmem:[%s745] sm:$0xff]
      %v2194 = vld [vmem:[%s745 + $0x8] sm:$0xff]
      %v2195 = vld [vmem:[%s745 + $0x10] sm:$0xff]
      %v2196 = vld [vmem:[%s745 + $0x18] sm:$0xff]
      %v2197 = vld [vmem:[%s750] sm:$0xff]
      %v2198 = vld [vmem:[%s750 + $0x8] sm:$0xff]
      %v2199 = vld [vmem:[%s750 + $0x10] sm:$0xff]
      %v2200 = vld [vmem:[%s750 + $0x18] sm:$0xff]
      %v2201 = vmul.f32 %v1985, %v2193
      %v2202 = vmul.f32 %v1989, %v2193
      %v2203 = vmul.f32 %v1993, %v2193
      %v2204 = vmul.f32 %v1997, %v2193
      %v2205 = vmul.f32 %v2001, %v2193
      %v2206 = vmul.f32 %v2005, %v2193
      %v2207 = vmul.f32 %v2009, %v2193
      %v2208 = vmul.f32 %v2013, %v2193
      %v2209 = vmul.f32 %v1986, %v2194
      %v2210 = vmul.f32 %v1990, %v2194
      %v2211 = vmul.f32 %v1994, %v2194
      %v2212 = vmul.f32 %v1998, %v2194
      %v2213 = vmul.f32 %v2002, %v2194
      %v2214 = vmul.f32 %v2006, %v2194
      %v2215 = vmul.f32 %v2010, %v2194
      %v2216 = vmul.f32 %v2014, %v2194
      %v2217 = vadd.f32 %v2201, %v2209
      %v2218 = vadd.f32 %v2202, %v2210
      %v2219 = vadd.f32 %v2203, %v2211
      %v2220 = vadd.f32 %v2204, %v2212
      %v2221 = vadd.f32 %v2205, %v2213
      %v2222 = vadd.f32 %v2206, %v2214
      %v2223 = vadd.f32 %v2207, %v2215
      %v2224 = vadd.f32 %v2208, %v2216
      %v2225 = vmul.f32 %v1987, %v2195
      %v2226 = vmul.f32 %v1991, %v2195
      %v2227 = vmul.f32 %v1995, %v2195
      %v2228 = vmul.f32 %v1999, %v2195
      %v2229 = vmul.f32 %v2003, %v2195
      %v2230 = vmul.f32 %v2007, %v2195
      %v2231 = vmul.f32 %v2011, %v2195
      %v2232 = vmul.f32 %v2015, %v2195
      %v2233 = vadd.f32 %v2217, %v2225
      %v2234 = vadd.f32 %v2218, %v2226
      %v2235 = vadd.f32 %v2219, %v2227
      %v2236 = vadd.f32 %v2220, %v2228
      %v2237 = vadd.f32 %v2221, %v2229
      %v2238 = vadd.f32 %v2222, %v2230
      %v2239 = vadd.f32 %v2223, %v2231
      %v2240 = vadd.f32 %v2224, %v2232
      %v2241 = vmul.f32 %v1988, %v2196
      %v2242 = vmul.f32 %v1992, %v2196
      %v2243 = vmul.f32 %v1996, %v2196
      %v2244 = vmul.f32 %v2000, %v2196
      %v2245 = vmul.f32 %v2004, %v2196
      %v2246 = vmul.f32 %v2008, %v2196
      %v2247 = vmul.f32 %v2012, %v2196
      %v2248 = vmul.f32 %v2016, %v2196
      %v2249 = vadd.f32 %v2233, %v2241
      %v2250 = vadd.f32 %v2234, %v2242
      %v2251 = vadd.f32 %v2235, %v2243
      %v2252 = vadd.f32 %v2236, %v2244
      %v2253 = vadd.f32 %v2237, %v2245
      %v2254 = vadd.f32 %v2238, %v2246
      %v2255 = vadd.f32 %v2239, %v2247
      %v2256 = vadd.f32 %v2240, %v2248
      %v2257 = vmax.f32 %v2249, %v2253
      %v2258 = vmax.f32 %v2250, %v2254
      %v2259 = vmax.f32 %v2251, %v2255
      %v2260 = vmax.f32 %v2252, %v2256
      %v2261 = vmax.f32 %v2257, %v2258
      %v2262 = vmax.f32 %v2259, %v2260
      %v2263 = vmax.f32 %v2261, %v2262
      %v2264 = vsub.f32 %v2249, %v2263
      %v2265 = vsub.f32 %v2250, %v2263
      %v2266 = vsub.f32 %v2251, %v2263
      %v2267 = vsub.f32 %v2252, %v2263
      %v2268 = vsub.f32 %v2253, %v2263
      %v2269 = vsub.f32 %v2254, %v2263
      %v2270 = vsub.f32 %v2255, %v2263
      %v2271 = vsub.f32 %v2256, %v2263
      %v2272 = vmul.f32 %v2264, 1.442695
      %v2273 = vpow.pop %v2272
      %v2274 = vmul.f32 %v2265, 1.442695
      %v2275 = vpow.pop %v2274
      %v2276 = vmul.f32 %v2266, 1.442695
      %v2277 = vpow.pop %v2276
      %v2278 = vmul.f32 %v2267, 1.442695
      %v2279 = vpow.pop %v2278
      %v2280 = vmul.f32 %v2268, 1.442695
      %v2281 = vpow.pop %v2280
      %v2282 = vmul.f32 %v2269, 1.442695
      %v2283 = vpow.pop %v2282
      %v2284 = vmul.f32 %v2270, 1.442695
      %v2285 = vpow.pop %v2284
      %v2286 = vmul.f32 %v2271, 1.442695
      %v2287 = vpow.pop %v2286
      %v2288 = vadd.f32 %v2273, %v2275
      %v2289 = vadd.f32 %v2288, %v2277
      %v2290 = vadd.f32 %v2289, %v2279
      %v2291 = vadd.f32 %v2290, %v2281
      %v2292 = vadd.f32 %v2291, %v2283
      %v2293 = vadd.f32 %v2292, %v2285
      %v2294 = vadd.f32 %v2293, %v2287
      %v2295 = vrcp.pop %v2294
      %v2296 = vmul.f32 1.0, %v2295
      %v2297 = vmul.f32 %v2273, %v2296
      %v2298 = vmul.f32 %v2275, %v2296
      %v2299 = vmul.f32 %v2277, %v2296
      %v2300 = vmul.f32 %v2279, %v2296
      %v2301 = vmul.f32 %v2281, %v2296
      %v2302 = vmul.f32 %v2283, %v2296
      %v2303 = vmul.f32 %v2285, %v2296
      %v2304 = vmul.f32 %v2287, %v2296
      %v2305 = vmul.f32 %v2297, %v2197
      %v2306 = vmul.f32 %v2297, %v2198
      %v2307 = vmul.f32 %v2297, %v2199
      %v2308 = vmul.f32 %v2297, %v2200
      %v2309 = vmul.f32 %v2298, %v2197
      %v2310 = vmul.f32 %v2298, %v2198
      %v2311 = vmul.f32 %v2298, %v2199
      %v2312 = vmul.f32 %v2298, %v2200
      %v2313 = vmul.f32 %v2299, %v2197
      %v2314 = vmul.f32 %v2299, %v2198
      %v2315 = vmul.f32 %v2299, %v2199
      %v2316 = vmul.f32 %v2299, %v2200
      %v2317 = vmul.f32 %v2300, %v2197
      %v2318 = vmul.f32 %v2300, %v2198
      %v2319 = vmul.f32 %v2300, %v2199
      %v2320 = vmul.f32 %v2300, %v2200
      %v2321 = vmul.f32 %v2301, %v2197
      %v2322 = vmul.f32 %v2301, %v2198
      %v2323 = vmul.f32 %v2301, %v2199
      %v2324 = vmul.f32 %v2301, %v2200
      %v2325 = vmul.f32 %v2302, %v2197
      %v2326 = vmul.f32 %v2302, %v2198
      %v2327 = vmul.f32 %v2302, %v2199
      %v2328 = vmul.f32 %v2302, %v2200
      %v2329 = vmul.f32 %v2303, %v2197
      %v2330 = vmul.f32 %v2303, %v2198
      %v2331 = vmul.f32 %v2303, %v2199
      %v2332 = vmul.f32 %v2303, %v2200
      %v2333 = vmul.f32 %v2304, %v2197
      %v2334 = vmul.f32 %v2304, %v2198
      %v2335 = vmul.f32 %v2304, %v2199
      %v2336 = vmul.f32 %v2304, %v2200
      %v2337 = vadd.f32 %v2161, %v2305
      %v2338 = vadd.f32 %v2162, %v2306
      %v2339 = vadd.f32 %v2163, %v2307
      %v2340 = vadd.f32 %v2164, %v2308
      %v2341 = vadd.f32 %v2165, %v2309
      %v2342 = vadd.f32 %v2166, %v2310
      %v2343 = vadd.f32 %v2167, %v2311
      %v2344 = vadd.f32 %v2168, %v2312
      %v2345 = vadd.f32 %v2169, %v2313
      %v2346 = vadd.f32 %v2170, %v2314
      %v2347 = vadd.f32 %v2171, %v2315
      %v2348 = vadd.f32 %v2172, %v2316
      %v2349 = vadd.f32 %v2173, %v2317
      %v2350 = vadd.f32 %v2174, %v2318
      %v2351 = vadd.f32 %v2175, %v2319
      %v2352 = vadd.f32 %v2176, %v2320
      %v2353 = vadd.f32 %v2177, %v2321
      %v2354 = vadd.f32 %v2178, %v2322
      %v2355 = vadd.f32 %v2179, %v2323
      %v2356 = vadd.f32 %v2180, %v2324
      %v2357 = vadd.f32 %v2181, %v2325
      %v2358 = vadd.f32 %v2182, %v2326
      %v2359 = vadd.f32 %v2183, %v2327
      %v2360 = vadd.f32 %v2184, %v2328
      %v2361 = vadd.f32 %v2185, %v2329
      %v2362 = vadd.f32 %v2186, %v2330
      %v2363 = vadd.f32 %v2187, %v2331
      %v2364 = vadd.f32 %v2188, %v2332
      %v2365 = vadd.f32 %v2189, %v2333
      %v2366 = vadd.f32 %v2190, %v2334
      %v2367 = vadd.f32 %v2191, %v2335
      %v2368 = vadd.f32 %v2192, %v2336
      %v2369 = vld [vmem:[%s950] sm:$0xff]
      %v2370 = vld [vmem:[%s950 + $0x8] sm:$0xff]
      %v2371 = vld [vmem:[%s950 + $0x10] sm:$0xff]
      %v2372 = vld [vmem:[%s950 + $0x18] sm:$0xff]
      %v2373 = vld [vmem:[%s955] sm:$0xff]
      %v2374 = vld [vmem:[%s955 + $0x8] sm:$0xff]
      %v2375 = vld [vmem:[%s955 + $0x10] sm:$0xff]
      %v2376 = vld [vmem:[%s955 + $0x18] sm:$0xff]
      %v2377 = vmul.f32 %v1985, %v2369
      %v2378 = vmul.f32 %v1989, %v2369
      %v2379 = vmul.f32 %v1993, %v2369
      %v2380 = vmul.f32 %v1997, %v2369
      %v2381 = vmul.f32 %v2001, %v2369
      %v2382 = vmul.f32 %v2005, %v2369
      %v2383 = vmul.f32 %v2009, %v2369
      %v2384 = vmul.f32 %v2013, %v2369
      %v2385 = vmul.f32 %v1986, %v2370
      %v2386 = vmul.f32 %v1990, %v2370
      %v2387 = vmul.f32 %v1994, %v2370
      %v2388 = vmul.f32 %v1998, %v2370
      %v2389 = vmul.f32 %v2002, %v2370
      %v2390 = vmul.f32 %v2006, %v2370
      %v2391 = vmul.f32 %v2010, %v2370
      %v2392 = vmul.f32 %v2014, %v2370
      %v2393 = vadd.f32 %v2377, %v2385
      %v2394 = vadd.f32 %v2378, %v2386
      %v2395 = vadd.f32 %v2379, %v2387
      %v2396 = vadd.f32 %v2380, %v2388
      %v2397 = vadd.f32 %v2381, %v2389
      %v2398 = vadd.f32 %v2382, %v2390
      %v2399 = vadd.f32 %v2383, %v2391
      %v2400 = vadd.f32 %v2384, %v2392
      %v2401 = vmul.f32 %v1987, %v2371
      %v2402 = vmul.f32 %v1991, %v2371
      %v2403 = vmul.f32 %v1995, %v2371
      %v2404 = vmul.f32 %v1999, %v2371
      %v2405 = vmul.f32 %v2003, %v2371
      %v2406 = vmul.f32 %v2007, %v2371
      %v2407 = vmul.f32 %v2011, %v2371
      %v2408 = vmul.f32 %v2015, %v2371
      %v2409 = vadd.f32 %v2393, %v2401
      %v2410 = vadd.f32 %v2394, %v2402
      %v2411 = vadd.f32 %v2395, %v2403
      %v2412 = vadd.f32 %v2396, %v2404
      %v2413 = vadd.f32 %v2397, %v2405
      %v2414 = vadd.f32 %v2398, %v2406
      %v2415 = vadd.f32 %v2399, %v2407
      %v2416 = vadd.f32 %v2400, %v2408
      %v2417 = vmul.f32 %v1988, %v2372
      %v2418 = vmul.f32 %v1992, %v2372
      %v2419 = vmul.f32 %v1996, %v2372
      %v2420 = vmul.f32 %v2000, %v2372
      %v2421 = vmul.f32 %v2004, %v2372
      %v2422 = vmul.f32 %v2008, %v2372
      %v2423 = vmul.f32 %v2012, %v2372
      %v2424 = vmul.f32 %v2016, %v2372
      %v2425 = vadd.f32 %v2409, %v2417
      %v2426 = vadd.f32 %v2410, %v2418
      %v2427 = vadd.f32 %v2411, %v2419
      %v2428 = vadd.f32 %v2412, %v2420
      %v2429 = vadd.f32 %v2413, %v2421
      %v2430 = vadd.f32 %v2414, %v2422
      %v2431 = vadd.f32 %v2415, %v2423
      %v2432 = vadd.f32 %v2416, %v2424
      %v2433 = vmax.f32 %v2425, %v2429
      %v2434 = vmax.f32 %v2426, %v2430
      %v2435 = vmax.f32 %v2427, %v2431
      %v2436 = vmax.f32 %v2428, %v2432
      %v2437 = vmax.f32 %v2433, %v2434
      %v2438 = vmax.f32 %v2435, %v2436
      %v2439 = vmax.f32 %v2437, %v2438
      %v2440 = vsub.f32 %v2425, %v2439
      %v2441 = vsub.f32 %v2426, %v2439
      %v2442 = vsub.f32 %v2427, %v2439
      %v2443 = vsub.f32 %v2428, %v2439
      %v2444 = vsub.f32 %v2429, %v2439
      %v2445 = vsub.f32 %v2430, %v2439
      %v2446 = vsub.f32 %v2431, %v2439
      %v2447 = vsub.f32 %v2432, %v2439
      %v2448 = vmul.f32 %v2440, 1.442695
      %v2449 = vpow.pop %v2448
      %v2450 = vmul.f32 %v2441, 1.442695
      %v2451 = vpow.pop %v2450
      %v2452 = vmul.f32 %v2442, 1.442695
      %v2453 = vpow.pop %v2452
      %v2454 = vmul.f32 %v2443, 1.442695
      %v2455 = vpow.pop %v2454
      %v2456 = vmul.f32 %v2444, 1.442695
      %v2457 = vpow.pop %v2456
      %v2458 = vmul.f32 %v2445, 1.442695
      %v2459 = vpow.pop %v2458
      %v2460 = vmul.f32 %v2446, 1.442695
      %v2461 = vpow.pop %v2460
      %v2462 = vmul.f32 %v2447, 1.442695
      %v2463 = vpow.pop %v2462
      %v2464 = vadd.f32 %v2449, %v2451
      %v2465 = vadd.f32 %v2464, %v2453
      %v2466 = vadd.f32 %v2465, %v2455
      %v2467 = vadd.f32 %v2466, %v2457
      %v2468 = vadd.f32 %v2467, %v2459
      %v2469 = vadd.f32 %v2468, %v2461
      %v2470 = vadd.f32 %v2469, %v2463
      %v2471 = vrcp.pop %v2470
      %v2472 = vmul.f32 1.0, %v2471
      %v2473 = vmul.f32 %v2449, %v2472
      %v2474 = vmul.f32 %v2451, %v2472
      %v2475 = vmul.f32 %v2453, %v2472
      %v2476 = vmul.f32 %v2455, %v2472
      %v2477 = vmul.f32 %v2457, %v2472
      %v2478 = vmul.f32 %v2459, %v2472
      %v2479 = vmul.f32 %v2461, %v2472
      %v2480 = vmul.f32 %v2463, %v2472
      %v2481 = vmul.f32 %v2473, %v2373
      %v2482 = vmul.f32 %v2473, %v2374
      %v2483 = vmul.f32 %v2473, %v2375
      %v2484 = vmul.f32 %v2473, %v2376
      %v2485 = vmul.f32 %v2474, %v2373
      %v2486 = vmul.f32 %v2474, %v2374
      %v2487 = vmul.f32 %v2474, %v2375
      %v2488 = vmul.f32 %v2474, %v2376
      %v2489 = vmul.f32 %v2475, %v2373
      %v2490 = vmul.f32 %v2475, %v2374
      %v2491 = vmul.f32 %v2475, %v2375
      %v2492 = vmul.f32 %v2475, %v2376
      %v2493 = vmul.f32 %v2476, %v2373
      %v2494 = vmul.f32 %v2476, %v2374
      %v2495 = vmul.f32 %v2476, %v2375
      %v2496 = vmul.f32 %v2476, %v2376
      %v2497 = vmul.f32 %v2477, %v2373
      %v2498 = vmul.f32 %v2477, %v2374
      %v2499 = vmul.f32 %v2477, %v2375
      %v2500 = vmul.f32 %v2477, %v2376
      %v2501 = vmul.f32 %v2478, %v2373
      %v2502 = vmul.f32 %v2478, %v2374
      %v2503 = vmul.f32 %v2478, %v2375
      %v2504 = vmul.f32 %v2478, %v2376
      %v2505 = vmul.f32 %v2479, %v2373
      %v2506 = vmul.f32 %v2479, %v2374
      %v2507 = vmul.f32 %v2479, %v2375
      %v2508 = vmul.f32 %v2479, %v2376
      %v2509 = vmul.f32 %v2480, %v2373
      %v2510 = vmul.f32 %v2480, %v2374
      %v2511 = vmul.f32 %v2480, %v2375
      %v2512 = vmul.f32 %v2480, %v2376
      %v2513 = vadd.f32 %v2337, %v2481
      %v2514 = vadd.f32 %v2338, %v2482
      %v2515 = vadd.f32 %v2339, %v2483
      %v2516 = vadd.f32 %v2340, %v2484
      %v2517 = vadd.f32 %v2341, %v2485
      %v2518 = vadd.f32 %v2342, %v2486
      %v2519 = vadd.f32 %v2343, %v2487
      %v2520 = vadd.f32 %v2344, %v2488
      %v2521 = vadd.f32 %v2345, %v2489
      %v2522 = vadd.f32 %v2346, %v2490
      %v2523 = vadd.f32 %v2347, %v2491
      %v2524 = vadd.f32 %v2348, %v2492
      %v2525 = vadd.f32 %v2349, %v2493
      %v2526 = vadd.f32 %v2350, %v2494
      %v2527 = vadd.f32 %v2351, %v2495
      %v2528 = vadd.f32 %v2352, %v2496
      %v2529 = vadd.f32 %v2353, %v2497
      %v2530 = vadd.f32 %v2354, %v2498
      %v2531 = vadd.f32 %v2355, %v2499
      %v2532 = vadd.f32 %v2356, %v2500
      %v2533 = vadd.f32 %v2357, %v2501
      %v2534 = vadd.f32 %v2358, %v2502
      %v2535 = vadd.f32 %v2359, %v2503
      %v2536 = vadd.f32 %v2360, %v2504
      %v2537 = vadd.f32 %v2361, %v2505
      %v2538 = vadd.f32 %v2362, %v2506
      %v2539 = vadd.f32 %v2363, %v2507
      %v2540 = vadd.f32 %v2364, %v2508
      %v2541 = vadd.f32 %v2365, %v2509
      %v2542 = vadd.f32 %v2366, %v2510
      %v2543 = vadd.f32 %v2367, %v2511
      %v2544 = vadd.f32 %v2368, %v2512
      %v2545 = vld [vmem:[%s1155] sm:$0xff]
      %v2546 = vld [vmem:[%s1155 + $0x8] sm:$0xff]
      %v2547 = vld [vmem:[%s1155 + $0x10] sm:$0xff]
      %v2548 = vld [vmem:[%s1155 + $0x18] sm:$0xff]
      %v2549 = vld [vmem:[%s1160] sm:$0xff]
      %v2550 = vld [vmem:[%s1160 + $0x8] sm:$0xff]
      %v2551 = vld [vmem:[%s1160 + $0x10] sm:$0xff]
      %v2552 = vld [vmem:[%s1160 + $0x18] sm:$0xff]
      %v2553 = vmul.f32 %v1985, %v2545
      %v2554 = vmul.f32 %v1989, %v2545
      %v2555 = vmul.f32 %v1993, %v2545
      %v2556 = vmul.f32 %v1997, %v2545
      %v2557 = vmul.f32 %v2001, %v2545
      %v2558 = vmul.f32 %v2005, %v2545
      %v2559 = vmul.f32 %v2009, %v2545
      %v2560 = vmul.f32 %v2013, %v2545
      %v2561 = vmul.f32 %v1986, %v2546
      %v2562 = vmul.f32 %v1990, %v2546
      %v2563 = vmul.f32 %v1994, %v2546
      %v2564 = vmul.f32 %v1998, %v2546
      %v2565 = vmul.f32 %v2002, %v2546
      %v2566 = vmul.f32 %v2006, %v2546
      %v2567 = vmul.f32 %v2010, %v2546
      %v2568 = vmul.f32 %v2014, %v2546
      %v2569 = vadd.f32 %v2553, %v2561
      %v2570 = vadd.f32 %v2554, %v2562
      %v2571 = vadd.f32 %v2555, %v2563
      %v2572 = vadd.f32 %v2556, %v2564
      %v2573 = vadd.f32 %v2557, %v2565
      %v2574 = vadd.f32 %v2558, %v2566
      %v2575 = vadd.f32 %v2559, %v2567
      %v2576 = vadd.f32 %v2560, %v2568
      %v2577 = vmul.f32 %v1987, %v2547
      %v2578 = vmul.f32 %v1991, %v2547
      %v2579 = vmul.f32 %v1995, %v2547
      %v2580 = vmul.f32 %v1999, %v2547
      %v2581 = vmul.f32 %v2003, %v2547
      %v2582 = vmul.f32 %v2007, %v2547
      %v2583 = vmul.f32 %v2011, %v2547
      %v2584 = vmul.f32 %v2015, %v2547
      %v2585 = vadd.f32 %v2569, %v2577
      %v2586 = vadd.f32 %v2570, %v2578
      %v2587 = vadd.f32 %v2571, %v2579
      %v2588 = vadd.f32 %v2572, %v2580
      %v2589 = vadd.f32 %v2573, %v2581
      %v2590 = vadd.f32 %v2574, %v2582
      %v2591 = vadd.f32 %v2575, %v2583
      %v2592 = vadd.f32 %v2576, %v2584
      %v2593 = vmul.f32 %v1988, %v2548
      %v2594 = vmul.f32 %v1992, %v2548
      %v2595 = vmul.f32 %v1996, %v2548
      %v2596 = vmul.f32 %v2000, %v2548
      %v2597 = vmul.f32 %v2004, %v2548
      %v2598 = vmul.f32 %v2008, %v2548
      %v2599 = vmul.f32 %v2012, %v2548
      %v2600 = vmul.f32 %v2016, %v2548
      %v2601 = vadd.f32 %v2585, %v2593
      %v2602 = vadd.f32 %v2586, %v2594
      %v2603 = vadd.f32 %v2587, %v2595
      %v2604 = vadd.f32 %v2588, %v2596
      %v2605 = vadd.f32 %v2589, %v2597
      %v2606 = vadd.f32 %v2590, %v2598
      %v2607 = vadd.f32 %v2591, %v2599
      %v2608 = vadd.f32 %v2592, %v2600
      %v2609 = vmax.f32 %v2601, %v2605
      %v2610 = vmax.f32 %v2602, %v2606
      %v2611 = vmax.f32 %v2603, %v2607
      %v2612 = vmax.f32 %v2604, %v2608
      %v2613 = vmax.f32 %v2609, %v2610
      %v2614 = vmax.f32 %v2611, %v2612
      %v2615 = vmax.f32 %v2613, %v2614
      %v2616 = vsub.f32 %v2601, %v2615
      %v2617 = vsub.f32 %v2602, %v2615
      %v2618 = vsub.f32 %v2603, %v2615
      %v2619 = vsub.f32 %v2604, %v2615
      %v2620 = vsub.f32 %v2605, %v2615
      %v2621 = vsub.f32 %v2606, %v2615
      %v2622 = vsub.f32 %v2607, %v2615
      %v2623 = vsub.f32 %v2608, %v2615
      %v2624 = vmul.f32 %v2616, 1.442695
      %v2625 = vpow.pop %v2624
      %v2626 = vmul.f32 %v2617, 1.442695
      %v2627 = vpow.pop %v2626
      %v2628 = vmul.f32 %v2618, 1.442695
      %v2629 = vpow.pop %v2628
      %v2630 = vmul.f32 %v2619, 1.442695
      %v2631 = vpow.pop %v2630
      %v2632 = vmul.f32 %v2620, 1.442695
      %v2633 = vpow.pop %v2632
      %v2634 = vmul.f32 %v2621, 1.442695
      %v2635 = vpow.pop %v2634
      %v2636 = vmul.f32 %v2622, 1.442695
      %v2637 = vpow.pop %v2636
      %v2638 = vmul.f32 %v2623, 1.442695
      %v2639 = vpow.pop %v2638
      %v2640 = vadd.f32 %v2625, %v2627
      %v2641 = vadd.f32 %v2640, %v2629
      %v2642 = vadd.f32 %v2641, %v2631
      %v2643 = vadd.f32 %v2642, %v2633
      %v2644 = vadd.f32 %v2643, %v2635
      %v2645 = vadd.f32 %v2644, %v2637
      %v2646 = vadd.f32 %v2645, %v2639
      %v2647 = vrcp.pop %v2646
      %v2648 = vmul.f32 1.0, %v2647
      %v2649 = vmul.f32 %v2625, %v2648
      %v2650 = vmul.f32 %v2627, %v2648
      %v2651 = vmul.f32 %v2629, %v2648
      %v2652 = vmul.f32 %v2631, %v2648
      %v2653 = vmul.f32 %v2633, %v2648
      %v2654 = vmul.f32 %v2635, %v2648
      %v2655 = vmul.f32 %v2637, %v2648
      %v2656 = vmul.f32 %v2639, %v2648
      %v2657 = vmul.f32 %v2649, %v2549
      %v2658 = vmul.f32 %v2649, %v2550
      %v2659 = vmul.f32 %v2649, %v2551
      %v2660 = vmul.f32 %v2649, %v2552
      %v2661 = vmul.f32 %v2650, %v2549
      %v2662 = vmul.f32 %v2650, %v2550
      %v2663 = vmul.f32 %v2650, %v2551
      %v2664 = vmul.f32 %v2650, %v2552
      %v2665 = vmul.f32 %v2651, %v2549
      %v2666 = vmul.f32 %v2651, %v2550
      %v2667 = vmul.f32 %v2651, %v2551
      %v2668 = vmul.f32 %v2651, %v2552
      %v2669 = vmul.f32 %v2652, %v2549
      %v2670 = vmul.f32 %v2652, %v2550
      %v2671 = vmul.f32 %v2652, %v2551
      %v2672 = vmul.f32 %v2652, %v2552
      %v2673 = vmul.f32 %v2653, %v2549
      %v2674 = vmul.f32 %v2653, %v2550
      %v2675 = vmul.f32 %v2653, %v2551
      %v2676 = vmul.f32 %v2653, %v2552
      %v2677 = vmul.f32 %v2654, %v2549
      %v2678 = vmul.f32 %v2654, %v2550
      %v2679 = vmul.f32 %v2654, %v2551
      %v2680 = vmul.f32 %v2654, %v2552
      %v2681 = vmul.f32 %v2655, %v2549
      %v2682 = vmul.f32 %v2655, %v2550
      %v2683 = vmul.f32 %v2655, %v2551
      %v2684 = vmul.f32 %v2655, %v2552
      %v2685 = vmul.f32 %v2656, %v2549
      %v2686 = vmul.f32 %v2656, %v2550
      %v2687 = vmul.f32 %v2656, %v2551
      %v2688 = vmul.f32 %v2656, %v2552
      %v2689 = vadd.f32 %v2513, %v2657
      %v2690 = vadd.f32 %v2514, %v2658
      %v2691 = vadd.f32 %v2515, %v2659
      %v2692 = vadd.f32 %v2516, %v2660
      %v2693 = vadd.f32 %v2517, %v2661
      %v2694 = vadd.f32 %v2518, %v2662
      %v2695 = vadd.f32 %v2519, %v2663
      %v2696 = vadd.f32 %v2520, %v2664
      %v2697 = vadd.f32 %v2521, %v2665
      %v2698 = vadd.f32 %v2522, %v2666
      %v2699 = vadd.f32 %v2523, %v2667
      %v2700 = vadd.f32 %v2524, %v2668
      %v2701 = vadd.f32 %v2525, %v2669
      %v2702 = vadd.f32 %v2526, %v2670
      %v2703 = vadd.f32 %v2527, %v2671
      %v2704 = vadd.f32 %v2528, %v2672
      %v2705 = vadd.f32 %v2529, %v2673
      %v2706 = vadd.f32 %v2530, %v2674
      %v2707 = vadd.f32 %v2531, %v2675
      %v2708 = vadd.f32 %v2532, %v2676
      %v2709 = vadd.f32 %v2533, %v2677
      %v2710 = vadd.f32 %v2534, %v2678
      %v2711 = vadd.f32 %v2535, %v2679
      %v2712 = vadd.f32 %v2536, %v2680
      %v2713 = vadd.f32 %v2537, %v2681
      %v2714 = vadd.f32 %v2538, %v2682
      %v2715 = vadd.f32 %v2539, %v2683
      %v2716 = vadd.f32 %v2540, %v2684
      %v2717 = vadd.f32 %v2541, %v2685
      %v2718 = vadd.f32 %v2542, %v2686
      %v2719 = vadd.f32 %v2543, %v2687
      %v2720 = vadd.f32 %v2544, %v2688
      %v2721 = vld [vmem:[%s1360] sm:$0xff]
      %v2722 = vld [vmem:[%s1360 + $0x8] sm:$0xff]
      %v2723 = vld [vmem:[%s1360 + $0x10] sm:$0xff]
      %v2724 = vld [vmem:[%s1360 + $0x18] sm:$0xff]
      %v2725 = vld [vmem:[%s1365] sm:$0xff]
      %v2726 = vld [vmem:[%s1365 + $0x8] sm:$0xff]
      %v2727 = vld [vmem:[%s1365 + $0x10] sm:$0xff]
      %v2728 = vld [vmem:[%s1365 + $0x18] sm:$0xff]
      %v2729 = vmul.f32 %v1985, %v2721
      %v2730 = vmul.f32 %v1989, %v2721
      %v2731 = vmul.f32 %v1993, %v2721
      %v2732 = vmul.f32 %v1997, %v2721
      %v2733 = vmul.f32 %v2001, %v2721
      %v2734 = vmul.f32 %v2005, %v2721
      %v2735 = vmul.f32 %v2009, %v2721
      %v2736 = vmul.f32 %v2013, %v2721
      %v2737 = vmul.f32 %v1986, %v2722
      %v2738 = vmul.f32 %v1990, %v2722
      %v2739 = vmul.f32 %v1994, %v2722
      %v2740 = vmul.f32 %v1998, %v2722
      %v2741 = vmul.f32 %v2002, %v2722
      %v2742 = vmul.f32 %v2006, %v2722
      %v2743 = vmul.f32 %v2010, %v2722
      %v2744 = vmul.f32 %v2014, %v2722
      %v2745 = vadd.f32 %v2729, %v2737
      %v2746 = vadd.f32 %v2730, %v2738
      %v2747 = vadd.f32 %v2731, %v2739
      %v2748 = vadd.f32 %v2732, %v2740
      %v2749 = vadd.f32 %v2733, %v2741
      %v2750 = vadd.f32 %v2734, %v2742
      %v2751 = vadd.f32 %v2735, %v2743
      %v2752 = vadd.f32 %v2736, %v2744
      %v2753 = vmul.f32 %v1987, %v2723
      %v2754 = vmul.f32 %v1991, %v2723
      %v2755 = vmul.f32 %v1995, %v2723
      %v2756 = vmul.f32 %v1999, %v2723
      %v2757 = vmul.f32 %v2003, %v2723
      %v2758 = vmul.f32 %v2007, %v2723
      %v2759 = vmul.f32 %v2011, %v2723
      %v2760 = vmul.f32 %v2015, %v2723
      %v2761 = vadd.f32 %v2745, %v2753
      %v2762 = vadd.f32 %v2746, %v2754
      %v2763 = vadd.f32 %v2747, %v2755
      %v2764 = vadd.f32 %v2748, %v2756
      %v2765 = vadd.f32 %v2749, %v2757
      %v2766 = vadd.f32 %v2750, %v2758
      %v2767 = vadd.f32 %v2751, %v2759
      %v2768 = vadd.f32 %v2752, %v2760
      %v2769 = vmul.f32 %v1988, %v2724
      %v2770 = vmul.f32 %v1992, %v2724
      %v2771 = vmul.f32 %v1996, %v2724
      %v2772 = vmul.f32 %v2000, %v2724
      %v2773 = vmul.f32 %v2004, %v2724
      %v2774 = vmul.f32 %v2008, %v2724
      %v2775 = vmul.f32 %v2012, %v2724
      %v2776 = vmul.f32 %v2016, %v2724
      %v2777 = vadd.f32 %v2761, %v2769
      %v2778 = vadd.f32 %v2762, %v2770
      %v2779 = vadd.f32 %v2763, %v2771
      %v2780 = vadd.f32 %v2764, %v2772
      %v2781 = vadd.f32 %v2765, %v2773
      %v2782 = vadd.f32 %v2766, %v2774
      %v2783 = vadd.f32 %v2767, %v2775
      %v2784 = vadd.f32 %v2768, %v2776
      %v2785 = vmax.f32 %v2777, %v2781
      %v2786 = vmax.f32 %v2778, %v2782
      %v2787 = vmax.f32 %v2779, %v2783
      %v2788 = vmax.f32 %v2780, %v2784
      %v2789 = vmax.f32 %v2785, %v2786
      %v2790 = vmax.f32 %v2787, %v2788
      %v2791 = vmax.f32 %v2789, %v2790
      %v2792 = vsub.f32 %v2777, %v2791
      %v2793 = vsub.f32 %v2778, %v2791
      %v2794 = vsub.f32 %v2779, %v2791
      %v2795 = vsub.f32 %v2780, %v2791
      %v2796 = vsub.f32 %v2781, %v2791
      %v2797 = vsub.f32 %v2782, %v2791
      %v2798 = vsub.f32 %v2783, %v2791
      %v2799 = vsub.f32 %v2784, %v2791
      %v2800 = vmul.f32 %v2792, 1.442695
      %v2801 = vpow.pop %v2800
      %v2802 = vmul.f32 %v2793, 1.442695
      %v2803 = vpow.pop %v2802
      %v2804 = vmul.f32 %v2794, 1.442695
      %v2805 = vpow.pop %v2804
      %v2806 = vmul.f32 %v2795, 1.442695
      %v2807 = vpow.pop %v2806
      %v2808 = vmul.f32 %v2796, 1.442695
      %v2809 = vpow.pop %v2808
      %v2810 = vmul.f32 %v2797, 1.442695
      %v2811 = vpow.pop %v2810
      %v2812 = vmul.f32 %v2798, 1.442695
      %v2813 = vpow.pop %v2812
      %v2814 = vmul.f32 %v2799, 1.442695
      %v2815 = vpow.pop %v2814
      %v2816 = vadd.f32 %v2801, %v2803
      %v2817 = vadd.f32 %v2816, %v2805
      %v2818 = vadd.f32 %v2817, %v2807
      %v2819 = vadd.f32 %v2818, %v2809
      %v2820 = vadd.f32 %v2819, %v2811
      %v2821 = vadd.f32 %v2820, %v2813
      %v2822 = vadd.f32 %v2821, %v2815
      %v2823 = vrcp.pop %v2822
      %v2824 = vmul.f32 1.0, %v2823
      %v2825 = vmul.f32 %v2801, %v2824
      %v2826 = vmul.f32 %v2803, %v2824
      %v2827 = vmul.f32 %v2805, %v2824
      %v2828 = vmul.f32 %v2807, %v2824
      %v2829 = vmul.f32 %v2809, %v2824
      %v2830 = vmul.f32 %v2811, %v2824
      %v2831 = vmul.f32 %v2813, %v2824
      %v2832 = vmul.f32 %v2815, %v2824
      %v2833 = vmul.f32 %v2825, %v2725
      %v2834 = vmul.f32 %v2825, %v2726
      %v2835 = vmul.f32 %v2825, %v2727
      %v2836 = vmul.f32 %v2825, %v2728
      %v2837 = vmul.f32 %v2826, %v2725
      %v2838 = vmul.f32 %v2826, %v2726
      %v2839 = vmul.f32 %v2826, %v2727
      %v2840 = vmul.f32 %v2826, %v2728
      %v2841 = vmul.f32 %v2827, %v2725
      %v2842 = vmul.f32 %v2827, %v2726
      %v2843 = vmul.f32 %v2827, %v2727
      %v2844 = vmul.f32 %v2827, %v2728
      %v2845 = vmul.f32 %v2828, %v2725
      %v2846 = vmul.f32 %v2828, %v2726
      %v2847 = vmul.f32 %v2828, %v2727
      %v2848 = vmul.f32 %v2828, %v2728
      %v2849 = vmul.f32 %v2829, %v2725
      %v2850 = vmul.f32 %v2829, %v2726
      %v2851 = vmul.f32 %v2829, %v2727
      %v2852 = vmul.f32 %v2829, %v2728
      %v2853 = vmul.f32 %v2830, %v2725
      %v2854 = vmul.f32 %v2830, %v2726
      %v2855 = vmul.f32 %v2830, %v2727
      %v2856 = vmul.f32 %v2830, %v2728
      %v2857 = vmul.f32 %v2831, %v2725
      %v2858 = vmul.f32 %v2831, %v2726
      %v2859 = vmul.f32 %v2831, %v2727
      %v2860 = vmul.f32 %v2831, %v2728
      %v2861 = vmul.f32 %v2832, %v2725
      %v2862 = vmul.f32 %v2832, %v2726
      %v2863 = vmul.f32 %v2832, %v2727
      %v2864 = vmul.f32 %v2832, %v2728
      %v2865 = vadd.f32 %v2689, %v2833
      %v2866 = vadd.f32 %v2690, %v2834
      %v2867 = vadd.f32 %v2691, %v2835
      %v2868 = vadd.f32 %v2692, %v2836
      %v2869 = vadd.f32 %v2693, %v2837
      %v2870 = vadd.f32 %v2694, %v2838
      %v2871 = vadd.f32 %v2695, %v2839
      %v2872 = vadd.f32 %v2696, %v2840
      %v2873 = vadd.f32 %v2697, %v2841
      %v2874 = vadd.f32 %v2698, %v2842
      %v2875 = vadd.f32 %v2699, %v2843
      %v2876 = vadd.f32 %v2700, %v2844
      %v2877 = vadd.f32 %v2701, %v2845
      %v2878 = vadd.f32 %v2702, %v2846
      %v2879 = vadd.f32 %v2703, %v2847
      %v2880 = vadd.f32 %v2704, %v2848
      %v2881 = vadd.f32 %v2705, %v2849
      %v2882 = vadd.f32 %v2706, %v2850
      %v2883 = vadd.f32 %v2707, %v2851
      %v2884 = vadd.f32 %v2708, %v2852
      %v2885 = vadd.f32 %v2709, %v2853
      %v2886 = vadd.f32 %v2710, %v2854
      %v2887 = vadd.f32 %v2711, %v2855
      %v2888 = vadd.f32 %v2712, %v2856
      %v2889 = vadd.f32 %v2713, %v2857
      %v2890 = vadd.f32 %v2714, %v2858
      %v2891 = vadd.f32 %v2715, %v2859
      %v2892 = vadd.f32 %v2716, %v2860
      %v2893 = vadd.f32 %v2717, %v2861
      %v2894 = vadd.f32 %v2718, %v2862
      %v2895 = vadd.f32 %v2719, %v2863
      %v2896 = vadd.f32 %v2720, %v2864
      %v2897 = vld [vmem:[%s1565] sm:$0xff]
      %v2898 = vld [vmem:[%s1565 + $0x8] sm:$0xff]
      %v2899 = vld [vmem:[%s1565 + $0x10] sm:$0xff]
      %v2900 = vld [vmem:[%s1565 + $0x18] sm:$0xff]
      %v2901 = vld [vmem:[%s1570] sm:$0xff]
      %v2902 = vld [vmem:[%s1570 + $0x8] sm:$0xff]
      %v2903 = vld [vmem:[%s1570 + $0x10] sm:$0xff]
      %v2904 = vld [vmem:[%s1570 + $0x18] sm:$0xff]
      %v2905 = vmul.f32 %v1985, %v2897
      %v2906 = vmul.f32 %v1989, %v2897
      %v2907 = vmul.f32 %v1993, %v2897
      %v2908 = vmul.f32 %v1997, %v2897
      %v2909 = vmul.f32 %v2001, %v2897
      %v2910 = vmul.f32 %v2005, %v2897
      %v2911 = vmul.f32 %v2009, %v2897
      %v2912 = vmul.f32 %v2013, %v2897
      %v2913 = vmul.f32 %v1986, %v2898
      %v2914 = vmul.f32 %v1990, %v2898
      %v2915 = vmul.f32 %v1994, %v2898
      %v2916 = vmul.f32 %v1998, %v2898
      %v2917 = vmul.f32 %v2002, %v2898
      %v2918 = vmul.f32 %v2006, %v2898
      %v2919 = vmul.f32 %v2010, %v2898
      %v2920 = vmul.f32 %v2014, %v2898
      %v2921 = vadd.f32 %v2905, %v2913
      %v2922 = vadd.f32 %v2906, %v2914
      %v2923 = vadd.f32 %v2907, %v2915
      %v2924 = vadd.f32 %v2908, %v2916
      %v2925 = vadd.f32 %v2909, %v2917
      %v2926 = vadd.f32 %v2910, %v2918
      %v2927 = vadd.f32 %v2911, %v2919
      %v2928 = vadd.f32 %v2912, %v2920
      %v2929 = vmul.f32 %v1987, %v2899
      %v2930 = vmul.f32 %v1991, %v2899
      %v2931 = vmul.f32 %v1995, %v2899
      %v2932 = vmul.f32 %v1999, %v2899
      %v2933 = vmul.f32 %v2003, %v2899
      %v2934 = vmul.f32 %v2007, %v2899
      %v2935 = vmul.f32 %v2011, %v2899
      %v2936 = vmul.f32 %v2015, %v2899
      %v2937 = vadd.f32 %v2921, %v2929
      %v2938 = vadd.f32 %v2922, %v2930
      %v2939 = vadd.f32 %v2923, %v2931
      %v2940 = vadd.f32 %v2924, %v2932
      %v2941 = vadd.f32 %v2925, %v2933
      %v2942 = vadd.f32 %v2926, %v2934
      %v2943 = vadd.f32 %v2927, %v2935
      %v2944 = vadd.f32 %v2928, %v2936
      %v2945 = vmul.f32 %v1988, %v2900
      %v2946 = vmul.f32 %v1992, %v2900
      %v2947 = vmul.f32 %v1996, %v2900
      %v2948 = vmul.f32 %v2000, %v2900
      %v2949 = vmul.f32 %v2004, %v2900
      %v2950 = vmul.f32 %v2008, %v2900
      %v2951 = vmul.f32 %v2012, %v2900
      %v2952 = vmul.f32 %v2016, %v2900
      %v2953 = vadd.f32 %v2937, %v2945
      %v2954 = vadd.f32 %v2938, %v2946
      %v2955 = vadd.f32 %v2939, %v2947
      %v2956 = vadd.f32 %v2940, %v2948
      %v2957 = vadd.f32 %v2941, %v2949
      %v2958 = vadd.f32 %v2942, %v2950
      %v2959 = vadd.f32 %v2943, %v2951
      %v2960 = vadd.f32 %v2944, %v2952
      %v2961 = vmax.f32 %v2953, %v2957
      %v2962 = vmax.f32 %v2954, %v2958
      %v2963 = vmax.f32 %v2955, %v2959
      %v2964 = vmax.f32 %v2956, %v2960
      %v2965 = vmax.f32 %v2961, %v2962
      %v2966 = vmax.f32 %v2963, %v2964
      %v2967 = vmax.f32 %v2965, %v2966
      %v2968 = vsub.f32 %v2953, %v2967
      %v2969 = vsub.f32 %v2954, %v2967
      %v2970 = vsub.f32 %v2955, %v2967
      %v2971 = vsub.f32 %v2956, %v2967
      %v2972 = vsub.f32 %v2957, %v2967
      %v2973 = vsub.f32 %v2958, %v2967
      %v2974 = vsub.f32 %v2959, %v2967
      %v2975 = vsub.f32 %v2960, %v2967
      %v2976 = vmul.f32 %v2968, 1.442695
      %v2977 = vpow.pop %v2976
      %v2978 = vmul.f32 %v2969, 1.442695
      %v2979 = vpow.pop %v2978
      %v2980 = vmul.f32 %v2970, 1.442695
      %v2981 = vpow.pop %v2980
      %v2982 = vmul.f32 %v2971, 1.442695
      %v2983 = vpow.pop %v2982
      %v2984 = vmul.f32 %v2972, 1.442695
      %v2985 = vpow.pop %v2984
      %v2986 = vmul.f32 %v2973, 1.442695
      %v2987 = vpow.pop %v2986
      %v2988 = vmul.f32 %v2974, 1.442695
      %v2989 = vpow.pop %v2988
      %v2990 = vmul.f32 %v2975, 1.442695
      %v2991 = vpow.pop %v2990
      %v2992 = vadd.f32 %v2977, %v2979
      %v2993 = vadd.f32 %v2992, %v2981
      %v2994 = vadd.f32 %v2993, %v2983
      %v2995 = vadd.f32 %v2994, %v2985
      %v2996 = vadd.f32 %v2995, %v2987
      %v2997 = vadd.f32 %v2996, %v2989
      %v2998 = vadd.f32 %v2997, %v2991
      %v2999 = vrcp.pop %v2998
      %v3000 = vmul.f32 1.0, %v2999
      %v3001 = vmul.f32 %v2977, %v3000
      %v3002 = vmul.f32 %v2979, %v3000
      %v3003 = vmul.f32 %v2981, %v3000
      %v3004 = vmul.f32 %v2983, %v3000
      %v3005 = vmul.f32 %v2985, %v3000
      %v3006 = vmul.f32 %v2987, %v3000
      %v3007 = vmul.f32 %v2989, %v3000
      %v3008 = vmul.f32 %v2991, %v3000
      %v3009 = vmul.f32 %v3001, %v2901
      %v3010 = vmul.f32 %v3001, %v2902
      %v3011 = vmul.f32 %v3001, %v2903
      %v3012 = vmul.f32 %v3001, %v2904
      %v3013 = vmul.f32 %v3002, %v2901
      %v3014 = vmul.f32 %v3002, %v2902
      %v3015 = vmul.f32 %v3002, %v2903
      %v3016 = vmul.f32 %v3002, %v2904
      %v3017 = vmul.f32 %v3003, %v2901
      %v3018 = vmul.f32 %v3003, %v2902
      %v3019 = vmul.f32 %v3003, %v2903
      %v3020 = vmul.f32 %v3003, %v2904
      %v3021 = vmul.f32 %v3004, %v2901
      %v3022 = vmul.f32 %v3004, %v2902
      %v3023 = vmul.f32 %v3004, %v2903
      %v3024 = vmul.f32 %v3004, %v2904
      %v3025 = vmul.f32 %v3005, %v2901
      %v3026 = vmul.f32 %v3005, %v2902
      %v3027 = vmul.f32 %v3005, %v2903
      %v3028 = vmul.f32 %v3005, %v2904
      %v3029 = vmul.f32 %v3006, %v2901
      %v3030 = vmul.f32 %v3006, %v2902
      %v3031 = vmul.f32 %v3006, %v2903
      %v3032 = vmul.f32 %v3006, %v2904
      %v3033 = vmul.f32 %v3007, %v2901
      %v3034 = vmul.f32 %v3007, %v2902
      %v3035 = vmul.f32 %v3007, %v2903
      %v3036 = vmul.f32 %v3007, %v2904
      %v3037 = vmul.f32 %v3008, %v2901
      %v3038 = vmul.f32 %v3008, %v2902
      %v3039 = vmul.f32 %v3008, %v2903
      %v3040 = vmul.f32 %v3008, %v2904
      %v3041 = vadd.f32 %v2865, %v3009
      %v3042 = vadd.f32 %v2866, %v3010
      %v3043 = vadd.f32 %v2867, %v3011
      %v3044 = vadd.f32 %v2868, %v3012
      %v3045 = vadd.f32 %v2869, %v3013
      %v3046 = vadd.f32 %v2870, %v3014
      %v3047 = vadd.f32 %v2871, %v3015
      %v3048 = vadd.f32 %v2872, %v3016
      %v3049 = vadd.f32 %v2873, %v3017
      %v3050 = vadd.f32 %v2874, %v3018
      %v3051 = vadd.f32 %v2875, %v3019
      %v3052 = vadd.f32 %v2876, %v3020
      %v3053 = vadd.f32 %v2877, %v3021
      %v3054 = vadd.f32 %v2878, %v3022
      %v3055 = vadd.f32 %v2879, %v3023
      %v3056 = vadd.f32 %v2880, %v3024
      %v3057 = vadd.f32 %v2881, %v3025
      %v3058 = vadd.f32 %v2882, %v3026
      %v3059 = vadd.f32 %v2883, %v3027
      %v3060 = vadd.f32 %v2884, %v3028
      %v3061 = vadd.f32 %v2885, %v3029
      %v3062 = vadd.f32 %v2886, %v3030
      %v3063 = vadd.f32 %v2887, %v3031
      %v3064 = vadd.f32 %v2888, %v3032
      %v3065 = vadd.f32 %v2889, %v3033
      %v3066 = vadd.f32 %v2890, %v3034
      %v3067 = vadd.f32 %v2891, %v3035
      %v3068 = vadd.f32 %v2892, %v3036
      %v3069 = vadd.f32 %v2893, %v3037
      %v3070 = vadd.f32 %v2894, %v3038
      %v3071 = vadd.f32 %v2895, %v3039
      %v3072 = vadd.f32 %v2896, %v3040
      %v3073 = vld [vmem:[%s1770] sm:$0xff]
      %v3074 = vld [vmem:[%s1770 + $0x8] sm:$0xff]
      %v3075 = vld [vmem:[%s1770 + $0x10] sm:$0xff]
      %v3076 = vld [vmem:[%s1770 + $0x18] sm:$0xff]
      %v3077 = vld [vmem:[%s1775] sm:$0xff]
      %v3078 = vld [vmem:[%s1775 + $0x8] sm:$0xff]
      %v3079 = vld [vmem:[%s1775 + $0x10] sm:$0xff]
      %v3080 = vld [vmem:[%s1775 + $0x18] sm:$0xff]
      %v3081 = vmul.f32 %v1985, %v3073
      %v3082 = vmul.f32 %v1989, %v3073
      %v3083 = vmul.f32 %v1993, %v3073
      %v3084 = vmul.f32 %v1997, %v3073
      %v3085 = vmul.f32 %v2001, %v3073
      %v3086 = vmul.f32 %v2005, %v3073
      %v3087 = vmul.f32 %v2009, %v3073
      %v3088 = vmul.f32 %v2013, %v3073
      %v3089 = vmul.f32 %v1986, %v3074
      %v3090 = vmul.f32 %v1990, %v3074
      %v3091 = vmul.f32 %v1994, %v3074
      %v3092 = vmul.f32 %v1998, %v3074
      %v3093 = vmul.f32 %v2002, %v3074
      %v3094 = vmul.f32 %v2006, %v3074
      %v3095 = vmul.f32 %v2010, %v3074
      %v3096 = vmul.f32 %v2014, %v3074
      %v3097 = vadd.f32 %v3081, %v3089
      %v3098 = vadd.f32 %v3082, %v3090
      %v3099 = vadd.f32 %v3083, %v3091
      %v3100 = vadd.f32 %v3084, %v3092
      %v3101 = vadd.f32 %v3085, %v3093
      %v3102 = vadd.f32 %v3086, %v3094
      %v3103 = vadd.f32 %v3087, %v3095
      %v3104 = vadd.f32 %v3088, %v3096
      %v3105 = vmul.f32 %v1987, %v3075
      %v3106 = vmul.f32 %v1991, %v3075
      %v3107 = vmul.f32 %v1995, %v3075
      %v3108 = vmul.f32 %v1999, %v3075
      %v3109 = vmul.f32 %v2003, %v3075
      %v3110 = vmul.f32 %v2007, %v3075
      %v3111 = vmul.f32 %v2011, %v3075
      %v3112 = vmul.f32 %v2015, %v3075
      %v3113 = vadd.f32 %v3097, %v3105
      %v3114 = vadd.f32 %v3098, %v3106
      %v3115 = vadd.f32 %v3099, %v3107
      %v3116 = vadd.f32 %v3100, %v3108
      %v3117 = vadd.f32 %v3101, %v3109
      %v3118 = vadd.f32 %v3102, %v3110
      %v3119 = vadd.f32 %v3103, %v3111
      %v3120 = vadd.f32 %v3104, %v3112
      %v3121 = vmul.f32 %v1988, %v3076
      %v3122 = vmul.f32 %v1992, %v3076
      %v3123 = vmul.f32 %v1996, %v3076
      %v3124 = vmul.f32 %v2000, %v3076
      %v3125 = vmul.f32 %v2004, %v3076
      %v3126 = vmul.f32 %v2008, %v3076
      %v3127 = vmul.f32 %v2012, %v3076
      %v3128 = vmul.f32 %v2016, %v3076
      %v3129 = vadd.f32 %v3113, %v3121
      %v3130 = vadd.f32 %v3114, %v3122
      %v3131 = vadd.f32 %v3115, %v3123
      %v3132 = vadd.f32 %v3116, %v3124
      %v3133 = vadd.f32 %v3117, %v3125
      %v3134 = vadd.f32 %v3118, %v3126
      %v3135 = vadd.f32 %v3119, %v3127
      %v3136 = vadd.f32 %v3120, %v3128
      %v3137 = vmax.f32 %v3129, %v3133
      %v3138 = vmax.f32 %v3130, %v3134
      %v3139 = vmax.f32 %v3131, %v3135
      %v3140 = vmax.f32 %v3132, %v3136
      %v3141 = vmax.f32 %v3137, %v3138
      %v3142 = vmax.f32 %v3139, %v3140
      %v3143 = vmax.f32 %v3141, %v3142
      %v3144 = vsub.f32 %v3129, %v3143
      %v3145 = vsub.f32 %v3130, %v3143
      %v3146 = vsub.f32 %v3131, %v3143
      %v3147 = vsub.f32 %v3132, %v3143
      %v3148 = vsub.f32 %v3133, %v3143
      %v3149 = vsub.f32 %v3134, %v3143
      %v3150 = vsub.f32 %v3135, %v3143
      %v3151 = vsub.f32 %v3136, %v3143
      %v3152 = vmul.f32 %v3144, 1.442695
      %v3153 = vpow.pop %v3152
      %v3154 = vmul.f32 %v3145, 1.442695
      %v3155 = vpow.pop %v3154
      %v3156 = vmul.f32 %v3146, 1.442695
      %v3157 = vpow.pop %v3156
      %v3158 = vmul.f32 %v3147, 1.442695
      %v3159 = vpow.pop %v3158
      %v3160 = vmul.f32 %v3148, 1.442695
      %v3161 = vpow.pop %v3160
      %v3162 = vmul.f32 %v3149, 1.442695
      %v3163 = vpow.pop %v3162
      %v3164 = vmul.f32 %v3150, 1.442695
      %v3165 = vpow.pop %v3164
      %v3166 = vmul.f32 %v3151, 1.442695
      %v3167 = vpow.pop %v3166
      %v3168 = vadd.f32 %v3153, %v3155
      %v3169 = vadd.f32 %v3168, %v3157
      %v3170 = vadd.f32 %v3169, %v3159
      %v3171 = vadd.f32 %v3170, %v3161
      %v3172 = vadd.f32 %v3171, %v3163
      %v3173 = vadd.f32 %v3172, %v3165
      %v3174 = vadd.f32 %v3173, %v3167
      %v3175 = vrcp.pop %v3174
      %v3176 = vmul.f32 1.0, %v3175
      %v3177 = vmul.f32 %v3153, %v3176
      %v3178 = vmul.f32 %v3155, %v3176
      %v3179 = vmul.f32 %v3157, %v3176
      %v3180 = vmul.f32 %v3159, %v3176
      %v3181 = vmul.f32 %v3161, %v3176
      %v3182 = vmul.f32 %v3163, %v3176
      %v3183 = vmul.f32 %v3165, %v3176
      %v3184 = vmul.f32 %v3167, %v3176
      %v3185 = vmul.f32 %v3177, %v3077
      %v3186 = vmul.f32 %v3177, %v3078
      %v3187 = vmul.f32 %v3177, %v3079
      %v3188 = vmul.f32 %v3177, %v3080
      %v3189 = vmul.f32 %v3178, %v3077
      %v3190 = vmul.f32 %v3178, %v3078
      %v3191 = vmul.f32 %v3178, %v3079
      %v3192 = vmul.f32 %v3178, %v3080
      %v3193 = vmul.f32 %v3179, %v3077
      %v3194 = vmul.f32 %v3179, %v3078
      %v3195 = vmul.f32 %v3179, %v3079
      %v3196 = vmul.f32 %v3179, %v3080
      %v3197 = vmul.f32 %v3180, %v3077
      %v3198 = vmul.f32 %v3180, %v3078
      %v3199 = vmul.f32 %v3180, %v3079
      %v3200 = vmul.f32 %v3180, %v3080
      %v3201 = vmul.f32 %v3181, %v3077
      %v3202 = vmul.f32 %v3181, %v3078
      %v3203 = vmul.f32 %v3181, %v3079
      %v3204 = vmul.f32 %v3181, %v3080
      %v3205 = vmul.f32 %v3182, %v3077
      %v3206 = vmul.f32 %v3182, %v3078
      %v3207 = vmul.f32 %v3182, %v3079
      %v3208 = vmul.f32 %v3182, %v3080
      %v3209 = vmul.f32 %v3183, %v3077
      %v3210 = vmul.f32 %v3183, %v3078
      %v3211 = vmul.f32 %v3183, %v3079
      %v3212 = vmul.f32 %v3183, %v3080
      %v3213 = vmul.f32 %v3184, %v3077
      %v3214 = vmul.f32 %v3184, %v3078
      %v3215 = vmul.f32 %v3184, %v3079
      %v3216 = vmul.f32 %v3184, %v3080
      %v3217 = vadd.f32 %v3041, %v3185
      %v3218 = vadd.f32 %v3042, %v3186
      %v3219 = vadd.f32 %v3043, %v3187
      %v3220 = vadd.f32 %v3044, %v3188
      %v3221 = vadd.f32 %v3045, %v3189
      %v3222 = vadd.f32 %v3046, %v3190
      %v3223 = vadd.f32 %v3047, %v3191
      %v3224 = vadd.f32 %v3048, %v3192
      %v3225 = vadd.f32 %v3049, %v3193
      %v3226 = vadd.f32 %v3050, %v3194
      %v3227 = vadd.f32 %v3051, %v3195
      %v3228 = vadd.f32 %v3052, %v3196
      %v3229 = vadd.f32 %v3053, %v3197
      %v3230 = vadd.f32 %v3054, %v3198
      %v3231 = vadd.f32 %v3055, %v3199
      %v3232 = vadd.f32 %v3056, %v3200
      %v3233 = vadd.f32 %v3057, %v3201
      %v3234 = vadd.f32 %v3058, %v3202
      %v3235 = vadd.f32 %v3059, %v3203
      %v3236 = vadd.f32 %v3060, %v3204
      %v3237 = vadd.f32 %v3061, %v3205
      %v3238 = vadd.f32 %v3062, %v3206
      %v3239 = vadd.f32 %v3063, %v3207
      %v3240 = vadd.f32 %v3064, %v3208
      %v3241 = vadd.f32 %v3065, %v3209
      %v3242 = vadd.f32 %v3066, %v3210
      %v3243 = vadd.f32 %v3067, %v3211
      %v3244 = vadd.f32 %v3068, %v3212
      %v3245 = vadd.f32 %v3069, %v3213
      %v3246 = vadd.f32 %v3070, %v3214
      %v3247 = vadd.f32 %v3071, %v3215
      %v3248 = vadd.f32 %v3072, %v3216
      %v3249 = vld [vmem:[%s1975] sm:$0xff]
      %v3250 = vld [vmem:[%s1975 + $0x8] sm:$0xff]
      %v3251 = vld [vmem:[%s1975 + $0x10] sm:$0xff]
      %v3252 = vld [vmem:[%s1975 + $0x18] sm:$0xff]
      %v3253 = vld [vmem:[%s1980] sm:$0xff]
      %v3254 = vld [vmem:[%s1980 + $0x8] sm:$0xff]
      %v3255 = vld [vmem:[%s1980 + $0x10] sm:$0xff]
      %v3256 = vld [vmem:[%s1980 + $0x18] sm:$0xff]
      %v3257 = vmul.f32 %v1985, %v3249
      %v3258 = vmul.f32 %v1989, %v3249
      %v3259 = vmul.f32 %v1993, %v3249
      %v3260 = vmul.f32 %v1997, %v3249
      %v3261 = vmul.f32 %v2001, %v3249
      %v3262 = vmul.f32 %v2005, %v3249
      %v3263 = vmul.f32 %v2009, %v3249
      %v3264 = vmul.f32 %v2013, %v3249
      %v3265 = vmul.f32 %v1986, %v3250
      %v3266 = vmul.f32 %v1990, %v3250
      %v3267 = vmul.f32 %v1994, %v3250
      %v3268 = vmul.f32 %v1998, %v3250
      %v3269 = vmul.f32 %v2002, %v3250
      %v3270 = vmul.f32 %v2006, %v3250
      %v3271 = vmul.f32 %v2010, %v3250
      %v3272 = vmul.f32 %v2014, %v3250
      %v3273 = vadd.f32 %v3257, %v3265
      %v3274 = vadd.f32 %v3258, %v3266
      %v3275 = vadd.f32 %v3259, %v3267
      %v3276 = vadd.f32 %v3260, %v3268
      %v3277 = vadd.f32 %v3261, %v3269
      %v3278 = vadd.f32 %v3262, %v3270
      %v3279 = vadd.f32 %v3263, %v3271
      %v3280 = vadd.f32 %v3264, %v3272
      %v3281 = vmul.f32 %v1987, %v3251
      %v3282 = vmul.f32 %v1991, %v3251
      %v3283 = vmul.f32 %v1995, %v3251
      %v3284 = vmul.f32 %v1999, %v3251
      %v3285 = vmul.f32 %v2003, %v3251
      %v3286 = vmul.f32 %v2007, %v3251
      %v3287 = vmul.f32 %v2011, %v3251
      %v3288 = vmul.f32 %v2015, %v3251
      %v3289 = vadd.f32 %v3273, %v3281
      %v3290 = vadd.f32 %v3274, %v3282
      %v3291 = vadd.f32 %v3275, %v3283
      %v3292 = vadd.f32 %v3276, %v3284
      %v3293 = vadd.f32 %v3277, %v3285
      %v3294 = vadd.f32 %v3278, %v3286
      %v3295 = vadd.f32 %v3279, %v3287
      %v3296 = vadd.f32 %v3280, %v3288
      %v3297 = vmul.f32 %v1988, %v3252
      %v3298 = vmul.f32 %v1992, %v3252
      %v3299 = vmul.f32 %v1996, %v3252
      %v3300 = vmul.f32 %v2000, %v3252
      %v3301 = vmul.f32 %v2004, %v3252
      %v3302 = vmul.f32 %v2008, %v3252
      %v3303 = vmul.f32 %v2012, %v3252
      %v3304 = vmul.f32 %v2016, %v3252
      %v3305 = vadd.f32 %v3289, %v3297
      %v3306 = vadd.f32 %v3290, %v3298
      %v3307 = vadd.f32 %v3291, %v3299
      %v3308 = vadd.f32 %v3292, %v3300
      %v3309 = vadd.f32 %v3293, %v3301
      %v3310 = vadd.f32 %v3294, %v3302
      %v3311 = vadd.f32 %v3295, %v3303
      %v3312 = vadd.f32 %v3296, %v3304
      %v3313 = vmax.f32 %v3305, %v3309
      %v3314 = vmax.f32 %v3306, %v3310
      %v3315 = vmax.f32 %v3307, %v3311
      %v3316 = vmax.f32 %v3308, %v3312
      %v3317 = vmax.f32 %v3313, %v3314
      %v3318 = vmax.f32 %v3315, %v3316
      %v3319 = vmax.f32 %v3317, %v3318
      %v3320 = vsub.f32 %v3305, %v3319
      %v3321 = vsub.f32 %v3306, %v3319
      %v3322 = vsub.f32 %v3307, %v3319
      %v3323 = vsub.f32 %v3308, %v3319
      %v3324 = vsub.f32 %v3309, %v3319
      %v3325 = vsub.f32 %v3310, %v3319
      %v3326 = vsub.f32 %v3311, %v3319
      %v3327 = vsub.f32 %v3312, %v3319
      %v3328 = vmul.f32 %v3320, 1.442695
      %v3329 = vpow.pop %v3328
      %v3330 = vmul.f32 %v3321, 1.442695
      %v3331 = vpow.pop %v3330
      %v3332 = vmul.f32 %v3322, 1.442695
      %v3333 = vpow.pop %v3332
      %v3334 = vmul.f32 %v3323, 1.442695
      %v3335 = vpow.pop %v3334
      %v3336 = vmul.f32 %v3324, 1.442695
      %v3337 = vpow.pop %v3336
      %v3338 = vmul.f32 %v3325, 1.442695
      %v3339 = vpow.pop %v3338
      %v3340 = vmul.f32 %v3326, 1.442695
      %v3341 = vpow.pop %v3340
      %v3342 = vmul.f32 %v3327, 1.442695
      %v3343 = vpow.pop %v3342
      %v3344 = vadd.f32 %v3329, %v3331
      %v3345 = vadd.f32 %v3344, %v3333
      %v3346 = vadd.f32 %v3345, %v3335
      %v3347 = vadd.f32 %v3346, %v3337
      %v3348 = vadd.f32 %v3347, %v3339
      %v3349 = vadd.f32 %v3348, %v3341
      %v3350 = vadd.f32 %v3349, %v3343
      %v3351 = vrcp.pop %v3350
      %v3352 = vmul.f32 1.0, %v3351
      %v3353 = vmul.f32 %v3329, %v3352
      %v3354 = vmul.f32 %v3331, %v3352
      %v3355 = vmul.f32 %v3333, %v3352
      %v3356 = vmul.f32 %v3335, %v3352
      %v3357 = vmul.f32 %v3337, %v3352
      %v3358 = vmul.f32 %v3339, %v3352
      %v3359 = vmul.f32 %v3341, %v3352
      %v3360 = vmul.f32 %v3343, %v3352
      %v3361 = vmul.f32 %v3353, %v3253
      %v3362 = vmul.f32 %v3353, %v3254
      %v3363 = vmul.f32 %v3353, %v3255
      %v3364 = vmul.f32 %v3353, %v3256
      %v3365 = vmul.f32 %v3354, %v3253
      %v3366 = vmul.f32 %v3354, %v3254
      %v3367 = vmul.f32 %v3354, %v3255
      %v3368 = vmul.f32 %v3354, %v3256
      %v3369 = vmul.f32 %v3355, %v3253
      %v3370 = vmul.f32 %v3355, %v3254
      %v3371 = vmul.f32 %v3355, %v3255
      %v3372 = vmul.f32 %v3355, %v3256
      %v3373 = vmul.f32 %v3356, %v3253
      %v3374 = vmul.f32 %v3356, %v3254
      %v3375 = vmul.f32 %v3356, %v3255
      %v3376 = vmul.f32 %v3356, %v3256
      %v3377 = vmul.f32 %v3357, %v3253
      %v3378 = vmul.f32 %v3357, %v3254
      %v3379 = vmul.f32 %v3357, %v3255
      %v3380 = vmul.f32 %v3357, %v3256
      %v3381 = vmul.f32 %v3358, %v3253
      %v3382 = vmul.f32 %v3358, %v3254
      %v3383 = vmul.f32 %v3358, %v3255
      %v3384 = vmul.f32 %v3358, %v3256
      %v3385 = vmul.f32 %v3359, %v3253
      %v3386 = vmul.f32 %v3359, %v3254
      %v3387 = vmul.f32 %v3359, %v3255
      %v3388 = vmul.f32 %v3359, %v3256
      %v3389 = vmul.f32 %v3360, %v3253
      %v3390 = vmul.f32 %v3360, %v3254
      %v3391 = vmul.f32 %v3360, %v3255
      %v3392 = vmul.f32 %v3360, %v3256
      %v3393 = vadd.f32 %v3217, %v3361
      %v3394 = vadd.f32 %v3218, %v3362
      %v3395 = vadd.f32 %v3219, %v3363
      %v3396 = vadd.f32 %v3220, %v3364
      %v3397 = vadd.f32 %v3221, %v3365
      %v3398 = vadd.f32 %v3222, %v3366
      %v3399 = vadd.f32 %v3223, %v3367
      %v3400 = vadd.f32 %v3224, %v3368
      %v3401 = vadd.f32 %v3225, %v3369
      %v3402 = vadd.f32 %v3226, %v3370
      %v3403 = vadd.f32 %v3227, %v3371
      %v3404 = vadd.f32 %v3228, %v3372
      %v3405 = vadd.f32 %v3229, %v3373
      %v3406 = vadd.f32 %v3230, %v3374
      %v3407 = vadd.f32 %v3231, %v3375
      %v3408 = vadd.f32 %v3232, %v3376
      %v3409 = vadd.f32 %v3233, %v3377
      %v3410 = vadd.f32 %v3234, %v3378
      %v3411 = vadd.f32 %v3235, %v3379
      %v3412 = vadd.f32 %v3236, %v3380
      %v3413 = vadd.f32 %v3237, %v3381
      %v3414 = vadd.f32 %v3238, %v3382
      %v3415 = vadd.f32 %v3239, %v3383
      %v3416 = vadd.f32 %v3240, %v3384
      %v3417 = vadd.f32 %v3241, %v3385
      %v3418 = vadd.f32 %v3242, %v3386
      %v3419 = vadd.f32 %v3243, %v3387
      %v3420 = vadd.f32 %v3244, %v3388
      %v3421 = vadd.f32 %v3245, %v3389
      %v3422 = vadd.f32 %v3246, %v3390
      %v3423 = vadd.f32 %v3247, %v3391
      %v3424 = vadd.f32 %v3248, %v3392
      %v3425 = vld [vmem:[%s3] sm:$0xff]
      %v3426 = vld [vmem:[%s3 + $0x8] sm:$0xff]
      %v3427 = vld [vmem:[%s3 + $0x10] sm:$0xff]
      %v3428 = vld [vmem:[%s3 + $0x18] sm:$0xff]
      %v3429 = vld [vmem:[%s4] sm:$0xff]
      %v3430 = vld [vmem:[%s4 + $0x8] sm:$0xff]
      %v3431 = vld [vmem:[%s4 + $0x10] sm:$0xff]
      %v3432 = vld [vmem:[%s4 + $0x18] sm:$0xff]
      %v3433 = vld [vmem:[%s262] sm:$0xff]
      %v3434 = vld [vmem:[%s262 + $0x8] sm:$0xff]
      %v3435 = vld [vmem:[%s262 + $0x10] sm:$0xff]
      %v3436 = vld [vmem:[%s262 + $0x18] sm:$0xff]
      %3438 = vset.pattern.permute.xlu0 0
      %3439 = vperm.xlu0 %3438, %v3429
      %v3440 = vpop.permute.xlu0 %3439
      %3443 = vset.pattern.permute.xlu0 0
      %3444 = vperm.xlu0 %3443, %v3430
      %v3445 = vpop.permute.xlu0 %3444
      %3448 = vset.pattern.permute.xlu0 0
      %3449 = vperm.xlu0 %3448, %v3431
      %v3450 = vpop.permute.xlu0 %3449
      %3453 = vset.pattern.permute.xlu0 0
      %3454 = vperm.xlu0 %3453, %v3432
      %v3455 = vpop.permute.xlu0 %3454
      %vm3457 = vcmask 523264
      %v3459 = vsel %vm3457, %v3425, 0
      %v3462 = vsel %vm3457, %v3426, 0
      %v3465 = vsel %vm3457, %v3427, 0
      %v3468 = vsel %vm3457, %v3428, 0
      %3470 = vmatprep.subr.mxu0 0.0
      %3471 = vmatpush1.msra.mxu0 %v3433
      %3472 = vmatprep.subr.mxu0 0.0
      %3473 = vmatpush1.msra.mxu0 %v3434
      %3474 = vmatprep.subr.mxu0 0.0
      %3475 = vmatpush1.msra.mxu0 %v3435
      %3476 = vmatprep.subr.mxu0 0.0
      %3477 = vmatpush1.msra.mxu0 %v3436
      %3478 = vmatprep.subr.mxu0 0.0
      %3479 = vmatpush1.msra.mxu0 %v3393
      %3480 = vmatprep.subr.mxu0 0.0
      %3481 = vmatpush1.msra.mxu0 %v3394
      %3482 = vmatprep.subr.mxu0 0.0
      %3483 = vmatpush1.msra.mxu0 %v3395
      %3484 = vmatprep.subr.mxu0 0.0
      %3485 = vmatpush1.msra.mxu0 %v3396
      %3486 = vmatprep.subr.mxu0 0.0
      %3487 = vmatpush1.msra.mxu0 0.0
      %3488 = vmatprep.subr.mxu0 0.0
      %3489 = vmatpush1.msra.mxu0 0.0
      %3490 = vmatprep.subr.mxu0 0.0
      %3491 = vmatpush1.msra.mxu0 0.0
      %3492 = vmatprep.subr.mxu0 0.0
      %3493 = vmatpush1.msra.mxu0 0.0
      %3494 = vmatprep.subr.mxu0 0.0
      %3495 = vmatpush1.msra.mxu0 0.0
      %3496 = vmatprep.subr.mxu0 0.0
      %3497 = vmatpush1.msra.mxu0 0.0
      %3498 = vmatprep.subr.mxu0 0.0
      %3499 = vmatpush1.msra.mxu0 0.0
      %3500 = vmatprep.subr.mxu0 0.0
      %3501 = vmatpush1.msra.mxu0 0.0
      %3502 = vmatprep.subr.mxu0 0.0
      %3503 = vmatpush1.msra.mxu0 0.0
      %3504 = vmatprep.subr.mxu0 0.0
      %3505 = vmatpush1.msra.mxu0 0.0
      %3506 = vmatprep.subr.mxu0 0.0
      %3507 = vmatpush1.msra.mxu0 0.0
      %3508 = vmatprep.subr.mxu0 0.0
      %3509 = vmatpush1.msra.mxu0 0.0
      %3510 = vmatprep.subr.mxu0 0.0
      %3511 = vmatpush1.msra.mxu0 0.0
      %3512 = vmatprep.subr.mxu0 0.0
      %3513 = vmatpush1.msra.mxu0 0.0
      %3514 = vmatprep.subr.mxu0 0.0
      %3515 = vmatpush1.msra.mxu0 0.0
      %3516 = vmatprep.subr.mxu0 0.0
      %3517 = vmatpush1.msra.mxu0 0.0
      %3518 = vmatprep.subr.mxu0 0.0
      %3519 = vmatpush1.msra.mxu0 0.0
      %3520 = vmatprep.subr.mxu0 0.0
      %3521 = vmatpush1.msra.mxu0 0.0
      %3522 = vmatprep.subr.mxu0 0.0
      %3523 = vmatpush1.msra.mxu0 0.0
      %3524 = vmatprep.subr.mxu0 0.0
      %3525 = vmatpush1.msra.mxu0 0.0
      %3526 = vmatprep.subr.mxu0 0.0
      %3527 = vmatpush1.msra.mxu0 0.0
      %3528 = vmatprep.subr.mxu0 0.0
      %3529 = vmatpush1.msra.mxu0 0.0
      %3530 = vmatprep.subr.mxu0 0.0
      %3531 = vmatpush1.msra.mxu0 0.0
      %3532 = vmatprep.subr.mxu0 0.0
      %3533 = vmatpush1.msra.mxu0 0.0
      %3534 = vmatprep.mubr.f32.mxu0 0.0
      %3535 = vmatmul.mubr.f32.gmra.mrb[0].mxu0 %v3459
      %v3536 = vpop.f32.mrb[0].mxu0
      %v3537 = vadd.f32 %v3440, %v3536
      %v3538 = vpop.f32.mrb[0].mxu0
      %3539 = vmatprep.mubr.f32.mxu0 0.0
      %3540 = vmatmul.mubr.f32.gmra.mrb[0].mxu0 %v3462
      %v3541 = vpop.f32.mrb[0].mxu0
      %v3542 = vadd.f32 %v3445, %v3541
      %v3543 = vpop.f32.mrb[0].mxu0
      %3544 = vmatprep.mubr.f32.mxu0 0.0
      %3545 = vmatmul.mubr.f32.gmra.mrb[0].mxu0 %v3465
      %v3546 = vpop.f32.mrb[0].mxu0
      %v3547 = vadd.f32 %v3450, %v3546
      %v3548 = vpop.f32.mrb[0].mxu0
      %3549 = vmatprep.mubr.f32.mxu0 0.0
      %3550 = vmatmul.mubr.f32.gmra.mrb[0].mxu0 %v3468
      %v3551 = vpop.f32.mrb[0].mxu0
      %v3552 = vadd.f32 %v3455, %v3551
      %v3553 = vpop.f32.mrb[0].mxu0
      %3554 = vdwg.mxu0
      %3555 = vst [vmem:[%s275] sm:$0xff] %v3537
      %3556 = vst [vmem:[%s275 + $0x8] sm:$0xff] %v3542
      %3557 = vst [vmem:[%s275 + $0x10] sm:$0xff] %v3547
      %3558 = vst [vmem:[%s275 + $0x18] sm:$0xff] %v3552
      %v3559 = vld [vmem:[%s550] sm:$0xff]
      %v3560 = vld [vmem:[%s550 + $0x8] sm:$0xff]
      %v3561 = vld [vmem:[%s550 + $0x10] sm:$0xff]
      %v3562 = vld [vmem:[%s550 + $0x18] sm:$0xff]
      %3563 = vmatprep.subr.mxu0 0.0
      %3564 = vmatpush1.msra.mxu0 %v3559
      %3565 = vmatprep.subr.mxu0 0.0
      %3566 = vmatpush1.msra.mxu0 %v3560
      %3567 = vmatprep.subr.mxu0 0.0
      %3568 = vmatpush1.msra.mxu0 %v3561
      %3569 = vmatprep.subr.mxu0 0.0
      %3570 = vmatpush1.msra.mxu0 %v3562
      %3571 = vmatprep.subr.mxu0 0.0
      %3572 = vmatpush1.msra.mxu0 %v3397
      %3573 = vmatprep.subr.mxu0 0.0
      %3574 = vmatpush1.msra.mxu0 %v3398
      %3575 = vmatprep.subr.mxu0 0.0
      %3576 = vmatpush1.msra.mxu0 %v3399
      %3577 = vmatprep.subr.mxu0 0.0
      %3578 = vmatpush1.msra.mxu0 %v3400
      %3579 = vmatprep.subr.mxu0 0.0
      %3580 = vmatpush1.msra.mxu0 0.0
      %3581 = vmatprep.subr.mxu0 0.0
      %3582 = vmatpush1.msra.mxu0 0.0
      %3583 = vmatprep.subr.mxu0 0.0
      %3584 = vmatpush1.msra.mxu0 0.0
      %3585 = vmatprep.subr.mxu0 0.0
      %3586 = vmatpush1.msra.mxu0 0.0
      %3587 = vmatprep.subr.mxu0 0.0
      %3588 = vmatpush1.msra.mxu0 0.0
      %3589 = vmatprep.subr.mxu0 0.0
      %3590 = vmatpush1.msra.mxu0 0.0
      %3591 = vmatprep.subr.mxu0 0.0
      %3592 = vmatpush1.msra.mxu0 0.0
      %3593 = vmatprep.subr.mxu0 0.0
      %3594 = vmatpush1.msra.mxu0 0.0
      %3595 = vmatprep.subr.mxu0 0.0
      %3596 = vmatpush1.msra.mxu0 0.0
      %3597 = vmatprep.subr.mxu0 0.0
      %3598 = vmatpush1.msra.mxu0 0.0
      %3599 = vmatprep.subr.mxu0 0.0
      %3600 = vmatpush1.msra.mxu0 0.0
      %3601 = vmatprep.subr.mxu0 0.0
      %3602 = vmatpush1.msra.mxu0 0.0
      %3603 = vmatprep.subr.mxu0 0.0
      %3604 = vmatpush1.msra.mxu0 0.0
      %3605 = vmatprep.subr.mxu0 0.0
      %3606 = vmatpush1.msra.mxu0 0.0
      %3607 = vmatprep.subr.mxu0 0.0
      %3608 = vmatpush1.msra.mxu0 0.0
      %3609 = vmatprep.subr.mxu0 0.0
      %3610 = vmatpush1.msra.mxu0 0.0
      %3611 = vmatprep.subr.mxu0 0.0
      %3612 = vmatpush1.msra.mxu0 0.0
      %3613 = vmatprep.subr.mxu0 0.0
      %3614 = vmatpush1.msra.mxu0 0.0
      %3615 = vmatprep.subr.mxu0 0.0
      %3616 = vmatpush1.msra.mxu0 0.0
      %3617 = vmatprep.subr.mxu0 0.0
      %3618 = vmatpush1.msra.mxu0 0.0
      %3619 = vmatprep.subr.mxu0 0.0
      %3620 = vmatpush1.msra.mxu0 0.0
      %3621 = vmatprep.subr.mxu0 0.0
      %3622 = vmatpush1.msra.mxu0 0.0
      %3623 = vmatprep.subr.mxu0 0.0
      %3624 = vmatpush1.msra.mxu0 0.0
      %3625 = vmatprep.subr.mxu0 0.0
      %3626 = vmatpush1.msra.mxu0 0.0
      %3627 = vmatprep.mubr.f32.mxu0 0.0
      %3628 = vmatmul.mubr.f32.gmra.mrb[0].mxu0 %v3459
      %v3629 = vpop.f32.mrb[0].mxu0
      %v3630 = vadd.f32 %v3440, %v3629
      %v3631 = vpop.f32.mrb[0].mxu0
      %3632 = vmatprep.mubr.f32.mxu0 0.0
      %3633 = vmatmul.mubr.f32.gmra.mrb[0].mxu0 %v3462
      %v3634 = vpop.f32.mrb[0].mxu0
      %v3635 = vadd.f32 %v3445, %v3634
      %v3636 = vpop.f32.mrb[0].mxu0
      %3637 = vmatprep.mubr.f32.mxu0 0.0
      %3638 = vmatmul.mubr.f32.gmra.mrb[0].mxu0 %v3465
      %v3639 = vpop.f32.mrb[0].mxu0
      %v3640 = vadd.f32 %v3450, %v3639
      %v3641 = vpop.f32.mrb[0].mxu0
      %3642 = vmatprep.mubr.f32.mxu0 0.0
      %3643 = vmatmul.mubr.f32.gmra.mrb[0].mxu0 %v3468
      %v3644 = vpop.f32.mrb[0].mxu0
      %v3645 = vadd.f32 %v3455, %v3644
      %v3646 = vpop.f32.mrb[0].mxu0
      %3647 = vdwg.mxu0
      %s3648 = scalar_lea.vmem %s275, 32
      %3649 = vst [vmem:[%s3648] sm:$0xff] %v3630
      %3650 = vst [vmem:[%s3648 + $0x8] sm:$0xff] %v3635
      %3651 = vst [vmem:[%s3648 + $0x10] sm:$0xff] %v3640
      %3652 = vst [vmem:[%s3648 + $0x18] sm:$0xff] %v3645
      %v3653 = vld [vmem:[%s755] sm:$0xff]
      %v3654 = vld [vmem:[%s755 + $0x8] sm:$0xff]
      %v3655 = vld [vmem:[%s755 + $0x10] sm:$0xff]
      %v3656 = vld [vmem:[%s755 + $0x18] sm:$0xff]
      %3657 = vmatprep.subr.mxu0 0.0
      %3658 = vmatpush1.msra.mxu0 %v3653
      %3659 = vmatprep.subr.mxu0 0.0
      %3660 = vmatpush1.msra.mxu0 %v3654
      %3661 = vmatprep.subr.mxu0 0.0
      %3662 = vmatpush1.msra.mxu0 %v3655
      %3663 = vmatprep.subr.mxu0 0.0
      %3664 = vmatpush1.msra.mxu0 %v3656
      %3665 = vmatprep.subr.mxu0 0.0
      %3666 = vmatpush1.msra.mxu0 %v3401
      %3667 = vmatprep.subr.mxu0 0.0
      %3668 = vmatpush1.msra.mxu0 %v3402
      %3669 = vmatprep.subr.mxu0 0.0
      %3670 = vmatpush1.msra.mxu0 %v3403
      %3671 = vmatprep.subr.mxu0 0.0
      %3672 = vmatpush1.msra.mxu0 %v3404
      %3673 = vmatprep.subr.mxu0 0.0
      %3674 = vmatpush1.msra.mxu0 0.0
      %3675 = vmatprep.subr.mxu0 0.0
      %3676 = vmatpush1.msra.mxu0 0.0
      %3677 = vmatprep.subr.mxu0 0.0
      %3678 = vmatpush1.msra.mxu0 0.0
      %3679 = vmatprep.subr.mxu0 0.0
      %3680 = vmatpush1.msra.mxu0 0.0
      %3681 = vmatprep.subr.mxu0 0.0
      %3682 = vmatpush1.msra.mxu0 0.0
      %3683 = vmatprep.subr.mxu0 0.0
      %3684 = vmatpush1.msra.mxu0 0.0
      %3685 = vmatprep.subr.mxu0 0.0
      %3686 = vmatpush1.msra.mxu0 0.0
      %3687 = vmatprep.subr.mxu0 0.0
      %3688 = vmatpush1.msra.mxu0 0.0
      %3689 = vmatprep.subr.mxu0 0.0
      %3690 = vmatpush1.msra.mxu0 0.0
      %3691 = vmatprep.subr.mxu0 0.0
      %3692 = vmatpush1.msra.mxu0 0.0
      %3693 = vmatprep.subr.mxu0 0.0
      %3694 = vmatpush1.msra.mxu0 0.0
      %3695 = vmatprep.subr.mxu0 0.0
      %3696 = vmatpush1.msra.mxu0 0.0
      %3697 = vmatprep.subr.mxu0 0.0
      %3698 = vmatpush1.msra.mxu0 0.0
      %3699 = vmatprep.subr.mxu0 0.0
      %3700 = vmatpush1.msra.mxu0 0.0
      %3701 = vmatprep.subr.mxu0 0.0
      %3702 = vmatpush1.msra.mxu0 0.0
      %3703 = vmatprep.subr.mxu0 0.0
      %3704 = vmatpush1.msra.mxu0 0.0
      %3705 = vmatprep.subr.mxu0 0.0
      %3706 = vmatpush1.msra.mxu0 0.0
      %3707 = vmatprep.subr.mxu0 0.0
      %3708 = vmatpush1.msra.mxu0 0.0
      %3709 = vmatprep.subr.mxu0 0.0
      %3710 = vmatpush1.msra.mxu0 0.0
      %3711 = vmatprep.subr.mxu0 0.0
      %3712 = vmatpush1.msra.mxu0 0.0
      %3713 = vmatprep.subr.mxu0 0.0
      %3714 = vmatpush1.msra.mxu0 0.0
      %3715 = vmatprep.subr.mxu0 0.0
      %3716 = vmatpush1.msra.mxu0 0.0
      %3717 = vmatprep.subr.mxu0 0.0
      %3718 = vmatpush1.msra.mxu0 0.0
      %3719 = vmatprep.subr.mxu0 0.0
      %3720 = vmatpush1.msra.mxu0 0.0
      %3721 = vmatprep.mubr.f32.mxu0 0.0
      %3722 = vmatmul.mubr.f32.gmra.mrb[0].mxu0 %v3459
      %v3723 = vpop.f32.mrb[0].mxu0
      %v3724 = vadd.f32 %v3440, %v3723
      %v3725 = vpop.f32.mrb[0].mxu0
      %3726 = vmatprep.mubr.f32.mxu0 0.0
      %3727 = vmatmul.mubr.f32.gmra.mrb[0].mxu0 %v3462
      %v3728 = vpop.f32.mrb[0].mxu0
      %v3729 = vadd.f32 %v3445, %v3728
      %v3730 = vpop.f32.mrb[0].mxu0
      %3731 = vmatprep.mubr.f32.mxu0 0.0
      %3732 = vmatmul.mubr.f32.gmra.mrb[0].mxu0 %v3465
      %v3733 = vpop.f32.mrb[0].mxu0
      %v3734 = vadd.f32 %v3450, %v3733
      %v3735 = vpop.f32.mrb[0].mxu0
      %3736 = vmatprep.mubr.f32.mxu0 0.0
      %3737 = vmatmul.mubr.f32.gmra.mrb[0].mxu0 %v3468
      %v3738 = vpop.f32.mrb[0].mxu0
      %v3739 = vadd.f32 %v3455, %v3738
      %v3740 = vpop.f32.mrb[0].mxu0
      %3741 = vdwg.mxu0
      %s3742 = scalar_lea.vmem %s275, 64
      %3743 = vst [vmem:[%s3742] sm:$0xff] %v3724
      %3744 = vst [vmem:[%s3742 + $0x8] sm:$0xff] %v3729
      %3745 = vst [vmem:[%s3742 + $0x10] sm:$0xff] %v3734
      %3746 = vst [vmem:[%s3742 + $0x18] sm:$0xff] %v3739
      %v3747 = vld [vmem:[%s960] sm:$0xff]
      %v3748 = vld [vmem:[%s960 + $0x8] sm:$0xff]
      %v3749 = vld [vmem:[%s960 + $0x10] sm:$0xff]
      %v3750 = vld [vmem:[%s960 + $0x18] sm:$0xff]
      %3751 = vmatprep.subr.mxu0 0.0
      %3752 = vmatpush1.msra.mxu0 %v3747
      %3753 = vmatprep.subr.mxu0 0.0
      %3754 = vmatpush1.msra.mxu0 %v3748
      %3755 = vmatprep.subr.mxu0 0.0
      %3756 = vmatpush1.msra.mxu0 %v3749
      %3757 = vmatprep.subr.mxu0 0.0
      %3758 = vmatpush1.msra.mxu0 %v3750
      %3759 = vmatprep.subr.mxu0 0.0
      %3760 = vmatpush1.msra.mxu0 %v3405
      %3761 = vmatprep.subr.mxu0 0.0
      %3762 = vmatpush1.msra.mxu0 %v3406
      %3763 = vmatprep.subr.mxu0 0.0
      %3764 = vmatpush1.msra.mxu0 %v3407
      %3765 = vmatprep.subr.mxu0 0.0
      %3766 = vmatpush1.msra.mxu0 %v3408
      %3767 = vmatprep.subr.mxu0 0.0
      %3768 = vmatpush1.msra.mxu0 0.0
      %3769 = vmatprep.subr.mxu0 0.0
      %3770 = vmatpush1.msra.mxu0 0.0
      %3771 = vmatprep.subr.mxu0 0.0
      %3772 = vmatpush1.msra.mxu0 0.0
      %3773 = vmatprep.subr.mxu0 0.0
      %3774 = vmatpush1.msra.mxu0 0.0
      %3775 = vmatprep.subr.mxu0 0.0
      %3776 = vmatpush1.msra.mxu0 0.0
      %3777 = vmatprep.subr.mxu0 0.0
      %3778 = vmatpush1.msra.mxu0 0.0
      %3779 = vmatprep.subr.mxu0 0.0
      %3780 = vmatpush1.msra.mxu0 0.0
      %3781 = vmatprep.subr.mxu0 0.0
      %3782 = vmatpush1.msra.mxu0 0.0
      %3783 = vmatprep.subr.mxu0 0.0
      %3784 = vmatpush1.msra.mxu0 0.0
      %3785 = vmatprep.subr.mxu0 0.0
      %3786 = vmatpush1.msra.mxu0 0.0
      %3787 = vmatprep.subr.mxu0 0.0
      %3788 = vmatpush1.msra.mxu0 0.0
      %3789 = vmatprep.subr.mxu0 0.0
      %3790 = vmatpush1.msra.mxu0 0.0
      %3791 = vmatprep.subr.mxu0 0.0
      %3792 = vmatpush1.msra.mxu0 0.0
      %3793 = vmatprep.subr.mxu0 0.0
      %3794 = vmatpush1.msra.mxu0 0.0
      %3795 = vmatprep.subr.mxu0 0.0
      %3796 = vmatpush1.msra.mxu0 0.0
      %3797 = vmatprep.subr.mxu0 0.0
      %3798 = vmatpush1.msra.mxu0 0.0
      %3799 = vmatprep.subr.mxu0 0.0
      %3800 = vmatpush1.msra.mxu0 0.0
      %3801 = vmatprep.subr.mxu0 0.0
      %3802 = vmatpush1.msra.mxu0 0.0
      %3803 = vmatprep.subr.mxu0 0.0
      %3804 = vmatpush1.msra.mxu0 0.0
      %3805 = vmatprep.subr.mxu0 0.0
      %3806 = vmatpush1.msra.mxu0 0.0
      %3807 = vmatprep.subr.mxu0 0.0
      %3808 = vmatpush1.msra.mxu0 0.0
      %3809 = vmatprep.subr.mxu0 0.0
      %3810 = vmatpush1.msra.mxu0 0.0
      %3811 = vmatprep.subr.mxu0 0.0
      %3812 = vmatpush1.msra.mxu0 0.0
      %3813 = vmatprep.subr.mxu0 0.0
      %3814 = vmatpush1.msra.mxu0 0.0
      %3815 = vmatprep.mubr.f32.mxu0 0.0
      %3816 = vmatmul.mubr.f32.gmra.mrb[0].mxu0 %v3459
      %v3817 = vpop.f32.mrb[0].mxu0
      %v3818 = vadd.f32 %v3440, %v3817
      %v3819 = vpop.f32.mrb[0].mxu0
      %3820 = vmatprep.mubr.f32.mxu0 0.0
      %3821 = vmatmul.mubr.f32.gmra.mrb[0].mxu0 %v3462
      %v3822 = vpop.f32.mrb[0].mxu0
      %v3823 = vadd.f32 %v3445, %v3822
      %v3824 = vpop.f32.mrb[0].mxu0
      %3825 = vmatprep.mubr.f32.mxu0 0.0
      %3826 = vmatmul.mubr.f32.gmra.mrb[0].mxu0 %v3465
      %v3827 = vpop.f32.mrb[0].mxu0
      %v3828 = vadd.f32 %v3450, %v3827
      %v3829 = vpop.f32.mrb[0].mxu0
      %3830 = vmatprep.mubr.f32.mxu0 0.0
      %3831 = vmatmul.mubr.f32.gmra.mrb[0].mxu0 %v3468
      %v3832 = vpop.f32.mrb[0].mxu0
      %v3833 = vadd.f32 %v3455, %v3832
      %v3834 = vpop.f32.mrb[0].mxu0
      %3835 = vdwg.mxu0
      %s3836 = scalar_lea.vmem %s275, 96
      %3837 = vst [vmem:[%s3836] sm:$0xff] %v3818
      %3838 = vst [vmem:[%s3836 + $0x8] sm:$0xff] %v3823
      %3839 = vst [vmem:[%s3836 + $0x10] sm:$0xff] %v3828
      %3840 = vst [vmem:[%s3836 + $0x18] sm:$0xff] %v3833
      %v3841 = vld [vmem:[%s1165] sm:$0xff]
      %v3842 = vld [vmem:[%s1165 + $0x8] sm:$0xff]
      %v3843 = vld [vmem:[%s1165 + $0x10] sm:$0xff]
      %v3844 = vld [vmem:[%s1165 + $0x18] sm:$0xff]
      %3845 = vmatprep.subr.mxu0 0.0
      %3846 = vmatpush1.msra.mxu0 %v3841
      %3847 = vmatprep.subr.mxu0 0.0
      %3848 = vmatpush1.msra.mxu0 %v3842
      %3849 = vmatprep.subr.mxu0 0.0
      %3850 = vmatpush1.msra.mxu0 %v3843
      %3851 = vmatprep.subr.mxu0 0.0
      %3852 = vmatpush1.msra.mxu0 %v3844
      %3853 = vmatprep.subr.mxu0 0.0
      %3854 = vmatpush1.msra.mxu0 %v3409
      %3855 = vmatprep.subr.mxu0 0.0
      %3856 = vmatpush1.msra.mxu0 %v3410
      %3857 = vmatprep.subr.mxu0 0.0
      %3858 = vmatpush1.msra.mxu0 %v3411
      %3859 = vmatprep.subr.mxu0 0.0
      %3860 = vmatpush1.msra.mxu0 %v3412
      %3861 = vmatprep.subr.mxu0 0.0
      %3862 = vmatpush1.msra.mxu0 0.0
      %3863 = vmatprep.subr.mxu0 0.0
      %3864 = vmatpush1.msra.mxu0 0.0
      %3865 = vmatprep.subr.mxu0 0.0
      %3866 = vmatpush1.msra.mxu0 0.0
      %3867 = vmatprep.subr.mxu0 0.0
      %3868 = vmatpush1.msra.mxu0 0.0
      %3869 = vmatprep.subr.mxu0 0.0
      %3870 = vmatpush1.msra.mxu0 0.0
      %3871 = vmatprep.subr.mxu0 0.0
      %3872 = vmatpush1.msra.mxu0 0.0
      %3873 = vmatprep.subr.mxu0 0.0
      %3874 = vmatpush1.msra.mxu0 0.0
      %3875 = vmatprep.subr.mxu0 0.0
      %3876 = vmatpush1.msra.mxu0 0.0
      %3877 = vmatprep.subr.mxu0 0.0
      %3878 = vmatpush1.msra.mxu0 0.0
      %3879 = vmatprep.subr.mxu0 0.0
      %3880 = vmatpush1.msra.mxu0 0.0
      %3881 = vmatprep.subr.mxu0 0.0
      %3882 = vmatpush1.msra.mxu0 0.0
      %3883 = vmatprep.subr.mxu0 0.0
      %3884 = vmatpush1.msra.mxu0 0.0
      %3885 = vmatprep.subr.mxu0 0.0
      %3886 = vmatpush1.msra.mxu0 0.0
      %3887 = vmatprep.subr.mxu0 0.0
      %3888 = vmatpush1.msra.mxu0 0.0
      %3889 = vmatprep.subr.mxu0 0.0
      %3890 = vmatpush1.msra.mxu0 0.0
      %3891 = vmatprep.subr.mxu0 0.0
      %3892 = vmatpush1.msra.mxu0 0.0
      %3893 = vmatprep.subr.mxu0 0.0
      %3894 = vmatpush1.msra.mxu0 0.0
      %3895 = vmatprep.subr.mxu0 0.0
      %3896 = vmatpush1.msra.mxu0 0.0
      %3897 = vmatprep.subr.mxu0 0.0
      %3898 = vmatpush1.msra.mxu0 0.0
      %3899 = vmatprep.subr.mxu0 0.0
      %3900 = vmatpush1.msra.mxu0 0.0
      %3901 = vmatprep.subr.mxu0 0.0
      %3902 = vmatpush1.msra.mxu0 0.0
      %3903 = vmatprep.subr.mxu0 0.0
      %3904 = vmatpush1.msra.mxu0 0.0
      %3905 = vmatprep.subr.mxu0 0.0
      %3906 = vmatpush1.msra.mxu0 0.0
      %3907 = vmatprep.subr.mxu0 0.0
      %3908 = vmatpush1.msra.mxu0 0.0
      %3909 = vmatprep.mubr.f32.mxu0 0.0
      %3910 = vmatmul.mubr.f32.gmra.mrb[0].mxu0 %v3459
      %v3911 = vpop.f32.mrb[0].mxu0
      %v3912 = vadd.f32 %v3440, %v3911
      %v3913 = vpop.f32.mrb[0].mxu0
      %3914 = vmatprep.mubr.f32.mxu0 0.0
      %3915 = vmatmul.mubr.f32.gmra.mrb[0].mxu0 %v3462
      %v3916 = vpop.f32.mrb[0].mxu0
      %v3917 = vadd.f32 %v3445, %v3916
      %v3918 = vpop.f32.mrb[0].mxu0
      %3919 = vmatprep.mubr.f32.mxu0 0.0
      %3920 = vmatmul.mubr.f32.gmra.mrb[0].mxu0 %v3465
      %v3921 = vpop.f32.mrb[0].mxu0
      %v3922 = vadd.f32 %v3450, %v3921
      %v3923 = vpop.f32.mrb[0].mxu0
      %3924 = vmatprep.mubr.f32.mxu0 0.0
      %3925 = vmatmul.mubr.f32.gmra.mrb[0].mxu0 %v3468
      %v3926 = vpop.f32.mrb[0].mxu0
      %v3927 = vadd.f32 %v3455, %v3926
      %v3928 = vpop.f32.mrb[0].mxu0
      %3929 = vdwg.mxu0
      %s3930 = scalar_lea.vmem %s275, 128
      %3931 = vst [vmem:[%s3930] sm:$0xff] %v3912
      %3932 = vst [vmem:[%s3930 + $0x8] sm:$0xff] %v3917
      %3933 = vst [vmem:[%s3930 + $0x10] sm:$0xff] %v3922
      %3934 = vst [vmem:[%s3930 + $0x18] sm:$0xff] %v3927
      %v3935 = vld [vmem:[%s1370] sm:$0xff]
      %v3936 = vld [vmem:[%s1370 + $0x8] sm:$0xff]
      %v3937 = vld [vmem:[%s1370 + $0x10] sm:$0xff]
      %v3938 = vld [vmem:[%s1370 + $0x18] sm:$0xff]
      %3939 = vmatprep.subr.mxu0 0.0
      %3940 = vmatpush1.msra.mxu0 %v3935
      %3941 = vmatprep.subr.mxu0 0.0
      %3942 = vmatpush1.msra.mxu0 %v3936
      %3943 = vmatprep.subr.mxu0 0.0
      %3944 = vmatpush1.msra.mxu0 %v3937
      %3945 = vmatprep.subr.mxu0 0.0
      %3946 = vmatpush1.msra.mxu0 %v3938
      %3947 = vmatprep.subr.mxu0 0.0
      %3948 = vmatpush1.msra.mxu0 %v3413
      %3949 = vmatprep.subr.mxu0 0.0
      %3950 = vmatpush1.msra.mxu0 %v3414
      %3951 = vmatprep.subr.mxu0 0.0
      %3952 = vmatpush1.msra.mxu0 %v3415
      %3953 = vmatprep.subr.mxu0 0.0
      %3954 = vmatpush1.msra.mxu0 %v3416
      %3955 = vmatprep.subr.mxu0 0.0
      %3956 = vmatpush1.msra.mxu0 0.0
      %3957 = vmatprep.subr.mxu0 0.0
      %3958 = vmatpush1.msra.mxu0 0.0
      %3959 = vmatprep.subr.mxu0 0.0
      %3960 = vmatpush1.msra.mxu0 0.0
      %3961 = vmatprep.subr.mxu0 0.0
      %3962 = vmatpush1.msra.mxu0 0.0
      %3963 = vmatprep.subr.mxu0 0.0
      %3964 = vmatpush1.msra.mxu0 0.0
      %3965 = vmatprep.subr.mxu0 0.0
      %3966 = vmatpush1.msra.mxu0 0.0
      %3967 = vmatprep.subr.mxu0 0.0
      %3968 = vmatpush1.msra.mxu0 0.0
      %3969 = vmatprep.subr.mxu0 0.0
      %3970 = vmatpush1.msra.mxu0 0.0
      %3971 = vmatprep.subr.mxu0 0.0
      %3972 = vmatpush1.msra.mxu0 0.0
      %3973 = vmatprep.subr.mxu0 0.0
      %3974 = vmatpush1.msra.mxu0 0.0
      %3975 = vmatprep.subr.mxu0 0.0
      %3976 = vmatpush1.msra.mxu0 0.0
      %3977 = vmatprep.subr.mxu0 0.0
      %3978 = vmatpush1.msra.mxu0 0.0
      %3979 = vmatprep.subr.mxu0 0.0
      %3980 = vmatpush1.msra.mxu0 0.0
      %3981 = vmatprep.subr.mxu0 0.0
      %3982 = vmatpush1.msra.mxu0 0.0
      %3983 = vmatprep.subr.mxu0 0.0
      %3984 = vmatpush1.msra.mxu0 0.0
      %3985 = vmatprep.subr.mxu0 0.0
      %3986 = vmatpush1.msra.mxu0 0.0
      %3987 = vmatprep.subr.mxu0 0.0
      %3988 = vmatpush1.msra.mxu0 0.0
      %3989 = vmatprep.subr.mxu0 0.0
      %3990 = vmatpush1.msra.mxu0 0.0
      %3991 = vmatprep.subr.mxu0 0.0
      %3992 = vmatpush1.msra.mxu0 0.0
      %3993 = vmatprep.subr.mxu0 0.0
      %3994 = vmatpush1.msra.mxu0 0.0
      %3995 = vmatprep.subr.mxu0 0.0
      %3996 = vmatpush1.msra.mxu0 0.0
      %3997 = vmatprep.subr.mxu0 0.0
      %3998 = vmatpush1.msra.mxu0 0.0
      %3999 = vmatprep.subr.mxu0 0.0
      %4000 = vmatpush1.msra.mxu0 0.0
      %4001 = vmatprep.subr.mxu0 0.0
      %4002 = vmatpush1.msra.mxu0 0.0
      %4003 = vmatprep.mubr.f32.mxu0 0.0
      %4004 = vmatmul.mubr.f32.gmra.mrb[0].mxu0 %v3459
      %v4005 = vpop.f32.mrb[0].mxu0
      %v4006 = vadd.f32 %v3440, %v4005
      %v4007 = vpop.f32.mrb[0].mxu0
      %4008 = vmatprep.mubr.f32.mxu0 0.0
      %4009 = vmatmul.mubr.f32.gmra.mrb[0].mxu0 %v3462
      %v4010 = vpop.f32.mrb[0].mxu0
      %v4011 = vadd.f32 %v3445, %v4010
      %v4012 = vpop.f32.mrb[0].mxu0
      %4013 = vmatprep.mubr.f32.mxu0 0.0
      %4014 = vmatmul.mubr.f32.gmra.mrb[0].mxu0 %v3465
      %v4015 = vpop.f32.mrb[0].mxu0
      %v4016 = vadd.f32 %v3450, %v4015
      %v4017 = vpop.f32.mrb[0].mxu0
      %4018 = vmatprep.mubr.f32.mxu0 0.0
      %4019 = vmatmul.mubr.f32.gmra.mrb[0].mxu0 %v3468
      %v4020 = vpop.f32.mrb[0].mxu0
      %v4021 = vadd.f32 %v3455, %v4020
      %v4022 = vpop.f32.mrb[0].mxu0
      %4023 = vdwg.mxu0
      %s4024 = scalar_lea.vmem %s275, 160
      %4025 = vst [vmem:[%s4024] sm:$0xff] %v4006
      %4026 = vst [vmem:[%s4024 + $0x8] sm:$0xff] %v4011
      %4027 = vst [vmem:[%s4024 + $0x10] sm:$0xff] %v4016
      %4028 = vst [vmem:[%s4024 + $0x18] sm:$0xff] %v4021
      %v4029 = vld [vmem:[%s1575] sm:$0xff]
      %v4030 = vld [vmem:[%s1575 + $0x8] sm:$0xff]
      %v4031 = vld [vmem:[%s1575 + $0x10] sm:$0xff]
      %v4032 = vld [vmem:[%s1575 + $0x18] sm:$0xff]
      %4033 = vmatprep.subr.mxu0 0.0
      %4034 = vmatpush1.msra.mxu0 %v4029
      %4035 = vmatprep.subr.mxu0 0.0
      %4036 = vmatpush1.msra.mxu0 %v4030
      %4037 = vmatprep.subr.mxu0 0.0
      %4038 = vmatpush1.msra.mxu0 %v4031
      %4039 = vmatprep.subr.mxu0 0.0
      %4040 = vmatpush1.msra.mxu0 %v4032
      %4041 = vmatprep.subr.mxu0 0.0
      %4042 = vmatpush1.msra.mxu0 %v3417
      %4043 = vmatprep.subr.mxu0 0.0
      %4044 = vmatpush1.msra.mxu0 %v3418
      %4045 = vmatprep.subr.mxu0 0.0
      %4046 = vmatpush1.msra.mxu0 %v3419
      %4047 = vmatprep.subr.mxu0 0.0
      %4048 = vmatpush1.msra.mxu0 %v3420
      %4049 = vmatprep.subr.mxu0 0.0
      %4050 = vmatpush1.msra.mxu0 0.0
      %4051 = vmatprep.subr.mxu0 0.0
      %4052 = vmatpush1.msra.mxu0 0.0
      %4053 = vmatprep.subr.mxu0 0.0
      %4054 = vmatpush1.msra.mxu0 0.0
      %4055 = vmatprep.subr.mxu0 0.0
      %4056 = vmatpush1.msra.mxu0 0.0
      %4057 = vmatprep.subr.mxu0 0.0
      %4058 = vmatpush1.msra.mxu0 0.0
      %4059 = vmatprep.subr.mxu0 0.0
      %4060 = vmatpush1.msra.mxu0 0.0
      %4061 = vmatprep.subr.mxu0 0.0
      %4062 = vmatpush1.msra.mxu0 0.0
      %4063 = vmatprep.subr.mxu0 0.0
      %4064 = vmatpush1.msra.mxu0 0.0
      %4065 = vmatprep.subr.mxu0 0.0
      %4066 = vmatpush1.msra.mxu0 0.0
      %4067 = vmatprep.subr.mxu0 0.0
      %4068 = vmatpush1.msra.mxu0 0.0
      %4069 = vmatprep.subr.mxu0 0.0
      %4070 = vmatpush1.msra.mxu0 0.0
      %4071 = vmatprep.subr.mxu0 0.0
      %4072 = vmatpush1.msra.mxu0 0.0
      %4073 = vmatprep.subr.mxu0 0.0
      %4074 = vmatpush1.msra.mxu0 0.0
      %4075 = vmatprep.subr.mxu0 0.0
      %4076 = vmatpush1.msra.mxu0 0.0
      %4077 = vmatprep.subr.mxu0 0.0
      %4078 = vmatpush1.msra.mxu0 0.0
      %4079 = vmatprep.subr.mxu0 0.0
      %4080 = vmatpush1.msra.mxu0 0.0
      %4081 = vmatprep.subr.mxu0 0.0
      %4082 = vmatpush1.msra.mxu0 0.0
      %4083 = vmatprep.subr.mxu0 0.0
      %4084 = vmatpush1.msra.mxu0 0.0
      %4085 = vmatprep.subr.mxu0 0.0
      %4086 = vmatpush1.msra.mxu0 0.0
      %4087 = vmatprep.subr.mxu0 0.0
      %4088 = vmatpush1.msra.mxu0 0.0
      %4089 = vmatprep.subr.mxu0 0.0
      %4090 = vmatpush1.msra.mxu0 0.0
      %4091 = vmatprep.subr.mxu0 0.0
      %4092 = vmatpush1.msra.mxu0 0.0
      %4093 = vmatprep.subr.mxu0 0.0
      %4094 = vmatpush1.msra.mxu0 0.0
      %4095 = vmatprep.subr.mxu0 0.0
      %4096 = vmatpush1.msra.mxu0 0.0
      %4097 = vmatprep.mubr.f32.mxu0 0.0
      %4098 = vmatmul.mubr.f32.gmra.mrb[0].mxu0 %v3459
      %v4099 = vpop.f32.mrb[0].mxu0
      %v4100 = vadd.f32 %v3440, %v4099
      %v4101 = vpop.f32.mrb[0].mxu0
      %4102 = vmatprep.mubr.f32.mxu0 0.0
      %4103 = vmatmul.mubr.f32.gmra.mrb[0].mxu0 %v3462
      %v4104 = vpop.f32.mrb[0].mxu0
      %v4105 = vadd.f32 %v3445, %v4104
      %v4106 = vpop.f32.mrb[0].mxu0
      %4107 = vmatprep.mubr.f32.mxu0 0.0
      %4108 = vmatmul.mubr.f32.gmra.mrb[0].mxu0 %v3465
      %v4109 = vpop.f32.mrb[0].mxu0
      %v4110 = vadd.f32 %v3450, %v4109
      %v4111 = vpop.f32.mrb[0].mxu0
      %4112 = vmatprep.mubr.f32.mxu0 0.0
      %4113 = vmatmul.mubr.f32.gmra.mrb[0].mxu0 %v3468
      %v4114 = vpop.f32.mrb[0].mxu0
      %v4115 = vadd.f32 %v3455, %v4114
      %v4116 = vpop.f32.mrb[0].mxu0
      %4117 = vdwg.mxu0
      %s4118 = scalar_lea.vmem %s275, 192
      %4119 = vst [vmem:[%s4118] sm:$0xff] %v4100
      %4120 = vst [vmem:[%s4118 + $0x8] sm:$0xff] %v4105
      %4121 = vst [vmem:[%s4118 + $0x10] sm:$0xff] %v4110
      %4122 = vst [vmem:[%s4118 + $0x18] sm:$0xff] %v4115
      %v4123 = vld [vmem:[%s1780] sm:$0xff]
      %v4124 = vld [vmem:[%s1780 + $0x8] sm:$0xff]
      %v4125 = vld [vmem:[%s1780 + $0x10] sm:$0xff]
      %v4126 = vld [vmem:[%s1780 + $0x18] sm:$0xff]
      %4127 = vmatprep.subr.mxu0 0.0
      %4128 = vmatpush1.msra.mxu0 %v4123
      %4129 = vmatprep.subr.mxu0 0.0
      %4130 = vmatpush1.msra.mxu0 %v4124
      %4131 = vmatprep.subr.mxu0 0.0
      %4132 = vmatpush1.msra.mxu0 %v4125
      %4133 = vmatprep.subr.mxu0 0.0
      %4134 = vmatpush1.msra.mxu0 %v4126
      %4135 = vmatprep.subr.mxu0 0.0
      %4136 = vmatpush1.msra.mxu0 %v3421
      %4137 = vmatprep.subr.mxu0 0.0
      %4138 = vmatpush1.msra.mxu0 %v3422
      %4139 = vmatprep.subr.mxu0 0.0
      %4140 = vmatpush1.msra.mxu0 %v3423
      %4141 = vmatprep.subr.mxu0 0.0
      %4142 = vmatpush1.msra.mxu0 %v3424
      %4143 = vmatprep.subr.mxu0 0.0
      %4144 = vmatpush1.msra.mxu0 0.0
      %4145 = vmatprep.subr.mxu0 0.0
      %4146 = vmatpush1.msra.mxu0 0.0
      %4147 = vmatprep.subr.mxu0 0.0
      %4148 = vmatpush1.msra.mxu0 0.0
      %4149 = vmatprep.subr.mxu0 0.0
      %4150 = vmatpush1.msra.mxu0 0.0
      %4151 = vmatprep.subr.mxu0 0.0
      %4152 = vmatpush1.msra.mxu0 0.0
      %4153 = vmatprep.subr.mxu0 0.0
      %4154 = vmatpush1.msra.mxu0 0.0
      %4155 = vmatprep.subr.mxu0 0.0
      %4156 = vmatpush1.msra.mxu0 0.0
      %4157 = vmatprep.subr.mxu0 0.0
      %4158 = vmatpush1.msra.mxu0 0.0
      %4159 = vmatprep.subr.mxu0 0.0
      %4160 = vmatpush1.msra.mxu0 0.0
      %4161 = vmatprep.subr.mxu0 0.0
      %4162 = vmatpush1.msra.mxu0 0.0
      %4163 = vmatprep.subr.mxu0 0.0
      %4164 = vmatpush1.msra.mxu0 0.0
      %4165 = vmatprep.subr.mxu0 0.0
      %4166 = vmatpush1.msra.mxu0 0.0
      %4167 = vmatprep.subr.mxu0 0.0
      %4168 = vmatpush1.msra.mxu0 0.0
      %4169 = vmatprep.subr.mxu0 0.0
      %4170 = vmatpush1.msra.mxu0 0.0
      %4171 = vmatprep.subr.mxu0 0.0
      %4172 = vmatpush1.msra.mxu0 0.0
      %4173 = vmatprep.subr.mxu0 0.0
      %4174 = vmatpush1.msra.mxu0 0.0
      %4175 = vmatprep.subr.mxu0 0.0
      %4176 = vmatpush1.msra.mxu0 0.0
      %4177 = vmatprep.subr.mxu0 0.0
      %4178 = vmatpush1.msra.mxu0 0.0
      %4179 = vmatprep.subr.mxu0 0.0
      %4180 = vmatpush1.msra.mxu0 0.0
      %4181 = vmatprep.subr.mxu0 0.0
      %4182 = vmatpush1.msra.mxu0 0.0
      %4183 = vmatprep.subr.mxu0 0.0
      %4184 = vmatpush1.msra.mxu0 0.0
      %4185 = vmatprep.subr.mxu0 0.0
      %4186 = vmatpush1.msra.mxu0 0.0
      %4187 = vmatprep.subr.mxu0 0.0
      %4188 = vmatpush1.msra.mxu0 0.0
      %4189 = vmatprep.subr.mxu0 0.0
      %4190 = vmatpush1.msra.mxu0 0.0
      %4191 = vmatprep.mubr.f32.mxu0 0.0
      %4192 = vmatmul.mubr.f32.gmra.mrb[0].mxu0 %v3459
      %v4193 = vpop.f32.mrb[0].mxu0
      %v4194 = vadd.f32 %v3440, %v4193
      %v4195 = vpop.f32.mrb[0].mxu0
      %4196 = vmatprep.mubr.f32.mxu0 0.0
      %4197 = vmatmul.mubr.f32.gmra.mrb[0].mxu0 %v3462
      %v4198 = vpop.f32.mrb[0].mxu0
      %v4199 = vadd.f32 %v3445, %v4198
      %v4200 = vpop.f32.mrb[0].mxu0
      %4201 = vmatprep.mubr.f32.mxu0 0.0
      %4202 = vmatmul.mubr.f32.gmra.mrb[0].mxu0 %v3465
      %v4203 = vpop.f32.mrb[0].mxu0
      %v4204 = vadd.f32 %v3450, %v4203
      %v4205 = vpop.f32.mrb[0].mxu0
      %4206 = vmatprep.mubr.f32.mxu0 0.0
      %4207 = vmatmul.mubr.f32.gmra.mrb[0].mxu0 %v3468
      %v4208 = vpop.f32.mrb[0].mxu0
      %v4209 = vadd.f32 %v3455, %v4208
      %v4210 = vpop.f32.mrb[0].mxu0
      %4211 = vdwg.mxu0
      %s4212 = scalar_lea.vmem %s275, 224
      %4213 = vst [vmem:[%s4212] sm:$0xff] %v4194
      %4214 = vst [vmem:[%s4212 + $0x8] sm:$0xff] %v4199
      %4215 = vst [vmem:[%s4212 + $0x10] sm:$0xff] %v4204
      %4216 = vst [vmem:[%s4212 + $0x18] sm:$0xff] %v4209
      %p4217 = scmp.lt.s32.totalorder %s20, 1
      %s4218 = scalar_select %p4217, %s20, 1
      %p4219 = scmp.lt.s32.totalorder %s21, 0
      %s4220 = scalar_select %p4219, %s21, 0
      %s4221 = smul.addr %s4218, 32
      %s4222 = sadd.s32 %s4220, %s4221
      %s4223 = smul.addr %s4222, 8
      %s4224 = scalar_lea.vmem %s5, %s4223
      // Predicated region
      $region41: #{transform_attention_forward.1} parent=39 // pred_check
        %p4225 = pneg %p165
      $region42: #{transform_attention_forward.1} parent=39 // pred_check_branch
        %4227 = sbr.rel (%p4225) target = $region44
      $region43: #{transform_attention_forward.1} parent=39 // pred_region
        _
      $region44: #{transform_attention_forward.1} parent=39 // pred_fallthru
        _
    $region40: #{transform_attention_forward.1} parent=5 // pred_fallthru
      _
    %p4228 = scmp.le.s32.totalorder 2, %s11
    // Predicated region
    $region45: #{transform_attention_forward.1} parent=5 // pred_check
      %p4229 = pneg %p4228
    $region46: #{transform_attention_forward.1} parent=5 // pred_check_branch
      %4231 = sbr.rel (%p4229) target = $region48
    $region47: #{transform_attention_forward.1} parent=5 // pred_region
      %s4232 = ssub.s32 %s11, 2
      // Predicated region
      $region49: #{transform_attention_forward.1} parent=47 // pred_check
        %p4233 = pneg %p171
      $region50: #{transform_attention_forward.1} parent=47 // pred_check_branch
        %4235 = sbr.rel (%p4233) target = $region52
      $region51: #{transform_attention_forward.1} parent=47 // pred_region
        %p4236 = scmp.lt.s32.totalorder %s22, 1
        %s4237 = scalar_select %p4236, %s22, 1
        %p4238 = scmp.lt.s32.totalorder %s23, 0
        %s4239 = scalar_select %p4238, %s23, 0
        %s4240 = smul.addr %s4237, 32
        %s4241 = sadd.s32 %s4239, %s4240
        %s4242 = smul.addr %s4241, 8
        %s4243 = scalar_lea.vmem %s5, %s4242
      $region52: #{transform_attention_forward.1} parent=47 // pred_fallthru
        _
    $region48: #{transform_attention_forward.1} parent=5 // pred_fallthru
      _
  $region6: #{transform_attention_forward.1} parent=0 // loop_footer
    %s15 = sadd.s32 1, %s11
  $region7: #{transform_attention_forward.1} parent=0 // loop_footer_branch
    %10 = sbr.rel target = $region3
  $region8: #{transform_attention_forward.1} parent=0 // loop_exit
    _

</llo_original>
